<compile_context>
chip_gen: v6e
topology: v6e:2x2x1
jax: 0.10.0
libtpu: 0.0.40
codegen_flags: <defaults>
</compile_context>

<pallas_src>
import functools

import jax
import jax.numpy as jnp
from jax import lax
from jax.experimental import pallas as pl
from jax.experimental.pallas import tpu as pltpu


def eda_kernel(x_ref, w1_ref, b1_ref,
               w31a_ref, b31a_ref, w13a_ref, b13a_ref,
               w31b_ref, b31b_ref, w13b_ref, b13b_ref,
               o_ref, *, Nb, H, W, Cin, K, d):
    """Nb batch elements per grid step; flat (M, K) working layout in VMEM."""
    M = Nb * H * W
    x = x_ref[...]                                      # (Nb, H, W, Cin)
    xf = x.reshape(M, Cin)                              # flat, layout-preserving

    # Flat-row spatial coordinates as (M, 1) — no 4D iota / relayout.
    m_idx = lax.broadcasted_iota(jnp.int32, (M, 1), 0)
    if (W & (W - 1)) == 0 and (H & (H - 1)) == 0:       # power-of-two fast path
        w_idx = m_idx & (W - 1)
        h_idx = (m_idx >> (W.bit_length() - 1)) & (H - 1)
    else:
        w_idx = m_idx % W
        h_idx = (m_idx // W) % H

    def mxu(a, w_bf16):
        # bf16 operands, f32 accumulation.
        return jnp.dot(a.astype(jnp.bfloat16), w_bf16,
                       preferred_element_type=jnp.float32)

    def sep_conv(v, w_ref, b_ref, dil, along_h):
        """3-tap separable conv (H or W direction) with dilation `dil`.

        Off-centre taps are sublane rolls (XLU) of the flat f32 activation,
        masked with one boundary comparison each; every tap is its own MXU
        dot (no lane concat), summed in f32.
        """
        coord, extent = (h_idx, H) if along_h else (w_idx, W)
        row_step = W if along_h else 1
        acc = mxu(v, w_ref[1])                           # centre tap, no mask
        for t, s in ((0, -dil), (2, dil)):               # static unroll
            rolled = pltpu.roll(v, (-s * row_step) % M, 0)
            mask = (coord < extent - s) if s > 0 else (coord >= -s)
            acc = acc + mxu(jnp.where(mask, rolled, 0.0), w_ref[t])
        return acc + b_ref[...]

    # ---- 1x1 conv (BN0 folded into w1/b1) + ReLU ----
    y = jnp.maximum(mxu(xf, w1_ref[...]) + b1_ref[...], 0.0)

    # ---- 3x1 then 1x3 (dilation 1); BN1 folded into the 1x3 weights; ReLU ----
    y = sep_conv(y, w31a_ref, b31a_ref, 1, True)
    y = jnp.maximum(sep_conv(y, w13a_ref, b13a_ref, 1, False), 0.0)

    # ---- 3x1 then 1x3 (dilation d); BN2 folded; ReLU ----
    y = sep_conv(y, w31b_ref, b31b_ref, d, True)
    y = jnp.maximum(sep_conv(y, w13b_ref, b13b_ref, d, False), 0.0)

    # ---- torch.cat([output, x], channel axis): two sub-range stores ----
    o_ref[:, :, :, :K] = y.reshape(Nb, H, W, K).astype(o_ref.dtype)
    o_ref[:, :, :, K:] = x


def eda_block_forward(x_nhwc, params, dilation_rate, block_n=None):
    N, H, W, Cin = x_nhwc.shape
    K = params["w1"].shape[1]
    f32, bf16 = jnp.float32, jnp.bfloat16

    # Host-side folding: BN scale/shift -> adjacent conv weights; weights bf16.
    def fold_w(w, s):
        return (w * s).astype(bf16)

    def fold_b(b, s, t):
        return (b * s + t).astype(f32)

    w1 = fold_w(params["w1"], params["s0"])
    b1 = fold_b(params["b1"], params["s0"], params["t0"])
    w31a = params["w31a"].astype(bf16)
    b31a = params["b31a"].astype(f32)
    w13a = fold_w(params["w13a"], params["s1"])
    b13a = fold_b(params["b13a"], params["s1"], params["t1"])
    w31b = params["w31b"].astype(bf16)
    b31b = params["b31b"].astype(f32)
    w13b = fold_w(params["w13b"], params["s2"])
    b13b = fold_b(params["b13b"], params["s2"], params["t2"])
    flat_params = [w1, b1, w31a, b31a, w13a, b13a, w31b, b31b, w13b, b13b]

    itemsize = x_nhwc.dtype.itemsize
    per_batch_io = H * W * (Cin + (K + Cin)) * itemsize   # in + out per batch elem

    if block_n is None:
        # Largest divisor of N that (a) keeps >=2 grid steps when N>=2 (pipeline
        # overlap + v7x dual-TC sharding) and (b) moves <= ~2 MB per step.
        block_n = 1
        for nb in range(1, N + 1):
            if N % nb:
                continue
            if N >= 2 and N // nb < 2:
                continue
            if nb * per_batch_io > (2 << 20):
                continue
            block_n = nb
    grid = (N // block_n,)

    # Explicit scoped-VMEM budget from the real block footprint (+30% headroom).
    M = block_n * H * W
    weight_bytes = sum(int(p.size) * p.dtype.itemsize for p in flat_params)
    in_block = block_n * H * W * Cin * itemsize
    out_block = block_n * H * W * (K + Cin) * itemsize
    live_bytes = M * (Cin + 6 * K + 2) * 4                # f32 working set
    vmem_limit = int(1.3 * (2 * (in_block + out_block) + 2 * weight_bytes
                            + live_bytes))
    vmem_limit = max(vmem_limit, 4 << 20)
    vmem_limit = min(vmem_limit, 64 << 20)                # within v7x physical VMEM

    kernel = functools.partial(eda_kernel, Nb=block_n, H=H, W=W, Cin=Cin, K=K,
                               d=dilation_rate)

    in_specs = [pl.BlockSpec((block_n, H, W, Cin), lambda n: (n, 0, 0, 0))]
    in_specs += [pl.BlockSpec(p.shape, lambda n, nd=p.ndim: (0,) * nd)
                 for p in flat_params]

    return pl.pallas_call(
        kernel,
        out_shape=jax.ShapeDtypeStruct((N, H, W, K + Cin), x_nhwc.dtype),
        grid_spec=pltpu.PrefetchScalarGridSpec(
            num_scalar_prefetch=0,
            grid=grid,
            in_specs=in_specs,
            out_specs=pl.BlockSpec((block_n, H, W, K + Cin),
                                   lambda n: (n, 0, 0, 0)),
        ),
        compiler_params=pltpu.CompilerParams(
            dimension_semantics=("parallel",),
            vmem_limit_bytes=vmem_limit),
    )(x_nhwc, *flat_params)


# ------------------------- parameter construction -------------------------

def make_params(key, in_channel, k, eps=1e-5):
    keys = jax.random.split(key, 24)
    ki = iter(range(24))

    def nrm(shape, scale=0.1):
        return scale * jax.random.normal(keys[next(ki)], shape, jnp.float32)

    def fold_bn(gamma, beta, mean, var):
        s = gamma / jnp.sqrt(var + eps)
        t = beta - mean * s
        return s.reshape(1, -1), t.reshape(1, -1)

    def bn_params():
        gamma = 1.0 + nrm((k,), 0.05)
        beta = nrm((k,), 0.05)
        mean = nrm((k,), 0.05)
        var = 0.5 + jax.random.uniform(keys[next(ki)], (k,), jnp.float32)
        return fold_bn(gamma, beta, mean, var)

    p = {}
    p["w1"] = nrm((in_channel, k))            # (Cin, K) = torch (K,Cin,1,1).T
    p["b1"] = nrm((k,)).reshape(1, k)
    p["s0"], p["t0"] = bn_params()
    p["w31a"] = nrm((3, k, k))                # (tap, in, out)
    p["b31a"] = nrm((k,)).reshape(1, k)
    p["w13a"] = nrm((3, k, k))
    p["b13a"] = nrm((k,)).reshape(1, k)
    p["s1"], p["t1"] = bn_params()
    p["w31b"] = nrm((3, k, k))
    p["b31b"] = nrm((k,)).reshape(1, k)
    p["w13b"] = nrm((3, k, k))
    p["b13b"] = nrm((k,)).reshape(1, k)
    p["s2"], p["t2"] = bn_params()
    return p


# ------------------------- pure-JAX f32 reference --------------------------

def reference_forward(x_nhwc, params, d):
    def conv(x, w_hwio, b, padding, rhs_dil):
        y = lax.conv_general_dilated(
            x, w_hwio, window_strides=(1, 1), padding=padding,
            rhs_dilation=rhs_dil,
            dimension_numbers=("NHWC", "HWIO", "NHWC"))
        return y + b.reshape(1, 1, 1, -1)

    def bn_relu(y, s, t):
        return jnp.maximum(y * s.reshape(1, 1, 1, -1) + t.reshape(1, 1, 1, -1),
                           0.0)

    K = params["w1"].shape[1]
    y = jnp.einsum("nhwc,ck->nhwk", x_nhwc, params["w1"]) \
        + params["b1"].reshape(1, 1, 1, -1)
    y = bn_relu(y, params["s0"], params["t0"])
    y = conv(y, params["w31a"].reshape(3, 1, K, K), params["b31a"],
             [(1, 1), (0, 0)], (1, 1))
    y = conv(y, params["w13a"].reshape(1, 3, K, K), params["b13a"],
             [(0, 0), (1, 1)], (1, 1))
    y = bn_relu(y, params["s1"], params["t1"])
    y = conv(y, params["w31b"].reshape(3, 1, K, K), params["b31b"],
             [(d, d), (0, 0)], (d, 1))
    y = conv(y, params["w13b"].reshape(1, 3, K, K), params["b13b"],
             [(0, 0), (d, d)], (1, d))
    y = bn_relu(y, params["s2"], params["t2"])
    return jnp.concatenate([y, x_nhwc], axis=-1)


# --------------------------------- main ------------------------------------

if __name__ == "__main__":
    N, Cin, H, W = 2, 4, 16, 16
    K = 40
    dilation_rate = 2

    key = jax.random.PRNGKey(0)
    kx, kp = jax.random.split(key)
    x = jax.random.normal(kx, (N, H, W, Cin), jnp.float32)   # NHWC
    params = make_params(kp, Cin, K)

    out = eda_block_forward(x, params, dilation_rate)
    out = jax.block_until_ready(out)

    ref = jax.block_until_ready(reference_forward(x, params, dilation_rate))

    assert out.shape == (N, H, W, K + Cin), out.shape
    # Kernel uses bf16 MXU operands (per perf review) vs. an all-f32 reference,
    # so compare with a bf16-appropriate tolerance.
    max_err = float(jnp.max(jnp.abs(out - ref)))
    assert jnp.allclose(out, ref, atol=5e-2, rtol=5e-2), max_err

    print("KERNEL_OK")
</pallas_src>

<mosaic_0001>
module attributes {stable_mosaic.version = 11 : i64} {
  func.func @eda_kernel(%arg0: i32, %arg1: memref<1x16x16x4xf32, #tpu.memory_space<vmem>>, %arg2: memref<4x40xbf16, #tpu.memory_space<vmem>>, %arg3: memref<1x40xf32, #tpu.memory_space<vmem>>, %arg4: memref<3x40x40xbf16, #tpu.memory_space<vmem>>, %arg5: memref<1x40xf32, #tpu.memory_space<vmem>>, %arg6: memref<3x40x40xbf16, #tpu.memory_space<vmem>>, %arg7: memref<1x40xf32, #tpu.memory_space<vmem>>, %arg8: memref<3x40x40xbf16, #tpu.memory_space<vmem>>, %arg9: memref<1x40xf32, #tpu.memory_space<vmem>>, %arg10: memref<3x40x40xbf16, #tpu.memory_space<vmem>>, %arg11: memref<1x40xf32, #tpu.memory_space<vmem>>, %arg12: memref<1x16x16x44xf32, #tpu.memory_space<vmem>>) attributes {dimension_semantics = [#tpu.dimension_semantics<parallel>], iteration_bounds = array<i64: 2>, scalar_prefetch = 0 : i64, scratch_operands = 0 : i64, tpu.core_type = #tpu.core_type<tc>, window_params = [{transform_indices = @transform_0, window_bounds = array<i64: 1, 16, 16, 4>}, {pipeline_mode = #tpu.pipeline_mode<synchronous>, transform_indices = @transform_1, window_bounds = array<i64: 4, 40>}, {pipeline_mode = #tpu.pipeline_mode<synchronous>, transform_indices = @transform_2, window_bounds = array<i64: 1, 40>}, {pipeline_mode = #tpu.pipeline_mode<synchronous>, transform_indices = @transform_3, window_bounds = array<i64: 3, 40, 40>}, {pipeline_mode = #tpu.pipeline_mode<synchronous>, transform_indices = @transform_4, window_bounds = array<i64: 1, 40>}, {pipeline_mode = #tpu.pipeline_mode<synchronous>, transform_indices = @transform_5, window_bounds = array<i64: 3, 40, 40>}, {pipeline_mode = #tpu.pipeline_mode<synchronous>, transform_indices = @transform_6, window_bounds = array<i64: 1, 40>}, {pipeline_mode = #tpu.pipeline_mode<synchronous>, transform_indices = @transform_7, window_bounds = array<i64: 3, 40, 40>}, {pipeline_mode = #tpu.pipeline_mode<synchronous>, transform_indices = @transform_8, window_bounds = array<i64: 1, 40>}, {pipeline_mode = #tpu.pipeline_mode<synchronous>, transform_indices = @transform_9, window_bounds = array<i64: 3, 40, 40>}, {pipeline_mode = #tpu.pipeline_mode<synchronous>, transform_indices = @transform_10, window_bounds = array<i64: 1, 40>}, {transform_indices = @transform_11, window_bounds = array<i64: 1, 16, 16, 44>}]} {
    %c0 = arith.constant 0 : index
    %c0_0 = arith.constant 0 : index
    %c0_1 = arith.constant 0 : index
    %c0_2 = arith.constant 0 : index
    %0 = vector.load %arg1[%c0, %c0_0, %c0_1, %c0_2] : memref<1x16x16x4xf32, #tpu.memory_space<vmem>>, vector<1x16x16x4xf32>
    %1 = vector.shape_cast %0 : vector<1x16x16x4xf32> to vector<256x4xf32>
    %2 = tpu.iota {dimensions = array<i32: 0>} : vector<256x1xi32>
    %c15_i32 = arith.constant 15 : i32
    %3 = vector.broadcast %c15_i32 : i32 to vector<256x1xi32>
    %4 = arith.andi %2, %3 : vector<256x1xi32>
    %c4_i32 = arith.constant 4 : i32
    %5 = vector.broadcast %c4_i32 : i32 to vector<256x1xi32>
    %6 = arith.shrsi %2, %5 : vector<256x1xi32>
    %c15_i32_3 = arith.constant 15 : i32
    %7 = vector.broadcast %c15_i32_3 : i32 to vector<256x1xi32>
    %8 = arith.andi %6, %7 : vector<256x1xi32>
    %c0_4 = arith.constant 0 : index
    %c0_5 = arith.constant 0 : index
    %9 = vector.load %arg2[%c0_4, %c0_5] : memref<4x40xbf16, #tpu.memory_space<vmem>>, vector<4x40xbf16>
    %10 = arith.truncf %1 : vector<256x4xf32> to vector<256x4xbf16>
    %cst = arith.constant dense<0.000000e+00> : vector<256x40xf32>
    %11 = tpu.matmul %10, %9, %cst {dimension_numbers = #tpu.dot_dimension_numbers<[1], [0], [0], [1], [0, 0, 1, 1], [], []>} : vector<256x4xbf16>, vector<4x40xbf16>, vector<256x40xf32> -> vector<256x40xf32>
    %c0_6 = arith.constant 0 : index
    %c0_7 = arith.constant 0 : index
    %12 = vector.load %arg3[%c0_6, %c0_7] : memref<1x40xf32, #tpu.memory_space<vmem>>, vector<1x40xf32>
    %13 = vector.broadcast %12 : vector<1x40xf32> to vector<256x40xf32>
    %14 = arith.addf %11, %13 : vector<256x40xf32>
    %cst_8 = arith.constant 0.000000e+00 : f32
    %15 = vector.broadcast %cst_8 : f32 to vector<256x40xf32>
    %16 = arith.maximumf %14, %15 : vector<256x40xf32>
    %c1 = arith.constant 1 : index
    %c0_9 = arith.constant 0 : index
    %c0_10 = arith.constant 0 : index
    %17 = vector.load %arg4[%c1, %c0_9, %c0_10] : memref<3x40x40xbf16, #tpu.memory_space<vmem>>, vector<1x40x40xbf16>
    %18 = vector.shape_cast %17 : vector<1x40x40xbf16> to vector<40x40xbf16>
    %19 = arith.truncf %16 : vector<256x40xf32> to vector<256x40xbf16>
    %cst_11 = arith.constant dense<0.000000e+00> : vector<256x40xf32>
    %20 = tpu.matmul %19, %18, %cst_11 {dimension_numbers = #tpu.dot_dimension_numbers<[1], [0], [0], [1], [0, 0, 1, 1], [], []>} : vector<256x40xbf16>, vector<40x40xbf16>, vector<256x40xf32> -> vector<256x40xf32>
    %c16_i32 = arith.constant 16 : i32
    %21 = tpu.dynamic_rotate %16 by %c16_i32 dim 0 : vector<256x40xf32>, i32 -> vector<256x40xf32>
    %c1_i32 = arith.constant 1 : i32
    %22 = vector.broadcast %c1_i32 : i32 to vector<256x1xi32>
    %23 = arith.cmpi sge, %8, %22 : vector<256x1xi32>
    %cst_12 = arith.constant 0.000000e+00 : f32
    %24 = vector.shape_cast %23 : vector<256x1xi1> to vector<256x1xi1>
    %25 = vector.broadcast %24 : vector<256x1xi1> to vector<256x40xi1>
    %26 = vector.broadcast %cst_12 : f32 to vector<256x40xf32>
    %27 = arith.select %25, %21, %26 : vector<256x40xi1>, vector<256x40xf32>
    %c0_13 = arith.constant 0 : index
    %c0_14 = arith.constant 0 : index
    %c0_15 = arith.constant 0 : index
    %28 = vector.load %arg4[%c0_13, %c0_14, %c0_15] : memref<3x40x40xbf16, #tpu.memory_space<vmem>>, vector<1x40x40xbf16>
    %29 = vector.shape_cast %28 : vector<1x40x40xbf16> to vector<40x40xbf16>
    %30 = arith.truncf %27 : vector<256x40xf32> to vector<256x40xbf16>
    %cst_16 = arith.constant dense<0.000000e+00> : vector<256x40xf32>
    %31 = tpu.matmul %30, %29, %cst_16 {dimension_numbers = #tpu.dot_dimension_numbers<[1], [0], [0], [1], [0, 0, 1, 1], [], []>} : vector<256x40xbf16>, vector<40x40xbf16>, vector<256x40xf32> -> vector<256x40xf32>
    %32 = arith.addf %20, %31 : vector<256x40xf32>
    %c240_i32 = arith.constant 240 : i32
    %33 = tpu.dynamic_rotate %16 by %c240_i32 dim 0 : vector<256x40xf32>, i32 -> vector<256x40xf32>
    %c15_i32_17 = arith.constant 15 : i32
    %34 = vector.broadcast %c15_i32_17 : i32 to vector<256x1xi32>
    %35 = arith.cmpi slt, %8, %34 : vector<256x1xi32>
    %cst_18 = arith.constant 0.000000e+00 : f32
    %36 = vector.shape_cast %35 : vector<256x1xi1> to vector<256x1xi1>
    %37 = vector.broadcast %36 : vector<256x1xi1> to vector<256x40xi1>
    %38 = vector.broadcast %cst_18 : f32 to vector<256x40xf32>
    %39 = arith.select %37, %33, %38 : vector<256x40xi1>, vector<256x40xf32>
    %c2 = arith.constant 2 : index
    %c0_19 = arith.constant 0 : index
    %c0_20 = arith.constant 0 : index
    %40 = vector.load %arg4[%c2, %c0_19, %c0_20] : memref<3x40x40xbf16, #tpu.memory_space<vmem>>, vector<1x40x40xbf16>
    %41 = vector.shape_cast %40 : vector<1x40x40xbf16> to vector<40x40xbf16>
    %42 = arith.truncf %39 : vector<256x40xf32> to vector<256x40xbf16>
    %cst_21 = arith.constant dense<0.000000e+00> : vector<256x40xf32>
    %43 = tpu.matmul %42, %41, %cst_21 {dimension_numbers = #tpu.dot_dimension_numbers<[1], [0], [0], [1], [0, 0, 1, 1], [], []>} : vector<256x40xbf16>, vector<40x40xbf16>, vector<256x40xf32> -> vector<256x40xf32>
    %44 = arith.addf %32, %43 : vector<256x40xf32>
    %c0_22 = arith.constant 0 : index
    %c0_23 = arith.constant 0 : index
    %45 = vector.load %arg5[%c0_22, %c0_23] : memref<1x40xf32, #tpu.memory_space<vmem>>, vector<1x40xf32>
    %46 = vector.broadcast %45 : vector<1x40xf32> to vector<256x40xf32>
    %47 = arith.addf %44, %46 : vector<256x40xf32>
    %c1_24 = arith.constant 1 : index
    %c0_25 = arith.constant 0 : index
    %c0_26 = arith.constant 0 : index
    %48 = vector.load %arg6[%c1_24, %c0_25, %c0_26] : memref<3x40x40xbf16, #tpu.memory_space<vmem>>, vector<1x40x40xbf16>
    %49 = vector.shape_cast %48 : vector<1x40x40xbf16> to vector<40x40xbf16>
    %50 = arith.truncf %47 : vector<256x40xf32> to vector<256x40xbf16>
    %cst_27 = arith.constant dense<0.000000e+00> : vector<256x40xf32>
    %51 = tpu.matmul %50, %49, %cst_27 {dimension_numbers = #tpu.dot_dimension_numbers<[1], [0], [0], [1], [0, 0, 1, 1], [], []>} : vector<256x40xbf16>, vector<40x40xbf16>, vector<256x40xf32> -> vector<256x40xf32>
    %c1_i32_28 = arith.constant 1 : i32
    %52 = tpu.dynamic_rotate %47 by %c1_i32_28 dim 0 : vector<256x40xf32>, i32 -> vector<256x40xf32>
    %c1_i32_29 = arith.constant 1 : i32
    %53 = vector.broadcast %c1_i32_29 : i32 to vector<256x1xi32>
    %54 = arith.cmpi sge, %4, %53 : vector<256x1xi32>
    %cst_30 = arith.constant 0.000000e+00 : f32
    %55 = vector.shape_cast %54 : vector<256x1xi1> to vector<256x1xi1>
    %56 = vector.broadcast %55 : vector<256x1xi1> to vector<256x40xi1>
    %57 = vector.broadcast %cst_30 : f32 to vector<256x40xf32>
    %58 = arith.select %56, %52, %57 : vector<256x40xi1>, vector<256x40xf32>
    %c0_31 = arith.constant 0 : index
    %c0_32 = arith.constant 0 : index
    %c0_33 = arith.constant 0 : index
    %59 = vector.load %arg6[%c0_31, %c0_32, %c0_33] : memref<3x40x40xbf16, #tpu.memory_space<vmem>>, vector<1x40x40xbf16>
    %60 = vector.shape_cast %59 : vector<1x40x40xbf16> to vector<40x40xbf16>
    %61 = arith.truncf %58 : vector<256x40xf32> to vector<256x40xbf16>
    %cst_34 = arith.constant dense<0.000000e+00> : vector<256x40xf32>
    %62 = tpu.matmul %61, %60, %cst_34 {dimension_numbers = #tpu.dot_dimension_numbers<[1], [0], [0], [1], [0, 0, 1, 1], [], []>} : vector<256x40xbf16>, vector<40x40xbf16>, vector<256x40xf32> -> vector<256x40xf32>
    %63 = arith.addf %51, %62 : vector<256x40xf32>
    %c255_i32 = arith.constant 255 : i32
    %64 = tpu.dynamic_rotate %47 by %c255_i32 dim 0 : vector<256x40xf32>, i32 -> vector<256x40xf32>
    %c15_i32_35 = arith.constant 15 : i32
    %65 = vector.broadcast %c15_i32_35 : i32 to vector<256x1xi32>
    %66 = arith.cmpi slt, %4, %65 : vector<256x1xi32>
    %cst_36 = arith.constant 0.000000e+00 : f32
    %67 = vector.shape_cast %66 : vector<256x1xi1> to vector<256x1xi1>
    %68 = vector.broadcast %67 : vector<256x1xi1> to vector<256x40xi1>
    %69 = vector.broadcast %cst_36 : f32 to vector<256x40xf32>
    %70 = arith.select %68, %64, %69 : vector<256x40xi1>, vector<256x40xf32>
    %c2_37 = arith.constant 2 : index
    %c0_38 = arith.constant 0 : index
    %c0_39 = arith.constant 0 : index
    %71 = vector.load %arg6[%c2_37, %c0_38, %c0_39] : memref<3x40x40xbf16, #tpu.memory_space<vmem>>, vector<1x40x40xbf16>
    %72 = vector.shape_cast %71 : vector<1x40x40xbf16> to vector<40x40xbf16>
    %73 = arith.truncf %70 : vector<256x40xf32> to vector<256x40xbf16>
    %cst_40 = arith.constant dense<0.000000e+00> : vector<256x40xf32>
    %74 = tpu.matmul %73, %72, %cst_40 {dimension_numbers = #tpu.dot_dimension_numbers<[1], [0], [0], [1], [0, 0, 1, 1], [], []>} : vector<256x40xbf16>, vector<40x40xbf16>, vector<256x40xf32> -> vector<256x40xf32>
    %75 = arith.addf %63, %74 : vector<256x40xf32>
    %c0_41 = arith.constant 0 : index
    %c0_42 = arith.constant 0 : index
    %76 = vector.load %arg7[%c0_41, %c0_42] : memref<1x40xf32, #tpu.memory_space<vmem>>, vector<1x40xf32>
    %77 = vector.broadcast %76 : vector<1x40xf32> to vector<256x40xf32>
    %78 = arith.addf %75, %77 : vector<256x40xf32>
    %cst_43 = arith.constant 0.000000e+00 : f32
    %79 = vector.broadcast %cst_43 : f32 to vector<256x40xf32>
    %80 = arith.maximumf %78, %79 : vector<256x40xf32>
    %c1_44 = arith.constant 1 : index
    %c0_45 = arith.constant 0 : index
    %c0_46 = arith.constant 0 : index
    %81 = vector.load %arg8[%c1_44, %c0_45, %c0_46] : memref<3x40x40xbf16, #tpu.memory_space<vmem>>, vector<1x40x40xbf16>
    %82 = vector.shape_cast %81 : vector<1x40x40xbf16> to vector<40x40xbf16>
    %83 = arith.truncf %80 : vector<256x40xf32> to vector<256x40xbf16>
    %cst_47 = arith.constant dense<0.000000e+00> : vector<256x40xf32>
    %84 = tpu.matmul %83, %82, %cst_47 {dimension_numbers = #tpu.dot_dimension_numbers<[1], [0], [0], [1], [0, 0, 1, 1], [], []>} : vector<256x40xbf16>, vector<40x40xbf16>, vector<256x40xf32> -> vector<256x40xf32>
    %c32_i32 = arith.constant 32 : i32
    %85 = tpu.dynamic_rotate %80 by %c32_i32 dim 0 : vector<256x40xf32>, i32 -> vector<256x40xf32>
    %c2_i32 = arith.constant 2 : i32
    %86 = vector.broadcast %c2_i32 : i32 to vector<256x1xi32>
    %87 = arith.cmpi sge, %8, %86 : vector<256x1xi32>
    %cst_48 = arith.constant 0.000000e+00 : f32
    %88 = vector.shape_cast %87 : vector<256x1xi1> to vector<256x1xi1>
    %89 = vector.broadcast %88 : vector<256x1xi1> to vector<256x40xi1>
    %90 = vector.broadcast %cst_48 : f32 to vector<256x40xf32>
    %91 = arith.select %89, %85, %90 : vector<256x40xi1>, vector<256x40xf32>
    %c0_49 = arith.constant 0 : index
    %c0_50 = arith.constant 0 : index
    %c0_51 = arith.constant 0 : index
    %92 = vector.load %arg8[%c0_49, %c0_50, %c0_51] : memref<3x40x40xbf16, #tpu.memory_space<vmem>>, vector<1x40x40xbf16>
    %93 = vector.shape_cast %92 : vector<1x40x40xbf16> to vector<40x40xbf16>
    %94 = arith.truncf %91 : vector<256x40xf32> to vector<256x40xbf16>
    %cst_52 = arith.constant dense<0.000000e+00> : vector<256x40xf32>
    %95 = tpu.matmul %94, %93, %cst_52 {dimension_numbers = #tpu.dot_dimension_numbers<[1], [0], [0], [1], [0, 0, 1, 1], [], []>} : vector<256x40xbf16>, vector<40x40xbf16>, vector<256x40xf32> -> vector<256x40xf32>
    %96 = arith.addf %84, %95 : vector<256x40xf32>
    %c224_i32 = arith.constant 224 : i32
    %97 = tpu.dynamic_rotate %80 by %c224_i32 dim 0 : vector<256x40xf32>, i32 -> vector<256x40xf32>
    %c14_i32 = arith.constant 14 : i32
    %98 = vector.broadcast %c14_i32 : i32 to vector<256x1xi32>
    %99 = arith.cmpi slt, %8, %98 : vector<256x1xi32>
    %cst_53 = arith.constant 0.000000e+00 : f32
    %100 = vector.shape_cast %99 : vector<256x1xi1> to vector<256x1xi1>
    %101 = vector.broadcast %100 : vector<256x1xi1> to vector<256x40xi1>
    %102 = vector.broadcast %cst_53 : f32 to vector<256x40xf32>
    %103 = arith.select %101, %97, %102 : vector<256x40xi1>, vector<256x40xf32>
    %c2_54 = arith.constant 2 : index
    %c0_55 = arith.constant 0 : index
    %c0_56 = arith.constant 0 : index
    %104 = vector.load %arg8[%c2_54, %c0_55, %c0_56] : memref<3x40x40xbf16, #tpu.memory_space<vmem>>, vector<1x40x40xbf16>
    %105 = vector.shape_cast %104 : vector<1x40x40xbf16> to vector<40x40xbf16>
    %106 = arith.truncf %103 : vector<256x40xf32> to vector<256x40xbf16>
    %cst_57 = arith.constant dense<0.000000e+00> : vector<256x40xf32>
    %107 = tpu.matmul %106, %105, %cst_57 {dimension_numbers = #tpu.dot_dimension_numbers<[1], [0], [0], [1], [0, 0, 1, 1], [], []>} : vector<256x40xbf16>, vector<40x40xbf16>, vector<256x40xf32> -> vector<256x40xf32>
    %108 = arith.addf %96, %107 : vector<256x40xf32>
    %c0_58 = arith.constant 0 : index
    %c0_59 = arith.constant 0 : index
    %109 = vector.load %arg9[%c0_58, %c0_59] : memref<1x40xf32, #tpu.memory_space<vmem>>, vector<1x40xf32>
    %110 = vector.broadcast %109 : vector<1x40xf32> to vector<256x40xf32>
    %111 = arith.addf %108, %110 : vector<256x40xf32>
    %c1_60 = arith.constant 1 : index
    %c0_61 = arith.constant 0 : index
    %c0_62 = arith.constant 0 : index
    %112 = vector.load %arg10[%c1_60, %c0_61, %c0_62] : memref<3x40x40xbf16, #tpu.memory_space<vmem>>, vector<1x40x40xbf16>
    %113 = vector.shape_cast %112 : vector<1x40x40xbf16> to vector<40x40xbf16>
    %114 = arith.truncf %111 : vector<256x40xf32> to vector<256x40xbf16>
    %cst_63 = arith.constant dense<0.000000e+00> : vector<256x40xf32>
    %115 = tpu.matmul %114, %113, %cst_63 {dimension_numbers = #tpu.dot_dimension_numbers<[1], [0], [0], [1], [0, 0, 1, 1], [], []>} : vector<256x40xbf16>, vector<40x40xbf16>, vector<256x40xf32> -> vector<256x40xf32>
    %c2_i32_64 = arith.constant 2 : i32
    %116 = tpu.dynamic_rotate %111 by %c2_i32_64 dim 0 : vector<256x40xf32>, i32 -> vector<256x40xf32>
    %c2_i32_65 = arith.constant 2 : i32
    %117 = vector.broadcast %c2_i32_65 : i32 to vector<256x1xi32>
    %118 = arith.cmpi sge, %4, %117 : vector<256x1xi32>
    %cst_66 = arith.constant 0.000000e+00 : f32
    %119 = vector.shape_cast %118 : vector<256x1xi1> to vector<256x1xi1>
    %120 = vector.broadcast %119 : vector<256x1xi1> to vector<256x40xi1>
    %121 = vector.broadcast %cst_66 : f32 to vector<256x40xf32>
    %122 = arith.select %120, %116, %121 : vector<256x40xi1>, vector<256x40xf32>
    %c0_67 = arith.constant 0 : index
    %c0_68 = arith.constant 0 : index
    %c0_69 = arith.constant 0 : index
    %123 = vector.load %arg10[%c0_67, %c0_68, %c0_69] : memref<3x40x40xbf16, #tpu.memory_space<vmem>>, vector<1x40x40xbf16>
    %124 = vector.shape_cast %123 : vector<1x40x40xbf16> to vector<40x40xbf16>
    %125 = arith.truncf %122 : vector<256x40xf32> to vector<256x40xbf16>
    %cst_70 = arith.constant dense<0.000000e+00> : vector<256x40xf32>
    %126 = tpu.matmul %125, %124, %cst_70 {dimension_numbers = #tpu.dot_dimension_numbers<[1], [0], [0], [1], [0, 0, 1, 1], [], []>} : vector<256x40xbf16>, vector<40x40xbf16>, vector<256x40xf32> -> vector<256x40xf32>
    %127 = arith.addf %115, %126 : vector<256x40xf32>
    %c254_i32 = arith.constant 254 : i32
    %128 = tpu.dynamic_rotate %111 by %c254_i32 dim 0 : vector<256x40xf32>, i32 -> vector<256x40xf32>
    %c14_i32_71 = arith.constant 14 : i32
    %129 = vector.broadcast %c14_i32_71 : i32 to vector<256x1xi32>
    %130 = arith.cmpi slt, %4, %129 : vector<256x1xi32>
    %cst_72 = arith.constant 0.000000e+00 : f32
    %131 = vector.shape_cast %130 : vector<256x1xi1> to vector<256x1xi1>
    %132 = vector.broadcast %131 : vector<256x1xi1> to vector<256x40xi1>
    %133 = vector.broadcast %cst_72 : f32 to vector<256x40xf32>
    %134 = arith.select %132, %128, %133 : vector<256x40xi1>, vector<256x40xf32>
    %c2_73 = arith.constant 2 : index
    %c0_74 = arith.constant 0 : index
    %c0_75 = arith.constant 0 : index
    %135 = vector.load %arg10[%c2_73, %c0_74, %c0_75] : memref<3x40x40xbf16, #tpu.memory_space<vmem>>, vector<1x40x40xbf16>
    %136 = vector.shape_cast %135 : vector<1x40x40xbf16> to vector<40x40xbf16>
    %137 = arith.truncf %134 : vector<256x40xf32> to vector<256x40xbf16>
    %cst_76 = arith.constant dense<0.000000e+00> : vector<256x40xf32>
    %138 = tpu.matmul %137, %136, %cst_76 {dimension_numbers = #tpu.dot_dimension_numbers<[1], [0], [0], [1], [0, 0, 1, 1], [], []>} : vector<256x40xbf16>, vector<40x40xbf16>, vector<256x40xf32> -> vector<256x40xf32>
    %139 = arith.addf %127, %138 : vector<256x40xf32>
    %c0_77 = arith.constant 0 : index
    %c0_78 = arith.constant 0 : index
    %140 = vector.load %arg11[%c0_77, %c0_78] : memref<1x40xf32, #tpu.memory_space<vmem>>, vector<1x40xf32>
    %141 = vector.broadcast %140 : vector<1x40xf32> to vector<256x40xf32>
    %142 = arith.addf %139, %141 : vector<256x40xf32>
    %cst_79 = arith.constant 0.000000e+00 : f32
    %143 = vector.broadcast %cst_79 : f32 to vector<256x40xf32>
    %144 = arith.maximumf %142, %143 : vector<256x40xf32>
    %145 = vector.shape_cast %144 : vector<256x40xf32> to vector<1x16x16x40xf32>
    %c0_80 = arith.constant 0 : index
    %c0_81 = arith.constant 0 : index
    %c0_82 = arith.constant 0 : index
    %c0_83 = arith.constant 0 : index
    %146 = vector.load %arg12[%c0_80, %c0_81, %c0_82, %c0_83] : memref<1x16x16x44xf32, #tpu.memory_space<vmem>>, vector<1x16x16x40xf32>
    tpu.vector_store %arg12[%c0_80, %c0_81, %c0_82, %c0_83], %145 {strides = array<i32>} : memref<1x16x16x44xf32, #tpu.memory_space<vmem>>, vector<1x16x16x40xf32>,
    %c0_84 = arith.constant 0 : index
    %c0_85 = arith.constant 0 : index
    %c0_86 = arith.constant 0 : index
    %c40 = arith.constant 40 : index
    %147 = vector.load %arg12[%c0_84, %c0_85, %c0_86, %c40] : memref<1x16x16x44xf32, #tpu.memory_space<vmem>>, vector<1x16x16x4xf32>
    tpu.vector_store %arg12[%c0_84, %c0_85, %c0_86, %c40], %0 {strides = array<i32>} : memref<1x16x16x44xf32, #tpu.memory_space<vmem>>, vector<1x16x16x4xf32>,
    return
  }
  func.func @transform_0(%arg0: i32) -> (i32, i32, i32, i32) {
    %c0_i32 = arith.constant 0 : i32
    %c0_i32_0 = arith.constant 0 : i32
    %c0_i32_1 = arith.constant 0 : i32
    %c0_i32_2 = arith.constant 0 : i32
    return %arg0, %c0_i32, %c0_i32_0, %c0_i32_1 : i32, i32, i32, i32
  }
  func.func @transform_1(%arg0: i32) -> (i32, i32) {
    %c0_i32 = arith.constant 0 : i32
    %c0_i32_0 = arith.constant 0 : i32
    %c0_i32_1 = arith.constant 0 : i32
    return %c0_i32, %c0_i32_0 : i32, i32
  }
  func.func @transform_2(%arg0: i32) -> (i32, i32) {
    %c0_i32 = arith.constant 0 : i32
    %c0_i32_0 = arith.constant 0 : i32
    %c0_i32_1 = arith.constant 0 : i32
    return %c0_i32, %c0_i32_0 : i32, i32
  }
  func.func @transform_3(%arg0: i32) -> (i32, i32, i32) {
    %c0_i32 = arith.constant 0 : i32
    %c0_i32_0 = arith.constant 0 : i32
    %c0_i32_1 = arith.constant 0 : i32
    %c0_i32_2 = arith.constant 0 : i32
    return %c0_i32, %c0_i32_0, %c0_i32_1 : i32, i32, i32
  }
  func.func @transform_4(%arg0: i32) -> (i32, i32) {
    %c0_i32 = arith.constant 0 : i32
    %c0_i32_0 = arith.constant 0 : i32
    %c0_i32_1 = arith.constant 0 : i32
    return %c0_i32, %c0_i32_0 : i32, i32
  }
  func.func @transform_5(%arg0: i32) -> (i32, i32, i32) {
    %c0_i32 = arith.constant 0 : i32
    %c0_i32_0 = arith.constant 0 : i32
    %c0_i32_1 = arith.constant 0 : i32
    %c0_i32_2 = arith.constant 0 : i32
    return %c0_i32, %c0_i32_0, %c0_i32_1 : i32, i32, i32
  }
  func.func @transform_6(%arg0: i32) -> (i32, i32) {
    %c0_i32 = arith.constant 0 : i32
    %c0_i32_0 = arith.constant 0 : i32
    %c0_i32_1 = arith.constant 0 : i32
    return %c0_i32, %c0_i32_0 : i32, i32
  }
  func.func @transform_7(%arg0: i32) -> (i32, i32, i32) {
    %c0_i32 = arith.constant 0 : i32
    %c0_i32_0 = arith.constant 0 : i32
    %c0_i32_1 = arith.constant 0 : i32
    %c0_i32_2 = arith.constant 0 : i32
    return %c0_i32, %c0_i32_0, %c0_i32_1 : i32, i32, i32
  }
  func.func @transform_8(%arg0: i32) -> (i32, i32) {
    %c0_i32 = arith.constant 0 : i32
    %c0_i32_0 = arith.constant 0 : i32
    %c0_i32_1 = arith.constant 0 : i32
    return %c0_i32, %c0_i32_0 : i32, i32
  }
  func.func @transform_9(%arg0: i32) -> (i32, i32, i32) {
    %c0_i32 = arith.constant 0 : i32
    %c0_i32_0 = arith.constant 0 : i32
    %c0_i32_1 = arith.constant 0 : i32
    %c0_i32_2 = arith.constant 0 : i32
    return %c0_i32, %c0_i32_0, %c0_i32_1 : i32, i32, i32
  }
  func.func @transform_10(%arg0: i32) -> (i32, i32) {
    %c0_i32 = arith.constant 0 : i32
    %c0_i32_0 = arith.constant 0 : i32
    %c0_i32_1 = arith.constant 0 : i32
    return %c0_i32, %c0_i32_0 : i32, i32
  }
  func.func @transform_11(%arg0: i32) -> (i32, i32, i32, i32) {
    %c0_i32 = arith.constant 0 : i32
    %c0_i32_0 = arith.constant 0 : i32
    %c0_i32_1 = arith.constant 0 : i32
    %c0_i32_2 = arith.constant 0 : i32
    return %arg0, %c0_i32, %c0_i32_0, %c0_i32_1 : i32, i32, i32, i32
  }
}

</mosaic_0001>

<llo_original>
// kernel: tpu_custom_call.1
$region0: #{tpu_custom_call.1}
  #allocation0 [shape = 'u32[]', space=smem, size = 0x4, offset = 0x4, fixed_abs, tag = 'smem constant byte address 0x4 - core index']
  #allocation1 [shape = 'u32[144,128]{1,0:T(1,128)}', space=vmem, size = 0x12000, scoped, tag = 'internal scratch']
  %s0 = inlined_call_operand.vmem [shape: f32[2,16,16,4], index: 0, kind: input, shape index: {}]
  %s1 = inlined_call_operand.vmem [shape: bf16[4,40], index: 1, kind: input, shape index: {}]
  %s2 = inlined_call_operand.vmem [shape: f32[1,40], index: 2, kind: input, shape index: {}]
  %s3 = inlined_call_operand.vmem [shape: bf16[3,40,40], index: 3, kind: input, shape index: {}]
  %s4 = inlined_call_operand.vmem [shape: f32[1,40], index: 4, kind: input, shape index: {}]
  %s5 = inlined_call_operand.vmem [shape: bf16[3,40,40], index: 5, kind: input, shape index: {}]
  %s6 = inlined_call_operand.vmem [shape: f32[1,40], index: 6, kind: input, shape index: {}]
  %s7 = inlined_call_operand.vmem [shape: bf16[3,40,40], index: 7, kind: input, shape index: {}]
  %s8 = inlined_call_operand.vmem [shape: f32[1,40], index: 8, kind: input, shape index: {}]
  %s9 = inlined_call_operand.vmem [shape: bf16[3,40,40], index: 9, kind: input, shape index: {}]
  %s10 = inlined_call_operand.vmem [shape: f32[1,40], index: 10, kind: input, shape index: {}]
  %s11 = inlined_call_operand.hbm [shape: f32[2,16,16,44], index: 11, kind: output, shape index: {}]
  %s12 = sld [smem:[#allocation0]]
  $region77: #{tpu_custom_call.1} parent=0
    _
  %s14 = ssub.s32 1, %s12
  %s15 = scalar_select 0, %s14, %s12
  $region1: #{tpu_custom_call.1} parent=0
    #allocation2 [shape = 'u8[262144]{0}', space=vmem, size = 0x40000, scoped, tag = 'output window, operand 0']
    #allocation3 [shape = 's32[2]{0}', space=sflag, size = 0x8, scoped, tag = 'scoped memory for tpu_custom_call.1']
    %16 = vsyncpa [#allocation3], 0
    %s17 = scalar_lea.sflag [#allocation3], 1
    %18 = vsyncpa %s17, 0
    loop: start=0, step=1, limit=4
    $region2: #{tpu_custom_call.1} parent=1 // loop_pre_header
      _
    $region3: #{tpu_custom_call.1} parent=1 // loop_header
      %s20 = sphi 0, %s24
      %p21 = scmp.ge.s32.totalorder %s20, 4
      %s30 = sphi 0, %s32
      %s33 = sphi 0, %s30
      %s34 = sphi 0, %s33
      %s50 = sphi 0, %s34
      %s54 = sphi 0, %s54
      %s56 = sphi 0, %s54
      %s57 = sphi 0, %s56
      %s71 = sphi 0, %s57
      %s75 = sphi 0, %s75
      %s77 = sphi 0, %s75
      %s78 = sphi 0, %s77
      %s92 = sphi 0, %s78
      %s96 = sphi 0, %s96
      %s98 = sphi 0, %s96
      %s99 = sphi 0, %s98
      %s113 = sphi 0, %s99
      %s117 = sphi 0, %s117
      %s119 = sphi 0, %s117
      %s120 = sphi 0, %s119
      %s134 = sphi 0, %s120
      %s138 = sphi 0, %s138
      %s140 = sphi 0, %s138
      %s141 = sphi 0, %s140
      %s155 = sphi 0, %s141
      %s159 = sphi 0, %s159
      %s161 = sphi 0, %s159
      %s162 = sphi 0, %s161
      %s176 = sphi 0, %s162
      %s180 = sphi 0, %s180
      %s182 = sphi 0, %s180
      %s183 = sphi 0, %s182
      %s197 = sphi 0, %s183
      %s201 = sphi 0, %s201
      %s203 = sphi 0, %s201
      %s204 = sphi 0, %s203
      %s218 = sphi 0, %s204
      %s222 = sphi 0, %s222
      %s224 = sphi 0, %s222
      %s225 = sphi 0, %s224
      %s239 = sphi 0, %s225
      %s243 = sphi 0, %s243
      %s245 = sphi 0, %s243
      %s246 = sphi 0, %s245
      %s260 = sphi 0, %s246
      %s266 = sphi 0, %s268
      %s269 = sphi 0, %s266
      %s270 = sphi 0, %s269
      %s286 = sphi 0, %s270
    $region4: #{tpu_custom_call.1} parent=1 // loop_header_branch
      %23 = sbr.rel (%p21) target = $region8
    $region5: #{tpu_custom_call.1} parent=1 // loop_body
      %s25 = ssub.s32 %s20, 1
      %s26 = ssub.s32 %s20, 2
      %s27 = sadd.s32 %s20, 1
      %s28 = ssub.s32 %s20, %s27
      %p29 = scmp.eq.s32.totalorder %s28, 0
      %s31 = sadd.s32 %s30, 1
      %s32 = scalar_select %p29, %s30, %s31
      %p35 = pneg %p29
      %p36 = scmp.eq.s32.totalorder %s20, 1
      %p37 = por %p35, %p36
      %p38 = scmp.ne.s32.totalorder %s30, %s33
      %p39 = scmp.eq.s32.totalorder %s20, 0
      %p40 = por %p38, %p39
      %p41 = scmp.ne.s32.totalorder %s30, %s33
      %p42 = scmp.eq.s32.totalorder %s25, 1
      %p43 = por %p41, %p42
      %p44 = scmp.ne.s32.totalorder %s33, %s34
      %p45 = scmp.eq.s32.totalorder %s25, 0
      %p46 = por %p44, %p45
      %p47 = scmp.ne.s32.totalorder %s33, %s34
      %p48 = scmp.eq.s32.totalorder %s26, 1
      %p49 = por %p47, %p48
      %p51 = scmp.ne.s32.totalorder %s34, %s50
      %p52 = scmp.eq.s32.totalorder %s26, 0
      %p53 = por %p51, %p52
      %s55 = sadd.s32 %s54, 1
      %p58 = scmp.eq.s32.totalorder %s20, 1
      %p59 = scmp.ne.s32.totalorder %s54, %s56
      %p60 = scmp.eq.s32.totalorder %s20, 0
      %p61 = por %p59, %p60
      %p62 = scmp.ne.s32.totalorder %s54, %s56
      %p63 = scmp.eq.s32.totalorder %s25, 1
      %p64 = por %p62, %p63
      %p65 = scmp.ne.s32.totalorder %s56, %s57
      %p66 = scmp.eq.s32.totalorder %s25, 0
      %p67 = por %p65, %p66
      %p68 = scmp.ne.s32.totalorder %s56, %s57
      %p69 = scmp.eq.s32.totalorder %s26, 1
      %p70 = por %p68, %p69
      %p72 = scmp.ne.s32.totalorder %s57, %s71
      %p73 = scmp.eq.s32.totalorder %s26, 0
      %p74 = por %p72, %p73
      %s76 = sadd.s32 %s75, 1
      %p79 = scmp.eq.s32.totalorder %s20, 1
      %p80 = scmp.ne.s32.totalorder %s75, %s77
      %p81 = scmp.eq.s32.totalorder %s20, 0
      %p82 = por %p80, %p81
      %p83 = scmp.ne.s32.totalorder %s75, %s77
      %p84 = scmp.eq.s32.totalorder %s25, 1
      %p85 = por %p83, %p84
      %p86 = scmp.ne.s32.totalorder %s77, %s78
      %p87 = scmp.eq.s32.totalorder %s25, 0
      %p88 = por %p86, %p87
      %p89 = scmp.ne.s32.totalorder %s77, %s78
      %p90 = scmp.eq.s32.totalorder %s26, 1
      %p91 = por %p89, %p90
      %p93 = scmp.ne.s32.totalorder %s78, %s92
      %p94 = scmp.eq.s32.totalorder %s26, 0
      %p95 = por %p93, %p94
      %s97 = sadd.s32 %s96, 1
      %p100 = scmp.eq.s32.totalorder %s20, 1
      %p101 = scmp.ne.s32.totalorder %s96, %s98
      %p102 = scmp.eq.s32.totalorder %s20, 0
      %p103 = por %p101, %p102
      %p104 = scmp.ne.s32.totalorder %s96, %s98
      %p105 = scmp.eq.s32.totalorder %s25, 1
      %p106 = por %p104, %p105
      %p107 = scmp.ne.s32.totalorder %s98, %s99
      %p108 = scmp.eq.s32.totalorder %s25, 0
      %p109 = por %p107, %p108
      %p110 = scmp.ne.s32.totalorder %s98, %s99
      %p111 = scmp.eq.s32.totalorder %s26, 1
      %p112 = por %p110, %p111
      %p114 = scmp.ne.s32.totalorder %s99, %s113
      %p115 = scmp.eq.s32.totalorder %s26, 0
      %p116 = por %p114, %p115
      %s118 = sadd.s32 %s117, 1
      %p121 = scmp.eq.s32.totalorder %s20, 1
      %p122 = scmp.ne.s32.totalorder %s117, %s119
      %p123 = scmp.eq.s32.totalorder %s20, 0
      %p124 = por %p122, %p123
      %p125 = scmp.ne.s32.totalorder %s117, %s119
      %p126 = scmp.eq.s32.totalorder %s25, 1
      %p127 = por %p125, %p126
      %p128 = scmp.ne.s32.totalorder %s119, %s120
      %p129 = scmp.eq.s32.totalorder %s25, 0
      %p130 = por %p128, %p129
      %p131 = scmp.ne.s32.totalorder %s119, %s120
      %p132 = scmp.eq.s32.totalorder %s26, 1
      %p133 = por %p131, %p132
      %p135 = scmp.ne.s32.totalorder %s120, %s134
      %p136 = scmp.eq.s32.totalorder %s26, 0
      %p137 = por %p135, %p136
      %s139 = sadd.s32 %s138, 1
      %p142 = scmp.eq.s32.totalorder %s20, 1
      %p143 = scmp.ne.s32.totalorder %s138, %s140
      %p144 = scmp.eq.s32.totalorder %s20, 0
      %p145 = por %p143, %p144
      %p146 = scmp.ne.s32.totalorder %s138, %s140
      %p147 = scmp.eq.s32.totalorder %s25, 1
      %p148 = por %p146, %p147
      %p149 = scmp.ne.s32.totalorder %s140, %s141
      %p150 = scmp.eq.s32.totalorder %s25, 0
      %p151 = por %p149, %p150
      %p152 = scmp.ne.s32.totalorder %s140, %s141
      %p153 = scmp.eq.s32.totalorder %s26, 1
      %p154 = por %p152, %p153
      %p156 = scmp.ne.s32.totalorder %s141, %s155
      %p157 = scmp.eq.s32.totalorder %s26, 0
      %p158 = por %p156, %p157
      %s160 = sadd.s32 %s159, 1
      %p163 = scmp.eq.s32.totalorder %s20, 1
      %p164 = scmp.ne.s32.totalorder %s159, %s161
      %p165 = scmp.eq.s32.totalorder %s20, 0
      %p166 = por %p164, %p165
      %p167 = scmp.ne.s32.totalorder %s159, %s161
      %p168 = scmp.eq.s32.totalorder %s25, 1
      %p169 = por %p167, %p168
      %p170 = scmp.ne.s32.totalorder %s161, %s162
      %p171 = scmp.eq.s32.totalorder %s25, 0
      %p172 = por %p170, %p171
      %p173 = scmp.ne.s32.totalorder %s161, %s162
      %p174 = scmp.eq.s32.totalorder %s26, 1
      %p175 = por %p173, %p174
      %p177 = scmp.ne.s32.totalorder %s162, %s176
      %p178 = scmp.eq.s32.totalorder %s26, 0
      %p179 = por %p177, %p178
      %s181 = sadd.s32 %s180, 1
      %p184 = scmp.eq.s32.totalorder %s20, 1
      %p185 = scmp.ne.s32.totalorder %s180, %s182
      %p186 = scmp.eq.s32.totalorder %s20, 0
      %p187 = por %p185, %p186
      %p188 = scmp.ne.s32.totalorder %s180, %s182
      %p189 = scmp.eq.s32.totalorder %s25, 1
      %p190 = por %p188, %p189
      %p191 = scmp.ne.s32.totalorder %s182, %s183
      %p192 = scmp.eq.s32.totalorder %s25, 0
      %p193 = por %p191, %p192
      %p194 = scmp.ne.s32.totalorder %s182, %s183
      %p195 = scmp.eq.s32.totalorder %s26, 1
      %p196 = por %p194, %p195
      %p198 = scmp.ne.s32.totalorder %s183, %s197
      %p199 = scmp.eq.s32.totalorder %s26, 0
      %p200 = por %p198, %p199
      %s202 = sadd.s32 %s201, 1
      %p205 = scmp.eq.s32.totalorder %s20, 1
      %p206 = scmp.ne.s32.totalorder %s201, %s203
      %p207 = scmp.eq.s32.totalorder %s20, 0
      %p208 = por %p206, %p207
      %p209 = scmp.ne.s32.totalorder %s201, %s203
      %p210 = scmp.eq.s32.totalorder %s25, 1
      %p211 = por %p209, %p210
      %p212 = scmp.ne.s32.totalorder %s203, %s204
      %p213 = scmp.eq.s32.totalorder %s25, 0
      %p214 = por %p212, %p213
      %p215 = scmp.ne.s32.totalorder %s203, %s204
      %p216 = scmp.eq.s32.totalorder %s26, 1
      %p217 = por %p215, %p216
      %p219 = scmp.ne.s32.totalorder %s204, %s218
      %p220 = scmp.eq.s32.totalorder %s26, 0
      %p221 = por %p219, %p220
      %s223 = sadd.s32 %s222, 1
      %p226 = scmp.eq.s32.totalorder %s20, 1
      %p227 = scmp.ne.s32.totalorder %s222, %s224
      %p228 = scmp.eq.s32.totalorder %s20, 0
      %p229 = por %p227, %p228
      %p230 = scmp.ne.s32.totalorder %s222, %s224
      %p231 = scmp.eq.s32.totalorder %s25, 1
      %p232 = por %p230, %p231
      %p233 = scmp.ne.s32.totalorder %s224, %s225
      %p234 = scmp.eq.s32.totalorder %s25, 0
      %p235 = por %p233, %p234
      %p236 = scmp.ne.s32.totalorder %s224, %s225
      %p237 = scmp.eq.s32.totalorder %s26, 1
      %p238 = por %p236, %p237
      %p240 = scmp.ne.s32.totalorder %s225, %s239
      %p241 = scmp.eq.s32.totalorder %s26, 0
      %p242 = por %p240, %p241
      %s244 = sadd.s32 %s243, 1
      %p247 = scmp.eq.s32.totalorder %s20, 1
      %p248 = scmp.ne.s32.totalorder %s243, %s245
      %p249 = scmp.eq.s32.totalorder %s20, 0
      %p250 = por %p248, %p249
      %p251 = scmp.ne.s32.totalorder %s243, %s245
      %p252 = scmp.eq.s32.totalorder %s25, 1
      %p253 = por %p251, %p252
      %p254 = scmp.ne.s32.totalorder %s245, %s246
      %p255 = scmp.eq.s32.totalorder %s25, 0
      %p256 = por %p254, %p255
      %p257 = scmp.ne.s32.totalorder %s245, %s246
      %p258 = scmp.eq.s32.totalorder %s26, 1
      %p259 = por %p257, %p258
      %p261 = scmp.ne.s32.totalorder %s246, %s260
      %p262 = scmp.eq.s32.totalorder %s26, 0
      %p263 = por %p261, %p262
      %s264 = ssub.s32 %s20, %s27
      %p265 = scmp.eq.s32.totalorder %s264, 0
      %s267 = sadd.s32 %s266, 1
      %s268 = scalar_select %p265, %s266, %s267
      %p271 = pneg %p265
      %p272 = scmp.eq.s32.totalorder %s20, 1
      %p273 = por %p271, %p272
      %p274 = scmp.ne.s32.totalorder %s266, %s269
      %p275 = scmp.eq.s32.totalorder %s20, 0
      %p276 = por %p274, %p275
      %p277 = scmp.ne.s32.totalorder %s266, %s269
      %p278 = scmp.eq.s32.totalorder %s25, 1
      %p279 = por %p277, %p278
      %p280 = scmp.ne.s32.totalorder %s269, %s270
      %p281 = scmp.eq.s32.totalorder %s25, 0
      %p282 = por %p280, %p281
      %p283 = scmp.ne.s32.totalorder %s269, %s270
      %p284 = scmp.eq.s32.totalorder %s26, 1
      %p285 = por %p283, %p284
      %p287 = scmp.ne.s32.totalorder %s270, %s286
      %p288 = scmp.eq.s32.totalorder %s26, 0
      %p289 = por %p287, %p288
      %p290 = scmp.le.s32.totalorder 1, %s20
      %p291 = scmp.lt.s32.totalorder %s20, 3
      %p292 = pnand %p290, %p291
      %p293 = pneg %p292
      // Predicated region
      $region9: #{tpu_custom_call.1} parent=5 // pred_check
        _
      $region10: #{tpu_custom_call.1} parent=5 // pred_check_branch
        %295 = sbr.rel (%p292) target = $region12
      $region11: #{tpu_custom_call.1} parent=5 // pred_region
        %s296 = ssub.s32 %s20, 1
        // Predicated region
        $region13: #{tpu_custom_call.1} parent=11 // pred_check
          %p297 = pneg %p67
        $region14: #{tpu_custom_call.1} parent=11 // pred_check_branch
          %299 = sbr.rel (%p297) target = $region16
        $region15: #{tpu_custom_call.1} parent=11 // pred_region
          _
        $region16: #{tpu_custom_call.1} parent=11 // pred_fallthru
          _
        // Predicated region
        $region17: #{tpu_custom_call.1} parent=11 // pred_check
          %p300 = pneg %p88
        $region18: #{tpu_custom_call.1} parent=11 // pred_check_branch
          %302 = sbr.rel (%p300) target = $region20
        $region19: #{tpu_custom_call.1} parent=11 // pred_region
          _
        $region20: #{tpu_custom_call.1} parent=11 // pred_fallthru
          _
        // Predicated region
        $region21: #{tpu_custom_call.1} parent=11 // pred_check
          %p303 = pneg %p109
        $region22: #{tpu_custom_call.1} parent=11 // pred_check_branch
          %305 = sbr.rel (%p303) target = $region24
        $region23: #{tpu_custom_call.1} parent=11 // pred_region
          _
        $region24: #{tpu_custom_call.1} parent=11 // pred_fallthru
          _
        // Predicated region
        $region25: #{tpu_custom_call.1} parent=11 // pred_check
          %p306 = pneg %p130
        $region26: #{tpu_custom_call.1} parent=11 // pred_check_branch
          %308 = sbr.rel (%p306) target = $region28
        $region27: #{tpu_custom_call.1} parent=11 // pred_region
          _
        $region28: #{tpu_custom_call.1} parent=11 // pred_fallthru
          _
        // Predicated region
        $region29: #{tpu_custom_call.1} parent=11 // pred_check
          %p309 = pneg %p151
        $region30: #{tpu_custom_call.1} parent=11 // pred_check_branch
          %311 = sbr.rel (%p309) target = $region32
        $region31: #{tpu_custom_call.1} parent=11 // pred_region
          _
        $region32: #{tpu_custom_call.1} parent=11 // pred_fallthru
          _
        // Predicated region
        $region33: #{tpu_custom_call.1} parent=11 // pred_check
          %p312 = pneg %p172
        $region34: #{tpu_custom_call.1} parent=11 // pred_check_branch
          %314 = sbr.rel (%p312) target = $region36
        $region35: #{tpu_custom_call.1} parent=11 // pred_region
          _
        $region36: #{tpu_custom_call.1} parent=11 // pred_fallthru
          _
        // Predicated region
        $region37: #{tpu_custom_call.1} parent=11 // pred_check
          %p315 = pneg %p193
        $region38: #{tpu_custom_call.1} parent=11 // pred_check_branch
          %317 = sbr.rel (%p315) target = $region40
        $region39: #{tpu_custom_call.1} parent=11 // pred_region
          _
        $region40: #{tpu_custom_call.1} parent=11 // pred_fallthru
          _
        // Predicated region
        $region41: #{tpu_custom_call.1} parent=11 // pred_check
          %p318 = pneg %p214
        $region42: #{tpu_custom_call.1} parent=11 // pred_check_branch
          %320 = sbr.rel (%p318) target = $region44
        $region43: #{tpu_custom_call.1} parent=11 // pred_region
          _
        $region44: #{tpu_custom_call.1} parent=11 // pred_fallthru
          _
        // Predicated region
        $region45: #{tpu_custom_call.1} parent=11 // pred_check
          %p321 = pneg %p235
        $region46: #{tpu_custom_call.1} parent=11 // pred_check_branch
          %323 = sbr.rel (%p321) target = $region48
        $region47: #{tpu_custom_call.1} parent=11 // pred_region
          _
        $region48: #{tpu_custom_call.1} parent=11 // pred_fallthru
          _
        // Predicated region
        $region49: #{tpu_custom_call.1} parent=11 // pred_check
          %p324 = pneg %p256
        $region50: #{tpu_custom_call.1} parent=11 // pred_check_branch
          %326 = sbr.rel (%p324) target = $region52
        $region51: #{tpu_custom_call.1} parent=11 // pred_region
          _
        $region52: #{tpu_custom_call.1} parent=11 // pred_fallthru
          _
      $region12: #{tpu_custom_call.1} parent=5 // pred_fallthru
        _
      %p327 = scmp.lt.s32.totalorder %s20, 2
      // Predicated region
      $region53: #{tpu_custom_call.1} parent=5 // pred_check
        %p328 = pneg %p327
      $region54: #{tpu_custom_call.1} parent=5 // pred_check_branch
        %330 = sbr.rel (%p328) target = $region56
      $region55: #{tpu_custom_call.1} parent=5 // pred_region
        // Predicated region
        $region57: #{tpu_custom_call.1} parent=55 // pred_check
          %p331 = pneg %p40
        $region58: #{tpu_custom_call.1} parent=55 // pred_check_branch
          %333 = sbr.rel (%p331) target = $region60
        $region59: #{tpu_custom_call.1} parent=55 // pred_region
          %p334 = scmp.lt.s32.totalorder %s20, 1
          %s335 = scalar_select %p334, %s20, 1
          %s336 = smul.addr %s335, 32
          %s337 = smul.addr %s336, 8
          %s338 = scalar_lea.vmem %s0, %s337
        $region60: #{tpu_custom_call.1} parent=55 // pred_fallthru
          _
      $region56: #{tpu_custom_call.1} parent=5 // pred_fallthru
        _
      %p339 = scmp.le.s32.totalorder 1, %s20
      %p340 = scmp.lt.s32.totalorder %s20, 3
      %p341 = pnand %p339, %p340
      %p342 = pneg %p341
      // Predicated region
      $region61: #{tpu_custom_call.1} parent=5 // pred_check
        _
      $region62: #{tpu_custom_call.1} parent=5 // pred_check_branch
        %344 = sbr.rel (%p341) target = $region64
      $region63: #{tpu_custom_call.1} parent=5 // pred_region
        %s345 = ssub.s32 %s20, 1
        %p346 = scmp.lt.s32.totalorder %s25, 1
        %s347 = scalar_select %p346, %s25, 1
        %s348 = smul.addr %s347, 32
        %s349 = smul.addr %s348, 8
        %s350 = scalar_lea.vmem %s0, %s349
        %p351 = pneg %p46
        %p352 = pneg %p43
        %p353 = pneg %p67
        %p354 = pneg %p64
        %p355 = pneg %p88
        %p356 = pneg %p85
        %p357 = pneg %p109
        %p358 = pneg %p106
        %p359 = pneg %p130
        %p360 = pneg %p127
        %p361 = pneg %p151
        %p362 = pneg %p148
        %p363 = pneg %p172
        %p364 = pneg %p169
        %p365 = pneg %p193
        %p366 = pneg %p190
        %p367 = pneg %p214
        %p368 = pneg %p211
        %p369 = pneg %p235
        %p370 = pneg %p232
        %p371 = pneg %p256
        %p372 = pneg %p253
        %p373 = pneg %p282
        %p374 = pneg %p279
        %s375 = sand.u32 %s269, 1
        %s376 = scalar_lea.sflag [#allocation3], %s375
        %s377 = sand.u32 %s269, 1
        %s378 = smul.addr %s377, 256
        %s379 = scalar_lea.vmem [#allocation2], %s378
        %p380 = scmp.lt.s32.totalorder %s25, 1
        %s381 = scalar_select %p380, %s25, 1
        %s382 = smul.addr %s381, 32
        %s383 = smul.addr %s382, 8
        %s384 = scalar_lea.vmem %s0, %s383
        %v386 = vld [vmem:[%s384] sm:$0xff]
        %v387 = vld [vmem:[%s384 + $0x8] sm:$0xff]
        %v388 = vld [vmem:[%s384 + $0x10] sm:$0xff]
        %v389 = vld [vmem:[%s384 + $0x18] sm:$0xff]
        %v390 = vld [vmem:[%s384 + $0x20] sm:$0xff]
        %v391 = vld [vmem:[%s384 + $0x28] sm:$0xff]
        %v392 = vld [vmem:[%s384 + $0x30] sm:$0xff]
        %v393 = vld [vmem:[%s384 + $0x38] sm:$0xff]
        %v394 = vld [vmem:[%s384 + $0x40] sm:$0xff]
        %v395 = vld [vmem:[%s384 + $0x48] sm:$0xff]
        %v396 = vld [vmem:[%s384 + $0x50] sm:$0xff]
        %v397 = vld [vmem:[%s384 + $0x58] sm:$0xff]
        %v398 = vld [vmem:[%s384 + $0x60] sm:$0xff]
        %v399 = vld [vmem:[%s384 + $0x68] sm:$0xff]
        %v400 = vld [vmem:[%s384 + $0x70] sm:$0xff]
        %v401 = vld [vmem:[%s384 + $0x78] sm:$0xff]
        %v402 = vld [vmem:[%s384 + $0x80] sm:$0xff]
        %v403 = vld [vmem:[%s384 + $0x88] sm:$0xff]
        %v404 = vld [vmem:[%s384 + $0x90] sm:$0xff]
        %v405 = vld [vmem:[%s384 + $0x98] sm:$0xff]
        %v406 = vld [vmem:[%s384 + $0xa0] sm:$0xff]
        %v407 = vld [vmem:[%s384 + $0xa8] sm:$0xff]
        %v408 = vld [vmem:[%s384 + $0xb0] sm:$0xff]
        %v409 = vld [vmem:[%s384 + $0xb8] sm:$0xff]
        %v410 = vld [vmem:[%s384 + $0xc0] sm:$0xff]
        %v411 = vld [vmem:[%s384 + $0xc8] sm:$0xff]
        %v412 = vld [vmem:[%s384 + $0xd0] sm:$0xff]
        %v413 = vld [vmem:[%s384 + $0xd8] sm:$0xff]
        %v414 = vld [vmem:[%s384 + $0xe0] sm:$0xff]
        %v415 = vld [vmem:[%s384 + $0xe8] sm:$0xff]
        %v416 = vld [vmem:[%s384 + $0xf0] sm:$0xff]
        %v417 = vld [vmem:[%s384 + $0xf8] sm:$0xff]
        %v418 = vlaneseq
        %v419 = vshrl.u32 %v418, 7
        %v420 = vadd.s32 %v419, 8
        %v421 = vadd.s32 %v419, 16
        %v422 = vadd.s32 %v419, 24
        %v423 = vadd.s32 %v419, 32
        %v424 = vadd.s32 %v419, 40
        %v425 = vadd.s32 %v419, 48
        %v426 = vadd.s32 %v419, 56
        %v427 = vadd.s32 %v419, 64
        %v428 = vadd.s32 %v419, 72
        %v429 = vadd.s32 %v419, 80
        %v430 = vadd.s32 %v419, 88
        %v431 = vadd.s32 %v419, 96
        %v432 = vadd.s32 %v419, 104
        %v433 = vadd.s32 %v419, 112
        %v434 = vadd.s32 %v419, 120
        %v435 = vadd.s32 %v419, 128
        %v436 = vadd.s32 %v419, 136
        %v437 = vadd.s32 %v419, 144
        %v438 = vadd.s32 %v419, 152
        %v439 = vadd.s32 %v419, 160
        %v440 = vadd.s32 %v419, 168
        %v441 = vadd.s32 %v419, 176
        %v442 = vadd.s32 %v419, 184
        %v443 = vadd.s32 %v419, 192
        %v444 = vadd.s32 %v419, 200
        %v445 = vadd.s32 %v419, 208
        %v446 = vadd.s32 %v419, 216
        %v447 = vadd.s32 %v419, 224
        %v448 = vadd.s32 %v419, 232
        %v449 = vadd.s32 %v419, 240
        %v450 = vadd.s32 %v419, 248
        %v451 = vand.u32 %v419, 15
        %v452 = vand.u32 %v420, 15
        %v453 = vand.u32 %v421, 15
        %v454 = vand.u32 %v422, 15
        %v455 = vand.u32 %v423, 15
        %v456 = vand.u32 %v424, 15
        %v457 = vand.u32 %v425, 15
        %v458 = vand.u32 %v426, 15
        %v459 = vand.u32 %v427, 15
        %v460 = vand.u32 %v428, 15
        %v461 = vand.u32 %v429, 15
        %v462 = vand.u32 %v430, 15
        %v463 = vand.u32 %v431, 15
        %v464 = vand.u32 %v432, 15
        %v465 = vand.u32 %v433, 15
        %v466 = vand.u32 %v434, 15
        %v467 = vand.u32 %v435, 15
        %v468 = vand.u32 %v436, 15
        %v469 = vand.u32 %v437, 15
        %v470 = vand.u32 %v438, 15
        %v471 = vand.u32 %v439, 15
        %v472 = vand.u32 %v440, 15
        %v473 = vand.u32 %v441, 15
        %v474 = vand.u32 %v442, 15
        %v475 = vand.u32 %v443, 15
        %v476 = vand.u32 %v444, 15
        %v477 = vand.u32 %v445, 15
        %v478 = vand.u32 %v446, 15
        %v479 = vand.u32 %v447, 15
        %v480 = vand.u32 %v448, 15
        %v481 = vand.u32 %v449, 15
        %v482 = vand.u32 %v450, 15
        %v483 = vshra.s32 %v419, 4
        %v484 = vshra.s32 %v420, 4
        %v485 = vshra.s32 %v421, 4
        %v486 = vshra.s32 %v422, 4
        %v487 = vshra.s32 %v423, 4
        %v488 = vshra.s32 %v424, 4
        %v489 = vshra.s32 %v425, 4
        %v490 = vshra.s32 %v426, 4
        %v491 = vshra.s32 %v427, 4
        %v492 = vshra.s32 %v428, 4
        %v493 = vshra.s32 %v429, 4
        %v494 = vshra.s32 %v430, 4
        %v495 = vshra.s32 %v431, 4
        %v496 = vshra.s32 %v432, 4
        %v497 = vshra.s32 %v433, 4
        %v498 = vshra.s32 %v434, 4
        %v499 = vshra.s32 %v435, 4
        %v500 = vshra.s32 %v436, 4
        %v501 = vshra.s32 %v437, 4
        %v502 = vshra.s32 %v438, 4
        %v503 = vshra.s32 %v439, 4
        %v504 = vshra.s32 %v440, 4
        %v505 = vshra.s32 %v441, 4
        %v506 = vshra.s32 %v442, 4
        %v507 = vshra.s32 %v443, 4
        %v508 = vshra.s32 %v444, 4
        %v509 = vshra.s32 %v445, 4
        %v510 = vshra.s32 %v446, 4
        %v511 = vshra.s32 %v447, 4
        %v512 = vshra.s32 %v448, 4
        %v513 = vshra.s32 %v449, 4
        %v514 = vshra.s32 %v450, 4
        %v515 = vand.u32 %v483, 15
        %v516 = vand.u32 %v484, 15
        %v517 = vand.u32 %v485, 15
        %v518 = vand.u32 %v486, 15
        %v519 = vand.u32 %v487, 15
        %v520 = vand.u32 %v488, 15
        %v521 = vand.u32 %v489, 15
        %v522 = vand.u32 %v490, 15
        %v523 = vand.u32 %v491, 15
        %v524 = vand.u32 %v492, 15
        %v525 = vand.u32 %v493, 15
        %v526 = vand.u32 %v494, 15
        %v527 = vand.u32 %v495, 15
        %v528 = vand.u32 %v496, 15
        %v529 = vand.u32 %v497, 15
        %v530 = vand.u32 %v498, 15
        %v531 = vand.u32 %v499, 15
        %v532 = vand.u32 %v500, 15
        %v533 = vand.u32 %v501, 15
        %v534 = vand.u32 %v502, 15
        %v535 = vand.u32 %v503, 15
        %v536 = vand.u32 %v504, 15
        %v537 = vand.u32 %v505, 15
        %v538 = vand.u32 %v506, 15
        %v539 = vand.u32 %v507, 15
        %v540 = vand.u32 %v508, 15
        %v541 = vand.u32 %v509, 15
        %v542 = vand.u32 %v510, 15
        %v543 = vand.u32 %v511, 15
        %v544 = vand.u32 %v512, 15
        %v545 = vand.u32 %v513, 15
        %v546 = vand.u32 %v514, 15
        %v547 = vld [vmem:[%s1] sm:$0x3]
        %v548 = vpack.c.bf16 %v387, %v386
        %v549 = vpack.c.bf16 %v389, %v388
        %v550 = vpack.c.bf16 %v391, %v390
        %v551 = vpack.c.bf16 %v393, %v392
        %v552 = vpack.c.bf16 %v395, %v394
        %v553 = vpack.c.bf16 %v397, %v396
        %v554 = vpack.c.bf16 %v399, %v398
        %v555 = vpack.c.bf16 %v401, %v400
        %v556 = vpack.c.bf16 %v403, %v402
        %v557 = vpack.c.bf16 %v405, %v404
        %v558 = vpack.c.bf16 %v407, %v406
        %v559 = vpack.c.bf16 %v409, %v408
        %v560 = vpack.c.bf16 %v411, %v410
        %v561 = vpack.c.bf16 %v413, %v412
        %v562 = vpack.c.bf16 %v415, %v414
        %v563 = vpack.c.bf16 %v417, %v416
        %v564 = vld [vmem:[%s2] sm:$0x1]
        %v566 = vlaneseq
        %v567 = vshrl.u32 %v566, 7
        %v568 = vsub.s32 0, %v567
        %v569 = vrot.slane %v564, %v568
        %vm571 = vcmask 31744
        %v573 = vsel %vm571, %v548, 0
        %v576 = vsel %vm571, %v549, 0
        %v579 = vsel %vm571, %v550, 0
        %v582 = vsel %vm571, %v551, 0
        %v585 = vsel %vm571, %v552, 0
        %v588 = vsel %vm571, %v553, 0
        %v591 = vsel %vm571, %v554, 0
        %v594 = vsel %vm571, %v555, 0
        %v597 = vsel %vm571, %v556, 0
        %v600 = vsel %vm571, %v557, 0
        %v603 = vsel %vm571, %v558, 0
        %v606 = vsel %vm571, %v559, 0
        %v609 = vsel %vm571, %v560, 0
        %v612 = vsel %vm571, %v561, 0
        %v615 = vsel %vm571, %v562, 0
        %v618 = vsel %vm571, %v563, 0
        %vm620 = vcmask 1041408
        %v622 = vsel %vm620, %v547, 0
        %624 = vmatprep.subr.bf16.mxu0 0
        %625 = vmatpush1.bf16.msra.mxu0 0
        %626 = vmatprep.subr.bf16.mxu0 0
        %627 = vmatpush1.bf16.msra.mxu0 0
        %628 = vmatprep.subr.bf16.mxu0 0
        %629 = vmatpush1.bf16.msra.mxu0 0
        %630 = vmatprep.subr.bf16.mxu0 0
        %631 = vmatpush1.bf16.msra.mxu0 0
        %632 = vmatprep.subr.bf16.mxu0 0
        %633 = vmatpush1.bf16.msra.mxu0 0
        %634 = vmatprep.subr.bf16.mxu0 0
        %635 = vmatpush1.bf16.msra.mxu0 0
        %636 = vmatprep.subr.bf16.mxu0 0
        %637 = vmatpush1.bf16.msra.mxu0 0
        %638 = vmatprep.subr.bf16.mxu0 0
        %639 = vmatpush1.bf16.msra.mxu0 %v622
        %640 = vmatprep.subr.bf16.mxu0 0
        %641 = vmatpush2.bf16.msra.mxu0 0
        %642 = vmatprep.subr.bf16.mxu0 0
        %643 = vmatpush2.bf16.msra.mxu0 0
        %644 = vmatprep.subr.bf16.mxu0 0
        %645 = vmatpush2.bf16.msra.mxu0 0
        %646 = vmatprep.subr.bf16.mxu0 0
        %647 = vmatpush2.bf16.msra.mxu0 0
        %648 = vmatprep.subr.bf16.mxu0 0
        %649 = vmatpush2.bf16.msra.mxu0 0
        %650 = vmatprep.subr.bf16.mxu0 0
        %651 = vmatpush2.bf16.msra.mxu0 0
        %652 = vmatprep.subr.bf16.mxu0 0
        %653 = vmatpush2.bf16.msra.mxu0 0
        %654 = vmatprep.subr.bf16.mxu0 0
        %655 = vmatpush2.bf16.msra.mxu0 0
        %656 = vmatprep.mubr.bf16.mxu0 0
        %657 = vmatmul.mubr.bf16.gmra.mxu0 %v573
        %v658 = vpop.f32.mrf.mxu0
        %v659 = vadd.f32 %v569, %v658
        %v660 = vpop.f32.mrf.mxu0
        %v661 = vpop.f32.mrf.mxu0
        %v662 = vadd.f32 %v569, %v661
        %v663 = vpop.f32.mrf.mxu0
        %664 = vmatprep.mubr.bf16.mxu0 0
        %665 = vmatmul.mubr.bf16.gmra.mxu0 %v576
        %v666 = vpop.f32.mrf.mxu0
        %v667 = vadd.f32 %v569, %v666
        %v668 = vpop.f32.mrf.mxu0
        %v669 = vpop.f32.mrf.mxu0
        %v670 = vadd.f32 %v569, %v669
        %v671 = vpop.f32.mrf.mxu0
        %672 = vmatprep.mubr.bf16.mxu0 0
        %673 = vmatmul.mubr.bf16.gmra.mxu0 %v579
        %v674 = vpop.f32.mrf.mxu0
        %v675 = vadd.f32 %v569, %v674
        %v676 = vpop.f32.mrf.mxu0
        %v677 = vpop.f32.mrf.mxu0
        %v678 = vadd.f32 %v569, %v677
        %v679 = vpop.f32.mrf.mxu0
        %680 = vmatprep.mubr.bf16.mxu0 0
        %681 = vmatmul.mubr.bf16.gmra.mxu0 %v582
        %v682 = vpop.f32.mrf.mxu0
        %v683 = vadd.f32 %v569, %v682
        %v684 = vpop.f32.mrf.mxu0
        %v685 = vpop.f32.mrf.mxu0
        %v686 = vadd.f32 %v569, %v685
        %v687 = vpop.f32.mrf.mxu0
        %688 = vmatprep.mubr.bf16.mxu0 0
        %689 = vmatmul.mubr.bf16.gmra.mxu0 %v585
        %v690 = vpop.f32.mrf.mxu0
        %v691 = vadd.f32 %v569, %v690
        %v692 = vpop.f32.mrf.mxu0
        %v693 = vpop.f32.mrf.mxu0
        %v694 = vadd.f32 %v569, %v693
        %v695 = vpop.f32.mrf.mxu0
        %696 = vmatprep.mubr.bf16.mxu0 0
        %697 = vmatmul.mubr.bf16.gmra.mxu0 %v588
        %v698 = vpop.f32.mrf.mxu0
        %v699 = vadd.f32 %v569, %v698
        %v700 = vpop.f32.mrf.mxu0
        %v701 = vpop.f32.mrf.mxu0
        %v702 = vadd.f32 %v569, %v701
        %v703 = vpop.f32.mrf.mxu0
        %704 = vmatprep.mubr.bf16.mxu0 0
        %705 = vmatmul.mubr.bf16.gmra.mxu0 %v591
        %v706 = vpop.f32.mrf.mxu0
        %v707 = vadd.f32 %v569, %v706
        %v708 = vpop.f32.mrf.mxu0
        %v709 = vpop.f32.mrf.mxu0
        %v710 = vadd.f32 %v569, %v709
        %v711 = vpop.f32.mrf.mxu0
        %712 = vmatprep.mubr.bf16.mxu0 0
        %713 = vmatmul.mubr.bf16.gmra.mxu0 %v594
        %v714 = vpop.f32.mrf.mxu0
        %v715 = vadd.f32 %v569, %v714
        %v716 = vpop.f32.mrf.mxu0
        %v717 = vpop.f32.mrf.mxu0
        %v718 = vadd.f32 %v569, %v717
        %v719 = vpop.f32.mrf.mxu0
        %720 = vmatprep.mubr.bf16.mxu0 0
        %721 = vmatmul.mubr.bf16.gmra.mxu0 %v597
        %v722 = vpop.f32.mrf.mxu0
        %v723 = vadd.f32 %v569, %v722
        %v724 = vpop.f32.mrf.mxu0
        %v725 = vpop.f32.mrf.mxu0
        %v726 = vadd.f32 %v569, %v725
        %v727 = vpop.f32.mrf.mxu0
        %728 = vmatprep.mubr.bf16.mxu0 0
        %729 = vmatmul.mubr.bf16.gmra.mxu0 %v600
        %v730 = vpop.f32.mrf.mxu0
        %v731 = vadd.f32 %v569, %v730
        %v732 = vpop.f32.mrf.mxu0
        %v733 = vpop.f32.mrf.mxu0
        %v734 = vadd.f32 %v569, %v733
        %v735 = vpop.f32.mrf.mxu0
        %736 = vmatprep.mubr.bf16.mxu0 0
        %737 = vmatmul.mubr.bf16.gmra.mxu0 %v603
        %v738 = vpop.f32.mrf.mxu0
        %v739 = vadd.f32 %v569, %v738
        %v740 = vpop.f32.mrf.mxu0
        %v741 = vpop.f32.mrf.mxu0
        %v742 = vadd.f32 %v569, %v741
        %v743 = vpop.f32.mrf.mxu0
        %744 = vmatprep.mubr.bf16.mxu0 0
        %745 = vmatmul.mubr.bf16.gmra.mxu0 %v606
        %v746 = vpop.f32.mrf.mxu0
        %v747 = vadd.f32 %v569, %v746
        %v748 = vpop.f32.mrf.mxu0
        %v749 = vpop.f32.mrf.mxu0
        %v750 = vadd.f32 %v569, %v749
        %v751 = vpop.f32.mrf.mxu0
        %752 = vmatprep.mubr.bf16.mxu0 0
        %753 = vmatmul.mubr.bf16.gmra.mxu0 %v609
        %v754 = vpop.f32.mrf.mxu0
        %v755 = vadd.f32 %v569, %v754
        %v756 = vpop.f32.mrf.mxu0
        %v757 = vpop.f32.mrf.mxu0
        %v758 = vadd.f32 %v569, %v757
        %v759 = vpop.f32.mrf.mxu0
        %760 = vmatprep.mubr.bf16.mxu0 0
        %761 = vmatmul.mubr.bf16.gmra.mxu0 %v612
        %v762 = vpop.f32.mrf.mxu0
        %v763 = vadd.f32 %v569, %v762
        %v764 = vpop.f32.mrf.mxu0
        %v765 = vpop.f32.mrf.mxu0
        %v766 = vadd.f32 %v569, %v765
        %v767 = vpop.f32.mrf.mxu0
        %768 = vmatprep.mubr.bf16.mxu0 0
        %769 = vmatmul.mubr.bf16.gmra.mxu0 %v615
        %v770 = vpop.f32.mrf.mxu0
        %v771 = vadd.f32 %v569, %v770
        %v772 = vpop.f32.mrf.mxu0
        %v773 = vpop.f32.mrf.mxu0
        %v774 = vadd.f32 %v569, %v773
        %v775 = vpop.f32.mrf.mxu0
        %776 = vmatprep.mubr.bf16.mxu0 0
        %777 = vmatmul.mubr.bf16.gmra.mxu0 %v618
        %v778 = vpop.f32.mrf.mxu0
        %v779 = vadd.f32 %v569, %v778
        %v780 = vpop.f32.mrf.mxu0
        %v781 = vpop.f32.mrf.mxu0
        %v782 = vadd.f32 %v569, %v781
        %v783 = vpop.f32.mrf.mxu0
        %784 = vdwg.mxu0
        %v785 = vmax.f32 %v659, 0.0
        %v786 = vmax.f32 %v662, 0.0
        %v787 = vmax.f32 %v667, 0.0
        %v788 = vmax.f32 %v670, 0.0
        %v789 = vmax.f32 %v675, 0.0
        %v790 = vmax.f32 %v678, 0.0
        %v791 = vmax.f32 %v683, 0.0
        %v792 = vmax.f32 %v686, 0.0
        %v793 = vmax.f32 %v691, 0.0
        %v794 = vmax.f32 %v694, 0.0
        %v795 = vmax.f32 %v699, 0.0
        %v796 = vmax.f32 %v702, 0.0
        %v797 = vmax.f32 %v707, 0.0
        %v798 = vmax.f32 %v710, 0.0
        %v799 = vmax.f32 %v715, 0.0
        %v800 = vmax.f32 %v718, 0.0
        %v801 = vmax.f32 %v723, 0.0
        %v802 = vmax.f32 %v726, 0.0
        %v803 = vmax.f32 %v731, 0.0
        %v804 = vmax.f32 %v734, 0.0
        %v805 = vmax.f32 %v739, 0.0
        %v806 = vmax.f32 %v742, 0.0
        %v807 = vmax.f32 %v747, 0.0
        %v808 = vmax.f32 %v750, 0.0
        %v809 = vmax.f32 %v755, 0.0
        %v810 = vmax.f32 %v758, 0.0
        %v811 = vmax.f32 %v763, 0.0
        %v812 = vmax.f32 %v766, 0.0
        %v813 = vmax.f32 %v771, 0.0
        %v814 = vmax.f32 %v774, 0.0
        %v815 = vmax.f32 %v779, 0.0
        %v816 = vmax.f32 %v782, 0.0
        %s817 = scalar_lea.vmem %s3, 20
        %v818 = vld [vmem:[%s817] sm:$0xf]
        %v819 = vld [vmem:[%s817 + $0x4] sm:$0xf]
        %v820 = vld [vmem:[%s817 + $0x8] sm:$0xf]
        %v821 = vld [vmem:[%s817 + $0xc] sm:$0xf]
        %v822 = vld [vmem:[%s817 + $0x10] sm:$0xf]
        %v823 = vpack.c.bf16 %v786, %v785
        %v824 = vpack.c.bf16 %v788, %v787
        %v825 = vpack.c.bf16 %v790, %v789
        %v826 = vpack.c.bf16 %v792, %v791
        %v827 = vpack.c.bf16 %v794, %v793
        %v828 = vpack.c.bf16 %v796, %v795
        %v829 = vpack.c.bf16 %v798, %v797
        %v830 = vpack.c.bf16 %v800, %v799
        %v831 = vpack.c.bf16 %v802, %v801
        %v832 = vpack.c.bf16 %v804, %v803
        %v833 = vpack.c.bf16 %v806, %v805
        %v834 = vpack.c.bf16 %v808, %v807
        %v835 = vpack.c.bf16 %v810, %v809
        %v836 = vpack.c.bf16 %v812, %v811
        %v837 = vpack.c.bf16 %v814, %v813
        %v838 = vpack.c.bf16 %v816, %v815
        %vm839 = vcmp.ge.s32.totalorder %v515, 1
        %vm840 = vcmp.ge.s32.totalorder %v516, 1
        %vm841 = vcmp.ge.s32.totalorder %v517, 1
        %vm842 = vcmp.ge.s32.totalorder %v518, 1
        %vm843 = vcmp.ge.s32.totalorder %v519, 1
        %vm844 = vcmp.ge.s32.totalorder %v520, 1
        %vm845 = vcmp.ge.s32.totalorder %v521, 1
        %vm846 = vcmp.ge.s32.totalorder %v522, 1
        %vm847 = vcmp.ge.s32.totalorder %v523, 1
        %vm848 = vcmp.ge.s32.totalorder %v524, 1
        %vm849 = vcmp.ge.s32.totalorder %v525, 1
        %vm850 = vcmp.ge.s32.totalorder %v526, 1
        %vm851 = vcmp.ge.s32.totalorder %v527, 1
        %vm852 = vcmp.ge.s32.totalorder %v528, 1
        %vm853 = vcmp.ge.s32.totalorder %v529, 1
        %vm854 = vcmp.ge.s32.totalorder %v530, 1
        %vm855 = vcmp.ge.s32.totalorder %v531, 1
        %vm856 = vcmp.ge.s32.totalorder %v532, 1
        %vm857 = vcmp.ge.s32.totalorder %v533, 1
        %vm858 = vcmp.ge.s32.totalorder %v534, 1
        %vm859 = vcmp.ge.s32.totalorder %v535, 1
        %vm860 = vcmp.ge.s32.totalorder %v536, 1
        %vm861 = vcmp.ge.s32.totalorder %v537, 1
        %vm862 = vcmp.ge.s32.totalorder %v538, 1
        %vm863 = vcmp.ge.s32.totalorder %v539, 1
        %vm864 = vcmp.ge.s32.totalorder %v540, 1
        %vm865 = vcmp.ge.s32.totalorder %v541, 1
        %vm866 = vcmp.ge.s32.totalorder %v542, 1
        %vm867 = vcmp.ge.s32.totalorder %v543, 1
        %vm868 = vcmp.ge.s32.totalorder %v544, 1
        %vm869 = vcmp.ge.s32.totalorder %v545, 1
        %vm870 = vcmp.ge.s32.totalorder %v546, 1
        %v871 = vsel %vm839, 1, 0
        %v872 = vsel %vm840, 1, 0
        %v873 = vsel %vm841, 1, 0
        %v874 = vsel %vm842, 1, 0
        %v875 = vsel %vm843, 1, 0
        %v876 = vsel %vm844, 1, 0
        %v877 = vsel %vm845, 1, 0
        %v878 = vsel %vm846, 1, 0
        %v879 = vsel %vm847, 1, 0
        %v880 = vsel %vm848, 1, 0
        %v881 = vsel %vm849, 1, 0
        %v882 = vsel %vm850, 1, 0
        %v883 = vsel %vm851, 1, 0
        %v884 = vsel %vm852, 1, 0
        %v885 = vsel %vm853, 1, 0
        %v886 = vsel %vm854, 1, 0
        %v887 = vsel %vm855, 1, 0
        %v888 = vsel %vm856, 1, 0
        %v889 = vsel %vm857, 1, 0
        %v890 = vsel %vm858, 1, 0
        %v891 = vsel %vm859, 1, 0
        %v892 = vsel %vm860, 1, 0
        %v893 = vsel %vm861, 1, 0
        %v894 = vsel %vm862, 1, 0
        %v895 = vsel %vm863, 1, 0
        %v896 = vsel %vm864, 1, 0
        %v897 = vsel %vm865, 1, 0
        %v898 = vsel %vm866, 1, 0
        %v899 = vsel %vm867, 1, 0
        %v900 = vsel %vm868, 1, 0
        %v901 = vsel %vm869, 1, 0
        %v902 = vsel %vm870, 1, 0
        %vm903 = vcmp.eq.s32.totalorder %v871, 1
        %vm904 = vcmp.eq.s32.totalorder %v872, 1
        %vm905 = vcmp.eq.s32.totalorder %v873, 1
        %vm906 = vcmp.eq.s32.totalorder %v874, 1
        %vm907 = vcmp.eq.s32.totalorder %v875, 1
        %vm908 = vcmp.eq.s32.totalorder %v876, 1
        %vm909 = vcmp.eq.s32.totalorder %v877, 1
        %vm910 = vcmp.eq.s32.totalorder %v878, 1
        %vm911 = vcmp.eq.s32.totalorder %v879, 1
        %vm912 = vcmp.eq.s32.totalorder %v880, 1
        %vm913 = vcmp.eq.s32.totalorder %v881, 1
        %vm914 = vcmp.eq.s32.totalorder %v882, 1
        %vm915 = vcmp.eq.s32.totalorder %v883, 1
        %vm916 = vcmp.eq.s32.totalorder %v884, 1
        %vm917 = vcmp.eq.s32.totalorder %v885, 1
        %vm918 = vcmp.eq.s32.totalorder %v886, 1
        %vm919 = vcmp.eq.s32.totalorder %v887, 1
        %vm920 = vcmp.eq.s32.totalorder %v888, 1
        %vm921 = vcmp.eq.s32.totalorder %v889, 1
        %vm922 = vcmp.eq.s32.totalorder %v890, 1
        %vm923 = vcmp.eq.s32.totalorder %v891, 1
        %vm924 = vcmp.eq.s32.totalorder %v892, 1
        %vm925 = vcmp.eq.s32.totalorder %v893, 1
        %vm926 = vcmp.eq.s32.totalorder %v894, 1
        %vm927 = vcmp.eq.s32.totalorder %v895, 1
        %vm928 = vcmp.eq.s32.totalorder %v896, 1
        %vm929 = vcmp.eq.s32.totalorder %v897, 1
        %vm930 = vcmp.eq.s32.totalorder %v898, 1
        %vm931 = vcmp.eq.s32.totalorder %v899, 1
        %vm932 = vcmp.eq.s32.totalorder %v900, 1
        %vm933 = vcmp.eq.s32.totalorder %v901, 1
        %vm934 = vcmp.eq.s32.totalorder %v902, 1
        %v935 = vsel %vm903, %v815, 0.0
        %v936 = vsel %vm904, %v816, 0.0
        %v937 = vsel %vm905, %v785, 0.0
        %v938 = vsel %vm906, %v786, 0.0
        %v939 = vsel %vm907, %v787, 0.0
        %v940 = vsel %vm908, %v788, 0.0
        %v941 = vsel %vm909, %v789, 0.0
        %v942 = vsel %vm910, %v790, 0.0
        %v943 = vsel %vm911, %v791, 0.0
        %v944 = vsel %vm912, %v792, 0.0
        %v945 = vsel %vm913, %v793, 0.0
        %v946 = vsel %vm914, %v794, 0.0
        %v947 = vsel %vm915, %v795, 0.0
        %v948 = vsel %vm916, %v796, 0.0
        %v949 = vsel %vm917, %v797, 0.0
        %v950 = vsel %vm918, %v798, 0.0
        %v951 = vsel %vm919, %v799, 0.0
        %v952 = vsel %vm920, %v800, 0.0
        %v953 = vsel %vm921, %v801, 0.0
        %v954 = vsel %vm922, %v802, 0.0
        %v955 = vsel %vm923, %v803, 0.0
        %v956 = vsel %vm924, %v804, 0.0
        %v957 = vsel %vm925, %v805, 0.0
        %v958 = vsel %vm926, %v806, 0.0
        %v959 = vsel %vm927, %v807, 0.0
        %v960 = vsel %vm928, %v808, 0.0
        %v961 = vsel %vm929, %v809, 0.0
        %v962 = vsel %vm930, %v810, 0.0
        %v963 = vsel %vm931, %v811, 0.0
        %v964 = vsel %vm932, %v812, 0.0
        %v965 = vsel %vm933, %v813, 0.0
        %v966 = vsel %vm934, %v814, 0.0
        %v967 = vld [vmem:[%s3] sm:$0xf]
        %v968 = vld [vmem:[%s3 + $0x4] sm:$0xf]
        %v969 = vld [vmem:[%s3 + $0x8] sm:$0xf]
        %v970 = vld [vmem:[%s3 + $0xc] sm:$0xf]
        %v971 = vld [vmem:[%s3 + $0x10] sm:$0xf]
        %v972 = vpack.c.bf16 %v936, %v935
        %v973 = vpack.c.bf16 %v938, %v937
        %v974 = vpack.c.bf16 %v940, %v939
        %v975 = vpack.c.bf16 %v942, %v941
        %v976 = vpack.c.bf16 %v944, %v943
        %v977 = vpack.c.bf16 %v946, %v945
        %v978 = vpack.c.bf16 %v948, %v947
        %v979 = vpack.c.bf16 %v950, %v949
        %v980 = vpack.c.bf16 %v952, %v951
        %v981 = vpack.c.bf16 %v954, %v953
        %v982 = vpack.c.bf16 %v956, %v955
        %v983 = vpack.c.bf16 %v958, %v957
        %v984 = vpack.c.bf16 %v960, %v959
        %v985 = vpack.c.bf16 %v962, %v961
        %v986 = vpack.c.bf16 %v964, %v963
        %v987 = vpack.c.bf16 %v966, %v965
        %v993 = vunpack.c.l.b16 %v967
        %v994 = vunpack.c.l.b16 %v968
        %v995 = vunpack.c.l.b16 %v969
        %v996 = vunpack.c.l.b16 %v970
        %v997 = vunpack.c.l.b16 %v971
        %v998 = vpack.c.b16 %v994, %v993
        %v999 = vpack.c.b16 %v996, %v995
        %v1000 = vpack.c.b16 %v997, %v997
        %vm1003 = vcmask 326656
        %v1005 = vsel %vm1003, %v972, 0
        %v1008 = vsel %vm1003, %v973, 0
        %v1011 = vsel %vm1003, %v974, 0
        %v1014 = vsel %vm1003, %v975, 0
        %v1017 = vsel %vm1003, %v976, 0
        %v1020 = vsel %vm1003, %v977, 0
        %v1023 = vsel %vm1003, %v978, 0
        %v1026 = vsel %vm1003, %v979, 0
        %v1029 = vsel %vm1003, %v980, 0
        %v1032 = vsel %vm1003, %v981, 0
        %v1035 = vsel %vm1003, %v982, 0
        %v1038 = vsel %vm1003, %v983, 0
        %v1041 = vsel %vm1003, %v984, 0
        %v1044 = vsel %vm1003, %v985, 0
        %v1047 = vsel %vm1003, %v986, 0
        %v1050 = vsel %vm1003, %v987, 0
        %vm1052 = vcmask 1043456
        %v1054 = vsel %vm1052, %v1000, 0
        %1056 = vmatprep.subr.bf16.mxu0 0
        %1057 = vmatpush1.bf16.msra.mxu0 0
        %1058 = vmatprep.subr.bf16.mxu0 0
        %1059 = vmatpush1.bf16.msra.mxu0 0
        %1060 = vmatprep.subr.bf16.mxu0 0
        %1061 = vmatpush1.bf16.msra.mxu0 0
        %1062 = vmatprep.subr.bf16.mxu0 0
        %1063 = vmatpush1.bf16.msra.mxu0 0
        %1064 = vmatprep.subr.bf16.mxu0 0
        %1065 = vmatpush1.bf16.msra.mxu0 0
        %1066 = vmatprep.subr.bf16.mxu0 0
        %1067 = vmatpush1.bf16.msra.mxu0 %v1054
        %1068 = vmatprep.subr.bf16.mxu0 0
        %1069 = vmatpush1.bf16.msra.mxu0 %v999
        %1070 = vmatprep.subr.bf16.mxu0 0
        %1071 = vmatpush1.bf16.msra.mxu0 %v998
        %1072 = vmatprep.subr.bf16.mxu0 0
        %1073 = vmatpush2.bf16.msra.mxu0 0
        %1074 = vmatprep.subr.bf16.mxu0 0
        %1075 = vmatpush2.bf16.msra.mxu0 0
        %1076 = vmatprep.subr.bf16.mxu0 0
        %1077 = vmatpush2.bf16.msra.mxu0 0
        %1078 = vmatprep.subr.bf16.mxu0 0
        %1079 = vmatpush2.bf16.msra.mxu0 0
        %1080 = vmatprep.subr.bf16.mxu0 0
        %1081 = vmatpush2.bf16.msra.mxu0 0
        %1082 = vmatprep.subr.bf16.mxu0 0
        %1083 = vmatpush2.bf16.msra.mxu0 0
        %1084 = vmatprep.subr.bf16.mxu0 0
        %1085 = vmatpush2.bf16.msra.mxu0 0
        %1086 = vmatprep.subr.bf16.mxu0 0
        %1087 = vmatpush2.bf16.msra.mxu0 0
        %1088 = vmatprep.mubr.bf16.mxu0 0
        %1089 = vmatmul.mubr.bf16.gmra.mxu0 %v1005
        %v1090 = vpop.f32.mrf.mxu0
        %v1091 = vadd.f32 0.0, %v1090
        %v1092 = vpop.f32.mrf.mxu0
        %v1093 = vpop.f32.mrf.mxu0
        %v1094 = vadd.f32 0.0, %v1093
        %v1095 = vpop.f32.mrf.mxu0
        %1096 = vmatprep.mubr.bf16.mxu0 0
        %1097 = vmatmul.mubr.bf16.gmra.mxu0 %v1008
        %v1098 = vpop.f32.mrf.mxu0
        %v1099 = vadd.f32 0.0, %v1098
        %v1100 = vpop.f32.mrf.mxu0
        %v1101 = vpop.f32.mrf.mxu0
        %v1102 = vadd.f32 0.0, %v1101
        %v1103 = vpop.f32.mrf.mxu0
        %1104 = vmatprep.mubr.bf16.mxu0 0
        %1105 = vmatmul.mubr.bf16.gmra.mxu0 %v1011
        %v1106 = vpop.f32.mrf.mxu0
        %v1107 = vadd.f32 0.0, %v1106
        %v1108 = vpop.f32.mrf.mxu0
        %v1109 = vpop.f32.mrf.mxu0
        %v1110 = vadd.f32 0.0, %v1109
        %v1111 = vpop.f32.mrf.mxu0
        %1112 = vmatprep.mubr.bf16.mxu0 0
        %1113 = vmatmul.mubr.bf16.gmra.mxu0 %v1014
        %v1114 = vpop.f32.mrf.mxu0
        %v1115 = vadd.f32 0.0, %v1114
        %v1116 = vpop.f32.mrf.mxu0
        %v1117 = vpop.f32.mrf.mxu0
        %v1118 = vadd.f32 0.0, %v1117
        %v1119 = vpop.f32.mrf.mxu0
        %1120 = vmatprep.mubr.bf16.mxu0 0
        %1121 = vmatmul.mubr.bf16.gmra.mxu0 %v1017
        %v1122 = vpop.f32.mrf.mxu0
        %v1123 = vadd.f32 0.0, %v1122
        %v1124 = vpop.f32.mrf.mxu0
        %v1125 = vpop.f32.mrf.mxu0
        %v1126 = vadd.f32 0.0, %v1125
        %v1127 = vpop.f32.mrf.mxu0
        %1128 = vmatprep.mubr.bf16.mxu0 0
        %1129 = vmatmul.mubr.bf16.gmra.mxu0 %v1020
        %v1130 = vpop.f32.mrf.mxu0
        %v1131 = vadd.f32 0.0, %v1130
        %v1132 = vpop.f32.mrf.mxu0
        %v1133 = vpop.f32.mrf.mxu0
        %v1134 = vadd.f32 0.0, %v1133
        %v1135 = vpop.f32.mrf.mxu0
        %1136 = vmatprep.mubr.bf16.mxu0 0
        %1137 = vmatmul.mubr.bf16.gmra.mxu0 %v1023
        %v1138 = vpop.f32.mrf.mxu0
        %v1139 = vadd.f32 0.0, %v1138
        %v1140 = vpop.f32.mrf.mxu0
        %v1141 = vpop.f32.mrf.mxu0
        %v1142 = vadd.f32 0.0, %v1141
        %v1143 = vpop.f32.mrf.mxu0
        %1144 = vmatprep.mubr.bf16.mxu0 0
        %1145 = vmatmul.mubr.bf16.gmra.mxu0 %v1026
        %v1146 = vpop.f32.mrf.mxu0
        %v1147 = vadd.f32 0.0, %v1146
        %v1148 = vpop.f32.mrf.mxu0
        %v1149 = vpop.f32.mrf.mxu0
        %v1150 = vadd.f32 0.0, %v1149
        %v1151 = vpop.f32.mrf.mxu0
        %1152 = vmatprep.mubr.bf16.mxu0 0
        %1153 = vmatmul.mubr.bf16.gmra.mxu0 %v1029
        %v1154 = vpop.f32.mrf.mxu0
        %v1155 = vadd.f32 0.0, %v1154
        %v1156 = vpop.f32.mrf.mxu0
        %v1157 = vpop.f32.mrf.mxu0
        %v1158 = vadd.f32 0.0, %v1157
        %v1159 = vpop.f32.mrf.mxu0
        %1160 = vmatprep.mubr.bf16.mxu0 0
        %1161 = vmatmul.mubr.bf16.gmra.mxu0 %v1032
        %v1162 = vpop.f32.mrf.mxu0
        %v1163 = vadd.f32 0.0, %v1162
        %v1164 = vpop.f32.mrf.mxu0
        %v1165 = vpop.f32.mrf.mxu0
        %v1166 = vadd.f32 0.0, %v1165
        %v1167 = vpop.f32.mrf.mxu0
        %1168 = vmatprep.mubr.bf16.mxu0 0
        %1169 = vmatmul.mubr.bf16.gmra.mxu0 %v1035
        %v1170 = vpop.f32.mrf.mxu0
        %v1171 = vadd.f32 0.0, %v1170
        %v1172 = vpop.f32.mrf.mxu0
        %v1173 = vpop.f32.mrf.mxu0
        %v1174 = vadd.f32 0.0, %v1173
        %v1175 = vpop.f32.mrf.mxu0
        %1176 = vmatprep.mubr.bf16.mxu0 0
        %1177 = vmatmul.mubr.bf16.gmra.mxu0 %v1038
        %v1178 = vpop.f32.mrf.mxu0
        %v1179 = vadd.f32 0.0, %v1178
        %v1180 = vpop.f32.mrf.mxu0
        %v1181 = vpop.f32.mrf.mxu0
        %v1182 = vadd.f32 0.0, %v1181
        %v1183 = vpop.f32.mrf.mxu0
        %1184 = vmatprep.mubr.bf16.mxu0 0
        %1185 = vmatmul.mubr.bf16.gmra.mxu0 %v1041
        %v1186 = vpop.f32.mrf.mxu0
        %v1187 = vadd.f32 0.0, %v1186
        %v1188 = vpop.f32.mrf.mxu0
        %v1189 = vpop.f32.mrf.mxu0
        %v1190 = vadd.f32 0.0, %v1189
        %v1191 = vpop.f32.mrf.mxu0
        %1192 = vmatprep.mubr.bf16.mxu0 0
        %1193 = vmatmul.mubr.bf16.gmra.mxu0 %v1044
        %v1194 = vpop.f32.mrf.mxu0
        %v1195 = vadd.f32 0.0, %v1194
        %v1196 = vpop.f32.mrf.mxu0
        %v1197 = vpop.f32.mrf.mxu0
        %v1198 = vadd.f32 0.0, %v1197
        %v1199 = vpop.f32.mrf.mxu0
        %1200 = vmatprep.mubr.bf16.mxu0 0
        %1201 = vmatmul.mubr.bf16.gmra.mxu0 %v1047
        %v1202 = vpop.f32.mrf.mxu0
        %v1203 = vadd.f32 0.0, %v1202
        %v1204 = vpop.f32.mrf.mxu0
        %v1205 = vpop.f32.mrf.mxu0
        %v1206 = vadd.f32 0.0, %v1205
        %v1207 = vpop.f32.mrf.mxu0
        %1208 = vmatprep.mubr.bf16.mxu0 0
        %1209 = vmatmul.mubr.bf16.gmra.mxu0 %v1050
        %v1210 = vpop.f32.mrf.mxu0
        %v1211 = vadd.f32 0.0, %v1210
        %v1212 = vpop.f32.mrf.mxu0
        %v1213 = vpop.f32.mrf.mxu0
        %v1214 = vadd.f32 0.0, %v1213
        %v1215 = vpop.f32.mrf.mxu0
        %1216 = vdwg.mxu0
        %v1222 = vunpack.c.l.b16 %v818
        %v1223 = vunpack.c.l.b16 %v819
        %v1224 = vunpack.c.l.b16 %v820
        %v1225 = vunpack.c.l.b16 %v821
        %v1226 = vunpack.c.l.b16 %v822
        %v1227 = vpack.c.b16 %v1223, %v1222
        %v1228 = vpack.c.b16 %v1225, %v1224
        %v1229 = vpack.c.b16 %v1226, %v1226
        %v1233 = vsel %vm1003, %v823, 0
        %v1236 = vsel %vm1003, %v824, 0
        %v1239 = vsel %vm1003, %v825, 0
        %v1242 = vsel %vm1003, %v826, 0
        %v1245 = vsel %vm1003, %v827, 0
        %v1248 = vsel %vm1003, %v828, 0
        %v1251 = vsel %vm1003, %v829, 0
        %v1254 = vsel %vm1003, %v830, 0
        %v1257 = vsel %vm1003, %v831, 0
        %v1260 = vsel %vm1003, %v832, 0
        %v1263 = vsel %vm1003, %v833, 0
        %v1266 = vsel %vm1003, %v834, 0
        %v1269 = vsel %vm1003, %v835, 0
        %v1272 = vsel %vm1003, %v836, 0
        %v1275 = vsel %vm1003, %v837, 0
        %v1278 = vsel %vm1003, %v838, 0
        %v1281 = vsel %vm1052, %v1229, 0
        %1283 = vmatprep.subr.bf16.mxu0 0
        %1284 = vmatpush1.bf16.msra.mxu0 0
        %1285 = vmatprep.subr.bf16.mxu0 0
        %1286 = vmatpush1.bf16.msra.mxu0 0
        %1287 = vmatprep.subr.bf16.mxu0 0
        %1288 = vmatpush1.bf16.msra.mxu0 0
        %1289 = vmatprep.subr.bf16.mxu0 0
        %1290 = vmatpush1.bf16.msra.mxu0 0
        %1291 = vmatprep.subr.bf16.mxu0 0
        %1292 = vmatpush1.bf16.msra.mxu0 0
        %1293 = vmatprep.subr.bf16.mxu0 0
        %1294 = vmatpush1.bf16.msra.mxu0 %v1281
        %1295 = vmatprep.subr.bf16.mxu0 0
        %1296 = vmatpush1.bf16.msra.mxu0 %v1228
        %1297 = vmatprep.subr.bf16.mxu0 0
        %1298 = vmatpush1.bf16.msra.mxu0 %v1227
        %1299 = vmatprep.subr.bf16.mxu0 0
        %1300 = vmatpush2.bf16.msra.mxu0 0
        %1301 = vmatprep.subr.bf16.mxu0 0
        %1302 = vmatpush2.bf16.msra.mxu0 0
        %1303 = vmatprep.subr.bf16.mxu0 0
        %1304 = vmatpush2.bf16.msra.mxu0 0
        %1305 = vmatprep.subr.bf16.mxu0 0
        %1306 = vmatpush2.bf16.msra.mxu0 0
        %1307 = vmatprep.subr.bf16.mxu0 0
        %1308 = vmatpush2.bf16.msra.mxu0 0
        %1309 = vmatprep.subr.bf16.mxu0 0
        %1310 = vmatpush2.bf16.msra.mxu0 0
        %1311 = vmatprep.subr.bf16.mxu0 0
        %1312 = vmatpush2.bf16.msra.mxu0 0
        %1313 = vmatprep.subr.bf16.mxu0 0
        %1314 = vmatpush2.bf16.msra.mxu0 0
        %1315 = vmatprep.mubr.bf16.mxu0 0
        %1316 = vmatmul.mubr.bf16.gmra.mxu0 %v1233
        %v1317 = vpop.f32.mrf.mxu0
        %v1318 = vadd.f32 %v1091, %v1317
        %v1319 = vpop.f32.mrf.mxu0
        %v1320 = vpop.f32.mrf.mxu0
        %v1321 = vadd.f32 %v1094, %v1320
        %v1322 = vpop.f32.mrf.mxu0
        %1323 = vmatprep.mubr.bf16.mxu0 0
        %1324 = vmatmul.mubr.bf16.gmra.mxu0 %v1236
        %v1325 = vpop.f32.mrf.mxu0
        %v1326 = vadd.f32 %v1099, %v1325
        %v1327 = vpop.f32.mrf.mxu0
        %v1328 = vpop.f32.mrf.mxu0
        %v1329 = vadd.f32 %v1102, %v1328
        %v1330 = vpop.f32.mrf.mxu0
        %1331 = vmatprep.mubr.bf16.mxu0 0
        %1332 = vmatmul.mubr.bf16.gmra.mxu0 %v1239
        %v1333 = vpop.f32.mrf.mxu0
        %v1334 = vadd.f32 %v1107, %v1333
        %v1335 = vpop.f32.mrf.mxu0
        %v1336 = vpop.f32.mrf.mxu0
        %v1337 = vadd.f32 %v1110, %v1336
        %v1338 = vpop.f32.mrf.mxu0
        %1339 = vmatprep.mubr.bf16.mxu0 0
        %1340 = vmatmul.mubr.bf16.gmra.mxu0 %v1242
        %v1341 = vpop.f32.mrf.mxu0
        %v1342 = vadd.f32 %v1115, %v1341
        %v1343 = vpop.f32.mrf.mxu0
        %v1344 = vpop.f32.mrf.mxu0
        %v1345 = vadd.f32 %v1118, %v1344
        %v1346 = vpop.f32.mrf.mxu0
        %1347 = vmatprep.mubr.bf16.mxu0 0
        %1348 = vmatmul.mubr.bf16.gmra.mxu0 %v1245
        %v1349 = vpop.f32.mrf.mxu0
        %v1350 = vadd.f32 %v1123, %v1349
        %v1351 = vpop.f32.mrf.mxu0
        %v1352 = vpop.f32.mrf.mxu0
        %v1353 = vadd.f32 %v1126, %v1352
        %v1354 = vpop.f32.mrf.mxu0
        %1355 = vmatprep.mubr.bf16.mxu0 0
        %1356 = vmatmul.mubr.bf16.gmra.mxu0 %v1248
        %v1357 = vpop.f32.mrf.mxu0
        %v1358 = vadd.f32 %v1131, %v1357
        %v1359 = vpop.f32.mrf.mxu0
        %v1360 = vpop.f32.mrf.mxu0
        %v1361 = vadd.f32 %v1134, %v1360
        %v1362 = vpop.f32.mrf.mxu0
        %1363 = vmatprep.mubr.bf16.mxu0 0
        %1364 = vmatmul.mubr.bf16.gmra.mxu0 %v1251
        %v1365 = vpop.f32.mrf.mxu0
        %v1366 = vadd.f32 %v1139, %v1365
        %v1367 = vpop.f32.mrf.mxu0
        %v1368 = vpop.f32.mrf.mxu0
        %v1369 = vadd.f32 %v1142, %v1368
        %v1370 = vpop.f32.mrf.mxu0
        %1371 = vmatprep.mubr.bf16.mxu0 0
        %1372 = vmatmul.mubr.bf16.gmra.mxu0 %v1254
        %v1373 = vpop.f32.mrf.mxu0
        %v1374 = vadd.f32 %v1147, %v1373
        %v1375 = vpop.f32.mrf.mxu0
        %v1376 = vpop.f32.mrf.mxu0
        %v1377 = vadd.f32 %v1150, %v1376
        %v1378 = vpop.f32.mrf.mxu0
        %1379 = vmatprep.mubr.bf16.mxu0 0
        %1380 = vmatmul.mubr.bf16.gmra.mxu0 %v1257
        %v1381 = vpop.f32.mrf.mxu0
        %v1382 = vadd.f32 %v1155, %v1381
        %v1383 = vpop.f32.mrf.mxu0
        %v1384 = vpop.f32.mrf.mxu0
        %v1385 = vadd.f32 %v1158, %v1384
        %v1386 = vpop.f32.mrf.mxu0
        %1387 = vmatprep.mubr.bf16.mxu0 0
        %1388 = vmatmul.mubr.bf16.gmra.mxu0 %v1260
        %v1389 = vpop.f32.mrf.mxu0
        %v1390 = vadd.f32 %v1163, %v1389
        %v1391 = vpop.f32.mrf.mxu0
        %v1392 = vpop.f32.mrf.mxu0
        %v1393 = vadd.f32 %v1166, %v1392
        %v1394 = vpop.f32.mrf.mxu0
        %1395 = vmatprep.mubr.bf16.mxu0 0
        %1396 = vmatmul.mubr.bf16.gmra.mxu0 %v1263
        %v1397 = vpop.f32.mrf.mxu0
        %v1398 = vadd.f32 %v1171, %v1397
        %v1399 = vpop.f32.mrf.mxu0
        %v1400 = vpop.f32.mrf.mxu0
        %v1401 = vadd.f32 %v1174, %v1400
        %v1402 = vpop.f32.mrf.mxu0
        %1403 = vmatprep.mubr.bf16.mxu0 0
        %1404 = vmatmul.mubr.bf16.gmra.mxu0 %v1266
        %v1405 = vpop.f32.mrf.mxu0
        %v1406 = vadd.f32 %v1179, %v1405
        %v1407 = vpop.f32.mrf.mxu0
        %v1408 = vpop.f32.mrf.mxu0
        %v1409 = vadd.f32 %v1182, %v1408
        %v1410 = vpop.f32.mrf.mxu0
        %1411 = vmatprep.mubr.bf16.mxu0 0
        %1412 = vmatmul.mubr.bf16.gmra.mxu0 %v1269
        %v1413 = vpop.f32.mrf.mxu0
        %v1414 = vadd.f32 %v1187, %v1413
        %v1415 = vpop.f32.mrf.mxu0
        %v1416 = vpop.f32.mrf.mxu0
        %v1417 = vadd.f32 %v1190, %v1416
        %v1418 = vpop.f32.mrf.mxu0
        %1419 = vmatprep.mubr.bf16.mxu0 0
        %1420 = vmatmul.mubr.bf16.gmra.mxu0 %v1272
        %v1421 = vpop.f32.mrf.mxu0
        %v1422 = vadd.f32 %v1195, %v1421
        %v1423 = vpop.f32.mrf.mxu0
        %v1424 = vpop.f32.mrf.mxu0
        %v1425 = vadd.f32 %v1198, %v1424
        %v1426 = vpop.f32.mrf.mxu0
        %1427 = vmatprep.mubr.bf16.mxu0 0
        %1428 = vmatmul.mubr.bf16.gmra.mxu0 %v1275
        %v1429 = vpop.f32.mrf.mxu0
        %v1430 = vadd.f32 %v1203, %v1429
        %v1431 = vpop.f32.mrf.mxu0
        %v1432 = vpop.f32.mrf.mxu0
        %v1433 = vadd.f32 %v1206, %v1432
        %v1434 = vpop.f32.mrf.mxu0
        %1435 = vmatprep.mubr.bf16.mxu0 0
        %1436 = vmatmul.mubr.bf16.gmra.mxu0 %v1278
        %v1437 = vpop.f32.mrf.mxu0
        %v1438 = vadd.f32 %v1211, %v1437
        %v1439 = vpop.f32.mrf.mxu0
        %v1440 = vpop.f32.mrf.mxu0
        %v1441 = vadd.f32 %v1214, %v1440
        %v1442 = vpop.f32.mrf.mxu0
        %1443 = vdwg.mxu0
        %vm1444 = vcmp.lt.s32.totalorder %v515, 15
        %vm1445 = vcmp.lt.s32.totalorder %v516, 15
        %vm1446 = vcmp.lt.s32.totalorder %v517, 15
        %vm1447 = vcmp.lt.s32.totalorder %v518, 15
        %vm1448 = vcmp.lt.s32.totalorder %v519, 15
        %vm1449 = vcmp.lt.s32.totalorder %v520, 15
        %vm1450 = vcmp.lt.s32.totalorder %v521, 15
        %vm1451 = vcmp.lt.s32.totalorder %v522, 15
        %vm1452 = vcmp.lt.s32.totalorder %v523, 15
        %vm1453 = vcmp.lt.s32.totalorder %v524, 15
        %vm1454 = vcmp.lt.s32.totalorder %v525, 15
        %vm1455 = vcmp.lt.s32.totalorder %v526, 15
        %vm1456 = vcmp.lt.s32.totalorder %v527, 15
        %vm1457 = vcmp.lt.s32.totalorder %v528, 15
        %vm1458 = vcmp.lt.s32.totalorder %v529, 15
        %vm1459 = vcmp.lt.s32.totalorder %v530, 15
        %vm1460 = vcmp.lt.s32.totalorder %v531, 15
        %vm1461 = vcmp.lt.s32.totalorder %v532, 15
        %vm1462 = vcmp.lt.s32.totalorder %v533, 15
        %vm1463 = vcmp.lt.s32.totalorder %v534, 15
        %vm1464 = vcmp.lt.s32.totalorder %v535, 15
        %vm1465 = vcmp.lt.s32.totalorder %v536, 15
        %vm1466 = vcmp.lt.s32.totalorder %v537, 15
        %vm1467 = vcmp.lt.s32.totalorder %v538, 15
        %vm1468 = vcmp.lt.s32.totalorder %v539, 15
        %vm1469 = vcmp.lt.s32.totalorder %v540, 15
        %vm1470 = vcmp.lt.s32.totalorder %v541, 15
        %vm1471 = vcmp.lt.s32.totalorder %v542, 15
        %vm1472 = vcmp.lt.s32.totalorder %v543, 15
        %vm1473 = vcmp.lt.s32.totalorder %v544, 15
        %vm1474 = vcmp.lt.s32.totalorder %v545, 15
        %vm1475 = vcmp.lt.s32.totalorder %v546, 15
        %v1476 = vsel %vm1444, 1, 0
        %v1477 = vsel %vm1445, 1, 0
        %v1478 = vsel %vm1446, 1, 0
        %v1479 = vsel %vm1447, 1, 0
        %v1480 = vsel %vm1448, 1, 0
        %v1481 = vsel %vm1449, 1, 0
        %v1482 = vsel %vm1450, 1, 0
        %v1483 = vsel %vm1451, 1, 0
        %v1484 = vsel %vm1452, 1, 0
        %v1485 = vsel %vm1453, 1, 0
        %v1486 = vsel %vm1454, 1, 0
        %v1487 = vsel %vm1455, 1, 0
        %v1488 = vsel %vm1456, 1, 0
        %v1489 = vsel %vm1457, 1, 0
        %v1490 = vsel %vm1458, 1, 0
        %v1491 = vsel %vm1459, 1, 0
        %v1492 = vsel %vm1460, 1, 0
        %v1493 = vsel %vm1461, 1, 0
        %v1494 = vsel %vm1462, 1, 0
        %v1495 = vsel %vm1463, 1, 0
        %v1496 = vsel %vm1464, 1, 0
        %v1497 = vsel %vm1465, 1, 0
        %v1498 = vsel %vm1466, 1, 0
        %v1499 = vsel %vm1467, 1, 0
        %v1500 = vsel %vm1468, 1, 0
        %v1501 = vsel %vm1469, 1, 0
        %v1502 = vsel %vm1470, 1, 0
        %v1503 = vsel %vm1471, 1, 0
        %v1504 = vsel %vm1472, 1, 0
        %v1505 = vsel %vm1473, 1, 0
        %v1506 = vsel %vm1474, 1, 0
        %v1507 = vsel %vm1475, 1, 0
        %vm1508 = vcmp.eq.s32.totalorder %v1476, 1
        %vm1509 = vcmp.eq.s32.totalorder %v1477, 1
        %vm1510 = vcmp.eq.s32.totalorder %v1478, 1
        %vm1511 = vcmp.eq.s32.totalorder %v1479, 1
        %vm1512 = vcmp.eq.s32.totalorder %v1480, 1
        %vm1513 = vcmp.eq.s32.totalorder %v1481, 1
        %vm1514 = vcmp.eq.s32.totalorder %v1482, 1
        %vm1515 = vcmp.eq.s32.totalorder %v1483, 1
        %vm1516 = vcmp.eq.s32.totalorder %v1484, 1
        %vm1517 = vcmp.eq.s32.totalorder %v1485, 1
        %vm1518 = vcmp.eq.s32.totalorder %v1486, 1
        %vm1519 = vcmp.eq.s32.totalorder %v1487, 1
        %vm1520 = vcmp.eq.s32.totalorder %v1488, 1
        %vm1521 = vcmp.eq.s32.totalorder %v1489, 1
        %vm1522 = vcmp.eq.s32.totalorder %v1490, 1
        %vm1523 = vcmp.eq.s32.totalorder %v1491, 1
        %vm1524 = vcmp.eq.s32.totalorder %v1492, 1
        %vm1525 = vcmp.eq.s32.totalorder %v1493, 1
        %vm1526 = vcmp.eq.s32.totalorder %v1494, 1
        %vm1527 = vcmp.eq.s32.totalorder %v1495, 1
        %vm1528 = vcmp.eq.s32.totalorder %v1496, 1
        %vm1529 = vcmp.eq.s32.totalorder %v1497, 1
        %vm1530 = vcmp.eq.s32.totalorder %v1498, 1
        %vm1531 = vcmp.eq.s32.totalorder %v1499, 1
        %vm1532 = vcmp.eq.s32.totalorder %v1500, 1
        %vm1533 = vcmp.eq.s32.totalorder %v1501, 1
        %vm1534 = vcmp.eq.s32.totalorder %v1502, 1
        %vm1535 = vcmp.eq.s32.totalorder %v1503, 1
        %vm1536 = vcmp.eq.s32.totalorder %v1504, 1
        %vm1537 = vcmp.eq.s32.totalorder %v1505, 1
        %vm1538 = vcmp.eq.s32.totalorder %v1506, 1
        %vm1539 = vcmp.eq.s32.totalorder %v1507, 1
        %v1540 = vsel %vm1508, %v787, 0.0
        %v1541 = vsel %vm1509, %v788, 0.0
        %v1542 = vsel %vm1510, %v789, 0.0
        %v1543 = vsel %vm1511, %v790, 0.0
        %v1544 = vsel %vm1512, %v791, 0.0
        %v1545 = vsel %vm1513, %v792, 0.0
        %v1546 = vsel %vm1514, %v793, 0.0
        %v1547 = vsel %vm1515, %v794, 0.0
        %v1548 = vsel %vm1516, %v795, 0.0
        %v1549 = vsel %vm1517, %v796, 0.0
        %v1550 = vsel %vm1518, %v797, 0.0
        %v1551 = vsel %vm1519, %v798, 0.0
        %v1552 = vsel %vm1520, %v799, 0.0
        %v1553 = vsel %vm1521, %v800, 0.0
        %v1554 = vsel %vm1522, %v801, 0.0
        %v1555 = vsel %vm1523, %v802, 0.0
        %v1556 = vsel %vm1524, %v803, 0.0
        %v1557 = vsel %vm1525, %v804, 0.0
        %v1558 = vsel %vm1526, %v805, 0.0
        %v1559 = vsel %vm1527, %v806, 0.0
        %v1560 = vsel %vm1528, %v807, 0.0
        %v1561 = vsel %vm1529, %v808, 0.0
        %v1562 = vsel %vm1530, %v809, 0.0
        %v1563 = vsel %vm1531, %v810, 0.0
        %v1564 = vsel %vm1532, %v811, 0.0
        %v1565 = vsel %vm1533, %v812, 0.0
        %v1566 = vsel %vm1534, %v813, 0.0
        %v1567 = vsel %vm1535, %v814, 0.0
        %v1568 = vsel %vm1536, %v815, 0.0
        %v1569 = vsel %vm1537, %v816, 0.0
        %v1570 = vsel %vm1538, %v785, 0.0
        %v1571 = vsel %vm1539, %v786, 0.0
        %s1572 = scalar_lea.vmem %s3, 40
        %v1573 = vld [vmem:[%s1572] sm:$0xf]
        %v1574 = vld [vmem:[%s1572 + $0x4] sm:$0xf]
        %v1575 = vld [vmem:[%s1572 + $0x8] sm:$0xf]
        %v1576 = vld [vmem:[%s1572 + $0xc] sm:$0xf]
        %v1577 = vld [vmem:[%s1572 + $0x10] sm:$0xf]
        %v1578 = vpack.c.bf16 %v1541, %v1540
        %v1579 = vpack.c.bf16 %v1543, %v1542
        %v1580 = vpack.c.bf16 %v1545, %v1544
        %v1581 = vpack.c.bf16 %v1547, %v1546
        %v1582 = vpack.c.bf16 %v1549, %v1548
        %v1583 = vpack.c.bf16 %v1551, %v1550
        %v1584 = vpack.c.bf16 %v1553, %v1552
        %v1585 = vpack.c.bf16 %v1555, %v1554
        %v1586 = vpack.c.bf16 %v1557, %v1556
        %v1587 = vpack.c.bf16 %v1559, %v1558
        %v1588 = vpack.c.bf16 %v1561, %v1560
        %v1589 = vpack.c.bf16 %v1563, %v1562
        %v1590 = vpack.c.bf16 %v1565, %v1564
        %v1591 = vpack.c.bf16 %v1567, %v1566
        %v1592 = vpack.c.bf16 %v1569, %v1568
        %v1593 = vpack.c.bf16 %v1571, %v1570
        %v1599 = vunpack.c.l.b16 %v1573
        %v1600 = vunpack.c.l.b16 %v1574
        %v1601 = vunpack.c.l.b16 %v1575
        %v1602 = vunpack.c.l.b16 %v1576
        %v1603 = vunpack.c.l.b16 %v1577
        %v1604 = vpack.c.b16 %v1600, %v1599
        %v1605 = vpack.c.b16 %v1602, %v1601
        %v1606 = vpack.c.b16 %v1603, %v1603
        %v1610 = vsel %vm1003, %v1578, 0
        %v1613 = vsel %vm1003, %v1579, 0
        %v1616 = vsel %vm1003, %v1580, 0
        %v1619 = vsel %vm1003, %v1581, 0
        %v1622 = vsel %vm1003, %v1582, 0
        %v1625 = vsel %vm1003, %v1583, 0
        %v1628 = vsel %vm1003, %v1584, 0
        %v1631 = vsel %vm1003, %v1585, 0
        %v1634 = vsel %vm1003, %v1586, 0
        %v1637 = vsel %vm1003, %v1587, 0
        %v1640 = vsel %vm1003, %v1588, 0
        %v1643 = vsel %vm1003, %v1589, 0
        %v1646 = vsel %vm1003, %v1590, 0
        %v1649 = vsel %vm1003, %v1591, 0
        %v1652 = vsel %vm1003, %v1592, 0
        %v1655 = vsel %vm1003, %v1593, 0
        %v1658 = vsel %vm1052, %v1606, 0
        %1660 = vmatprep.subr.bf16.mxu0 0
        %1661 = vmatpush1.bf16.msra.mxu0 0
        %1662 = vmatprep.subr.bf16.mxu0 0
        %1663 = vmatpush1.bf16.msra.mxu0 0
        %1664 = vmatprep.subr.bf16.mxu0 0
        %1665 = vmatpush1.bf16.msra.mxu0 0
        %1666 = vmatprep.subr.bf16.mxu0 0
        %1667 = vmatpush1.bf16.msra.mxu0 0
        %1668 = vmatprep.subr.bf16.mxu0 0
        %1669 = vmatpush1.bf16.msra.mxu0 0
        %1670 = vmatprep.subr.bf16.mxu0 0
        %1671 = vmatpush1.bf16.msra.mxu0 %v1658
        %1672 = vmatprep.subr.bf16.mxu0 0
        %1673 = vmatpush1.bf16.msra.mxu0 %v1605
        %1674 = vmatprep.subr.bf16.mxu0 0
        %1675 = vmatpush1.bf16.msra.mxu0 %v1604
        %1676 = vmatprep.subr.bf16.mxu0 0
        %1677 = vmatpush2.bf16.msra.mxu0 0
        %1678 = vmatprep.subr.bf16.mxu0 0
        %1679 = vmatpush2.bf16.msra.mxu0 0
        %1680 = vmatprep.subr.bf16.mxu0 0
        %1681 = vmatpush2.bf16.msra.mxu0 0
        %1682 = vmatprep.subr.bf16.mxu0 0
        %1683 = vmatpush2.bf16.msra.mxu0 0
        %1684 = vmatprep.subr.bf16.mxu0 0
        %1685 = vmatpush2.bf16.msra.mxu0 0
        %1686 = vmatprep.subr.bf16.mxu0 0
        %1687 = vmatpush2.bf16.msra.mxu0 0
        %1688 = vmatprep.subr.bf16.mxu0 0
        %1689 = vmatpush2.bf16.msra.mxu0 0
        %1690 = vmatprep.subr.bf16.mxu0 0
        %1691 = vmatpush2.bf16.msra.mxu0 0
        %1692 = vmatprep.mubr.bf16.mxu0 0
        %1693 = vmatmul.mubr.bf16.gmra.mxu0 %v1610
        %v1694 = vpop.f32.mrf.mxu0
        %v1695 = vadd.f32 0.0, %v1694
        %v1696 = vpop.f32.mrf.mxu0
        %v1697 = vpop.f32.mrf.mxu0
        %v1698 = vadd.f32 0.0, %v1697
        %v1699 = vpop.f32.mrf.mxu0
        %1700 = vmatprep.mubr.bf16.mxu0 0
        %1701 = vmatmul.mubr.bf16.gmra.mxu0 %v1613
        %v1702 = vpop.f32.mrf.mxu0
        %v1703 = vadd.f32 0.0, %v1702
        %v1704 = vpop.f32.mrf.mxu0
        %v1705 = vpop.f32.mrf.mxu0
        %v1706 = vadd.f32 0.0, %v1705
        %v1707 = vpop.f32.mrf.mxu0
        %1708 = vmatprep.mubr.bf16.mxu0 0
        %1709 = vmatmul.mubr.bf16.gmra.mxu0 %v1616
        %v1710 = vpop.f32.mrf.mxu0
        %v1711 = vadd.f32 0.0, %v1710
        %v1712 = vpop.f32.mrf.mxu0
        %v1713 = vpop.f32.mrf.mxu0
        %v1714 = vadd.f32 0.0, %v1713
        %v1715 = vpop.f32.mrf.mxu0
        %1716 = vmatprep.mubr.bf16.mxu0 0
        %1717 = vmatmul.mubr.bf16.gmra.mxu0 %v1619
        %v1718 = vpop.f32.mrf.mxu0
        %v1719 = vadd.f32 0.0, %v1718
        %v1720 = vpop.f32.mrf.mxu0
        %v1721 = vpop.f32.mrf.mxu0
        %v1722 = vadd.f32 0.0, %v1721
        %v1723 = vpop.f32.mrf.mxu0
        %1724 = vmatprep.mubr.bf16.mxu0 0
        %1725 = vmatmul.mubr.bf16.gmra.mxu0 %v1622
        %v1726 = vpop.f32.mrf.mxu0
        %v1727 = vadd.f32 0.0, %v1726
        %v1728 = vpop.f32.mrf.mxu0
        %v1729 = vpop.f32.mrf.mxu0
        %v1730 = vadd.f32 0.0, %v1729
        %v1731 = vpop.f32.mrf.mxu0
        %1732 = vmatprep.mubr.bf16.mxu0 0
        %1733 = vmatmul.mubr.bf16.gmra.mxu0 %v1625
        %v1734 = vpop.f32.mrf.mxu0
        %v1735 = vadd.f32 0.0, %v1734
        %v1736 = vpop.f32.mrf.mxu0
        %v1737 = vpop.f32.mrf.mxu0
        %v1738 = vadd.f32 0.0, %v1737
        %v1739 = vpop.f32.mrf.mxu0
        %1740 = vmatprep.mubr.bf16.mxu0 0
        %1741 = vmatmul.mubr.bf16.gmra.mxu0 %v1628
        %v1742 = vpop.f32.mrf.mxu0
        %v1743 = vadd.f32 0.0, %v1742
        %v1744 = vpop.f32.mrf.mxu0
        %v1745 = vpop.f32.mrf.mxu0
        %v1746 = vadd.f32 0.0, %v1745
        %v1747 = vpop.f32.mrf.mxu0
        %1748 = vmatprep.mubr.bf16.mxu0 0
        %1749 = vmatmul.mubr.bf16.gmra.mxu0 %v1631
        %v1750 = vpop.f32.mrf.mxu0
        %v1751 = vadd.f32 0.0, %v1750
        %v1752 = vpop.f32.mrf.mxu0
        %v1753 = vpop.f32.mrf.mxu0
        %v1754 = vadd.f32 0.0, %v1753
        %v1755 = vpop.f32.mrf.mxu0
        %1756 = vmatprep.mubr.bf16.mxu0 0
        %1757 = vmatmul.mubr.bf16.gmra.mxu0 %v1634
        %v1758 = vpop.f32.mrf.mxu0
        %v1759 = vadd.f32 0.0, %v1758
        %v1760 = vpop.f32.mrf.mxu0
        %v1761 = vpop.f32.mrf.mxu0
        %v1762 = vadd.f32 0.0, %v1761
        %v1763 = vpop.f32.mrf.mxu0
        %1764 = vmatprep.mubr.bf16.mxu0 0
        %1765 = vmatmul.mubr.bf16.gmra.mxu0 %v1637
        %v1766 = vpop.f32.mrf.mxu0
        %v1767 = vadd.f32 0.0, %v1766
        %v1768 = vpop.f32.mrf.mxu0
        %v1769 = vpop.f32.mrf.mxu0
        %v1770 = vadd.f32 0.0, %v1769
        %v1771 = vpop.f32.mrf.mxu0
        %1772 = vmatprep.mubr.bf16.mxu0 0
        %1773 = vmatmul.mubr.bf16.gmra.mxu0 %v1640
        %v1774 = vpop.f32.mrf.mxu0
        %v1775 = vadd.f32 0.0, %v1774
        %v1776 = vpop.f32.mrf.mxu0
        %v1777 = vpop.f32.mrf.mxu0
        %v1778 = vadd.f32 0.0, %v1777
        %v1779 = vpop.f32.mrf.mxu0
        %1780 = vmatprep.mubr.bf16.mxu0 0
        %1781 = vmatmul.mubr.bf16.gmra.mxu0 %v1643
        %v1782 = vpop.f32.mrf.mxu0
        %v1783 = vadd.f32 0.0, %v1782
        %v1784 = vpop.f32.mrf.mxu0
        %v1785 = vpop.f32.mrf.mxu0
        %v1786 = vadd.f32 0.0, %v1785
        %v1787 = vpop.f32.mrf.mxu0
        %1788 = vmatprep.mubr.bf16.mxu0 0
        %1789 = vmatmul.mubr.bf16.gmra.mxu0 %v1646
        %v1790 = vpop.f32.mrf.mxu0
        %v1791 = vadd.f32 0.0, %v1790
        %v1792 = vpop.f32.mrf.mxu0
        %v1793 = vpop.f32.mrf.mxu0
        %v1794 = vadd.f32 0.0, %v1793
        %v1795 = vpop.f32.mrf.mxu0
        %1796 = vmatprep.mubr.bf16.mxu0 0
        %1797 = vmatmul.mubr.bf16.gmra.mxu0 %v1649
        %v1798 = vpop.f32.mrf.mxu0
        %v1799 = vadd.f32 0.0, %v1798
        %v1800 = vpop.f32.mrf.mxu0
        %v1801 = vpop.f32.mrf.mxu0
        %v1802 = vadd.f32 0.0, %v1801
        %v1803 = vpop.f32.mrf.mxu0
        %1804 = vmatprep.mubr.bf16.mxu0 0
        %1805 = vmatmul.mubr.bf16.gmra.mxu0 %v1652
        %v1806 = vpop.f32.mrf.mxu0
        %v1807 = vadd.f32 0.0, %v1806
        %v1808 = vpop.f32.mrf.mxu0
        %v1809 = vpop.f32.mrf.mxu0
        %v1810 = vadd.f32 0.0, %v1809
        %v1811 = vpop.f32.mrf.mxu0
        %1812 = vmatprep.mubr.bf16.mxu0 0
        %1813 = vmatmul.mubr.bf16.gmra.mxu0 %v1655
        %v1814 = vpop.f32.mrf.mxu0
        %v1815 = vadd.f32 0.0, %v1814
        %v1816 = vpop.f32.mrf.mxu0
        %v1817 = vpop.f32.mrf.mxu0
        %v1818 = vadd.f32 0.0, %v1817
        %v1819 = vpop.f32.mrf.mxu0
        %1820 = vdwg.mxu0
        %v1821 = vadd.f32 %v1318, %v1695
        %v1822 = vadd.f32 %v1321, %v1698
        %v1823 = vadd.f32 %v1326, %v1703
        %v1824 = vadd.f32 %v1329, %v1706
        %v1825 = vadd.f32 %v1334, %v1711
        %v1826 = vadd.f32 %v1337, %v1714
        %v1827 = vadd.f32 %v1342, %v1719
        %v1828 = vadd.f32 %v1345, %v1722
        %v1829 = vadd.f32 %v1350, %v1727
        %v1830 = vadd.f32 %v1353, %v1730
        %v1831 = vadd.f32 %v1358, %v1735
        %v1832 = vadd.f32 %v1361, %v1738
        %v1833 = vadd.f32 %v1366, %v1743
        %v1834 = vadd.f32 %v1369, %v1746
        %v1835 = vadd.f32 %v1374, %v1751
        %v1836 = vadd.f32 %v1377, %v1754
        %v1837 = vadd.f32 %v1382, %v1759
        %v1838 = vadd.f32 %v1385, %v1762
        %v1839 = vadd.f32 %v1390, %v1767
        %v1840 = vadd.f32 %v1393, %v1770
        %v1841 = vadd.f32 %v1398, %v1775
        %v1842 = vadd.f32 %v1401, %v1778
        %v1843 = vadd.f32 %v1406, %v1783
        %v1844 = vadd.f32 %v1409, %v1786
        %v1845 = vadd.f32 %v1414, %v1791
        %v1846 = vadd.f32 %v1417, %v1794
        %v1847 = vadd.f32 %v1422, %v1799
        %v1848 = vadd.f32 %v1425, %v1802
        %v1849 = vadd.f32 %v1430, %v1807
        %v1850 = vadd.f32 %v1433, %v1810
        %v1851 = vadd.f32 %v1438, %v1815
        %v1852 = vadd.f32 %v1441, %v1818
        %v1853 = vld [vmem:[%s4] sm:$0x1]
        %v1855 = vlaneseq
        %v1856 = vshrl.u32 %v1855, 7
        %v1857 = vsub.s32 0, %v1856
        %v1858 = vrot.slane %v1853, %v1857
        %v1860 = vadd.f32 %v1821, %v1858
        %v1861 = vadd.f32 %v1822, %v1858
        %v1862 = vadd.f32 %v1823, %v1858
        %v1863 = vadd.f32 %v1824, %v1858
        %v1864 = vadd.f32 %v1825, %v1858
        %v1865 = vadd.f32 %v1826, %v1858
        %v1866 = vadd.f32 %v1827, %v1858
        %v1867 = vadd.f32 %v1828, %v1858
        %v1868 = vadd.f32 %v1829, %v1858
        %v1869 = vadd.f32 %v1830, %v1858
        %v1870 = vadd.f32 %v1831, %v1858
        %v1871 = vadd.f32 %v1832, %v1858
        %v1872 = vadd.f32 %v1833, %v1858
        %v1873 = vadd.f32 %v1834, %v1858
        %v1874 = vadd.f32 %v1835, %v1858
        %v1875 = vadd.f32 %v1836, %v1858
        %v1876 = vadd.f32 %v1837, %v1858
        %v1877 = vadd.f32 %v1838, %v1858
        %v1878 = vadd.f32 %v1839, %v1858
        %v1879 = vadd.f32 %v1840, %v1858
        %v1880 = vadd.f32 %v1841, %v1858
        %v1881 = vadd.f32 %v1842, %v1858
        %v1882 = vadd.f32 %v1843, %v1858
        %v1883 = vadd.f32 %v1844, %v1858
        %v1884 = vadd.f32 %v1845, %v1858
        %v1885 = vadd.f32 %v1846, %v1858
        %v1886 = vadd.f32 %v1847, %v1858
        %v1887 = vadd.f32 %v1848, %v1858
        %v1888 = vadd.f32 %v1849, %v1858
        %v1889 = vadd.f32 %v1850, %v1858
        %v1890 = vadd.f32 %v1851, %v1858
        %v1891 = vadd.f32 %v1852, %v1858
        %s1892 = scalar_lea.vmem %s5, 20
        %v1893 = vld [vmem:[%s1892] sm:$0xf]
        %v1894 = vld [vmem:[%s1892 + $0x4] sm:$0xf]
        %v1895 = vld [vmem:[%s1892 + $0x8] sm:$0xf]
        %v1896 = vld [vmem:[%s1892 + $0xc] sm:$0xf]
        %v1897 = vld [vmem:[%s1892 + $0x10] sm:$0xf]
        %v1898 = vpack.c.bf16 %v1861, %v1860
        %v1899 = vpack.c.bf16 %v1863, %v1862
        %v1900 = vpack.c.bf16 %v1865, %v1864
        %v1901 = vpack.c.bf16 %v1867, %v1866
        %v1902 = vpack.c.bf16 %v1869, %v1868
        %v1903 = vpack.c.bf16 %v1871, %v1870
        %v1904 = vpack.c.bf16 %v1873, %v1872
        %v1905 = vpack.c.bf16 %v1875, %v1874
        %v1906 = vpack.c.bf16 %v1877, %v1876
        %v1907 = vpack.c.bf16 %v1879, %v1878
        %v1908 = vpack.c.bf16 %v1881, %v1880
        %v1909 = vpack.c.bf16 %v1883, %v1882
        %v1910 = vpack.c.bf16 %v1885, %v1884
        %v1911 = vpack.c.bf16 %v1887, %v1886
        %v1912 = vpack.c.bf16 %v1889, %v1888
        %v1913 = vpack.c.bf16 %v1891, %v1890
        %v1914 = vrot.slane %v1860, 7
        %v1915 = vrot.slane %v1861, 7
        %v1916 = vrot.slane %v1862, 7
        %v1917 = vrot.slane %v1863, 7
        %v1918 = vrot.slane %v1864, 7
        %v1919 = vrot.slane %v1865, 7
        %v1920 = vrot.slane %v1866, 7
        %v1921 = vrot.slane %v1867, 7
        %v1922 = vrot.slane %v1868, 7
        %v1923 = vrot.slane %v1869, 7
        %v1924 = vrot.slane %v1870, 7
        %v1925 = vrot.slane %v1871, 7
        %v1926 = vrot.slane %v1872, 7
        %v1927 = vrot.slane %v1873, 7
        %v1928 = vrot.slane %v1874, 7
        %v1929 = vrot.slane %v1875, 7
        %v1930 = vrot.slane %v1876, 7
        %v1931 = vrot.slane %v1877, 7
        %v1932 = vrot.slane %v1878, 7
        %v1933 = vrot.slane %v1879, 7
        %v1934 = vrot.slane %v1880, 7
        %v1935 = vrot.slane %v1881, 7
        %v1936 = vrot.slane %v1882, 7
        %v1937 = vrot.slane %v1883, 7
        %v1938 = vrot.slane %v1884, 7
        %v1939 = vrot.slane %v1885, 7
        %v1940 = vrot.slane %v1886, 7
        %v1941 = vrot.slane %v1887, 7
        %v1942 = vrot.slane %v1888, 7
        %v1943 = vrot.slane %v1889, 7
        %v1944 = vrot.slane %v1890, 7
        %v1945 = vrot.slane %v1891, 7
        %vm1946 = vcmp.lt.s32.totalorder %v419, 1
        %v1947 = vsel %vm1946, %v1944, %v1945
        %v1948 = vsel %vm1946, %v1943, %v1944
        %v1949 = vsel %vm1946, %v1942, %v1943
        %v1950 = vsel %vm1946, %v1941, %v1942
        %v1951 = vsel %vm1946, %v1940, %v1941
        %v1952 = vsel %vm1946, %v1939, %v1940
        %v1953 = vsel %vm1946, %v1938, %v1939
        %v1954 = vsel %vm1946, %v1937, %v1938
        %v1955 = vsel %vm1946, %v1936, %v1937
        %v1956 = vsel %vm1946, %v1935, %v1936
        %v1957 = vsel %vm1946, %v1934, %v1935
        %v1958 = vsel %vm1946, %v1933, %v1934
        %v1959 = vsel %vm1946, %v1932, %v1933
        %v1960 = vsel %vm1946, %v1931, %v1932
        %v1961 = vsel %vm1946, %v1930, %v1931
        %v1962 = vsel %vm1946, %v1929, %v1930
        %v1963 = vsel %vm1946, %v1928, %v1929
        %v1964 = vsel %vm1946, %v1927, %v1928
        %v1965 = vsel %vm1946, %v1926, %v1927
        %v1966 = vsel %vm1946, %v1925, %v1926
        %v1967 = vsel %vm1946, %v1924, %v1925
        %v1968 = vsel %vm1946, %v1923, %v1924
        %v1969 = vsel %vm1946, %v1922, %v1923
        %v1970 = vsel %vm1946, %v1921, %v1922
        %v1971 = vsel %vm1946, %v1920, %v1921
        %v1972 = vsel %vm1946, %v1919, %v1920
        %v1973 = vsel %vm1946, %v1918, %v1919
        %v1974 = vsel %vm1946, %v1917, %v1918
        %v1975 = vsel %vm1946, %v1916, %v1917
        %v1976 = vsel %vm1946, %v1915, %v1916
        %v1977 = vsel %vm1946, %v1914, %v1915
        %v1978 = vsel %vm1946, %v1945, %v1914
        %vm1979 = vcmp.ge.s32.totalorder %v451, 1
        %vm1980 = vcmp.ge.s32.totalorder %v452, 1
        %vm1981 = vcmp.ge.s32.totalorder %v453, 1
        %vm1982 = vcmp.ge.s32.totalorder %v454, 1
        %vm1983 = vcmp.ge.s32.totalorder %v455, 1
        %vm1984 = vcmp.ge.s32.totalorder %v456, 1
        %vm1985 = vcmp.ge.s32.totalorder %v457, 1
        %vm1986 = vcmp.ge.s32.totalorder %v458, 1
        %vm1987 = vcmp.ge.s32.totalorder %v459, 1
        %vm1988 = vcmp.ge.s32.totalorder %v460, 1
        %vm1989 = vcmp.ge.s32.totalorder %v461, 1
        %vm1990 = vcmp.ge.s32.totalorder %v462, 1
        %vm1991 = vcmp.ge.s32.totalorder %v463, 1
        %vm1992 = vcmp.ge.s32.totalorder %v464, 1
        %vm1993 = vcmp.ge.s32.totalorder %v465, 1
        %vm1994 = vcmp.ge.s32.totalorder %v466, 1
        %vm1995 = vcmp.ge.s32.totalorder %v467, 1
        %vm1996 = vcmp.ge.s32.totalorder %v468, 1
        %vm1997 = vcmp.ge.s32.totalorder %v469, 1
        %vm1998 = vcmp.ge.s32.totalorder %v470, 1
        %vm1999 = vcmp.ge.s32.totalorder %v471, 1
        %vm2000 = vcmp.ge.s32.totalorder %v472, 1
        %vm2001 = vcmp.ge.s32.totalorder %v473, 1
        %vm2002 = vcmp.ge.s32.totalorder %v474, 1
        %vm2003 = vcmp.ge.s32.totalorder %v475, 1
        %vm2004 = vcmp.ge.s32.totalorder %v476, 1
        %vm2005 = vcmp.ge.s32.totalorder %v477, 1
        %vm2006 = vcmp.ge.s32.totalorder %v478, 1
        %vm2007 = vcmp.ge.s32.totalorder %v479, 1
        %vm2008 = vcmp.ge.s32.totalorder %v480, 1
        %vm2009 = vcmp.ge.s32.totalorder %v481, 1
        %vm2010 = vcmp.ge.s32.totalorder %v482, 1
        %v2011 = vsel %vm1979, 1, 0
        %v2012 = vsel %vm1980, 1, 0
        %v2013 = vsel %vm1981, 1, 0
        %v2014 = vsel %vm1982, 1, 0
        %v2015 = vsel %vm1983, 1, 0
        %v2016 = vsel %vm1984, 1, 0
        %v2017 = vsel %vm1985, 1, 0
        %v2018 = vsel %vm1986, 1, 0
        %v2019 = vsel %vm1987, 1, 0
        %v2020 = vsel %vm1988, 1, 0
        %v2021 = vsel %vm1989, 1, 0
        %v2022 = vsel %vm1990, 1, 0
        %v2023 = vsel %vm1991, 1, 0
        %v2024 = vsel %vm1992, 1, 0
        %v2025 = vsel %vm1993, 1, 0
        %v2026 = vsel %vm1994, 1, 0
        %v2027 = vsel %vm1995, 1, 0
        %v2028 = vsel %vm1996, 1, 0
        %v2029 = vsel %vm1997, 1, 0
        %v2030 = vsel %vm1998, 1, 0
        %v2031 = vsel %vm1999, 1, 0
        %v2032 = vsel %vm2000, 1, 0
        %v2033 = vsel %vm2001, 1, 0
        %v2034 = vsel %vm2002, 1, 0
        %v2035 = vsel %vm2003, 1, 0
        %v2036 = vsel %vm2004, 1, 0
        %v2037 = vsel %vm2005, 1, 0
        %v2038 = vsel %vm2006, 1, 0
        %v2039 = vsel %vm2007, 1, 0
        %v2040 = vsel %vm2008, 1, 0
        %v2041 = vsel %vm2009, 1, 0
        %v2042 = vsel %vm2010, 1, 0
        %vm2043 = vcmp.eq.s32.totalorder %v2011, 1
        %vm2044 = vcmp.eq.s32.totalorder %v2012, 1
        %vm2045 = vcmp.eq.s32.totalorder %v2013, 1
        %vm2046 = vcmp.eq.s32.totalorder %v2014, 1
        %vm2047 = vcmp.eq.s32.totalorder %v2015, 1
        %vm2048 = vcmp.eq.s32.totalorder %v2016, 1
        %vm2049 = vcmp.eq.s32.totalorder %v2017, 1
        %vm2050 = vcmp.eq.s32.totalorder %v2018, 1
        %vm2051 = vcmp.eq.s32.totalorder %v2019, 1
        %vm2052 = vcmp.eq.s32.totalorder %v2020, 1
        %vm2053 = vcmp.eq.s32.totalorder %v2021, 1
        %vm2054 = vcmp.eq.s32.totalorder %v2022, 1
        %vm2055 = vcmp.eq.s32.totalorder %v2023, 1
        %vm2056 = vcmp.eq.s32.totalorder %v2024, 1
        %vm2057 = vcmp.eq.s32.totalorder %v2025, 1
        %vm2058 = vcmp.eq.s32.totalorder %v2026, 1
        %vm2059 = vcmp.eq.s32.totalorder %v2027, 1
        %vm2060 = vcmp.eq.s32.totalorder %v2028, 1
        %vm2061 = vcmp.eq.s32.totalorder %v2029, 1
        %vm2062 = vcmp.eq.s32.totalorder %v2030, 1
        %vm2063 = vcmp.eq.s32.totalorder %v2031, 1
        %vm2064 = vcmp.eq.s32.totalorder %v2032, 1
        %vm2065 = vcmp.eq.s32.totalorder %v2033, 1
        %vm2066 = vcmp.eq.s32.totalorder %v2034, 1
        %vm2067 = vcmp.eq.s32.totalorder %v2035, 1
        %vm2068 = vcmp.eq.s32.totalorder %v2036, 1
        %vm2069 = vcmp.eq.s32.totalorder %v2037, 1
        %vm2070 = vcmp.eq.s32.totalorder %v2038, 1
        %vm2071 = vcmp.eq.s32.totalorder %v2039, 1
        %vm2072 = vcmp.eq.s32.totalorder %v2040, 1
        %vm2073 = vcmp.eq.s32.totalorder %v2041, 1
        %vm2074 = vcmp.eq.s32.totalorder %v2042, 1
        %v2075 = vsel %vm2043, %v1978, 0.0
        %v2076 = vsel %vm2044, %v1977, 0.0
        %v2077 = vsel %vm2045, %v1976, 0.0
        %v2078 = vsel %vm2046, %v1975, 0.0
        %v2079 = vsel %vm2047, %v1974, 0.0
        %v2080 = vsel %vm2048, %v1973, 0.0
        %v2081 = vsel %vm2049, %v1972, 0.0
        %v2082 = vsel %vm2050, %v1971, 0.0
        %v2083 = vsel %vm2051, %v1970, 0.0
        %v2084 = vsel %vm2052, %v1969, 0.0
        %v2085 = vsel %vm2053, %v1968, 0.0
        %v2086 = vsel %vm2054, %v1967, 0.0
        %v2087 = vsel %vm2055, %v1966, 0.0
        %v2088 = vsel %vm2056, %v1965, 0.0
        %v2089 = vsel %vm2057, %v1964, 0.0
        %v2090 = vsel %vm2058, %v1963, 0.0
        %v2091 = vsel %vm2059, %v1962, 0.0
        %v2092 = vsel %vm2060, %v1961, 0.0
        %v2093 = vsel %vm2061, %v1960, 0.0
        %v2094 = vsel %vm2062, %v1959, 0.0
        %v2095 = vsel %vm2063, %v1958, 0.0
        %v2096 = vsel %vm2064, %v1957, 0.0
        %v2097 = vsel %vm2065, %v1956, 0.0
        %v2098 = vsel %vm2066, %v1955, 0.0
        %v2099 = vsel %vm2067, %v1954, 0.0
        %v2100 = vsel %vm2068, %v1953, 0.0
        %v2101 = vsel %vm2069, %v1952, 0.0
        %v2102 = vsel %vm2070, %v1951, 0.0
        %v2103 = vsel %vm2071, %v1950, 0.0
        %v2104 = vsel %vm2072, %v1949, 0.0
        %v2105 = vsel %vm2073, %v1948, 0.0
        %v2106 = vsel %vm2074, %v1947, 0.0
        %v2107 = vld [vmem:[%s5] sm:$0xf]
        %v2108 = vld [vmem:[%s5 + $0x4] sm:$0xf]
        %v2109 = vld [vmem:[%s5 + $0x8] sm:$0xf]
        %v2110 = vld [vmem:[%s5 + $0xc] sm:$0xf]
        %v2111 = vld [vmem:[%s5 + $0x10] sm:$0xf]
        %v2112 = vpack.c.bf16 %v2076, %v2075
        %v2113 = vpack.c.bf16 %v2078, %v2077
        %v2114 = vpack.c.bf16 %v2080, %v2079
        %v2115 = vpack.c.bf16 %v2082, %v2081
        %v2116 = vpack.c.bf16 %v2084, %v2083
        %v2117 = vpack.c.bf16 %v2086, %v2085
        %v2118 = vpack.c.bf16 %v2088, %v2087
        %v2119 = vpack.c.bf16 %v2090, %v2089
        %v2120 = vpack.c.bf16 %v2092, %v2091
        %v2121 = vpack.c.bf16 %v2094, %v2093
        %v2122 = vpack.c.bf16 %v2096, %v2095
        %v2123 = vpack.c.bf16 %v2098, %v2097
        %v2124 = vpack.c.bf16 %v2100, %v2099
        %v2125 = vpack.c.bf16 %v2102, %v2101
        %v2126 = vpack.c.bf16 %v2104, %v2103
        %v2127 = vpack.c.bf16 %v2106, %v2105
        %v2133 = vunpack.c.l.b16 %v2107
        %v2134 = vunpack.c.l.b16 %v2108
        %v2135 = vunpack.c.l.b16 %v2109
        %v2136 = vunpack.c.l.b16 %v2110
        %v2137 = vunpack.c.l.b16 %v2111
        %v2138 = vpack.c.b16 %v2134, %v2133
        %v2139 = vpack.c.b16 %v2136, %v2135
        %v2140 = vpack.c.b16 %v2137, %v2137
        %v2144 = vsel %vm1003, %v2112, 0
        %v2147 = vsel %vm1003, %v2113, 0
        %v2150 = vsel %vm1003, %v2114, 0
        %v2153 = vsel %vm1003, %v2115, 0
        %v2156 = vsel %vm1003, %v2116, 0
        %v2159 = vsel %vm1003, %v2117, 0
        %v2162 = vsel %vm1003, %v2118, 0
        %v2165 = vsel %vm1003, %v2119, 0
        %v2168 = vsel %vm1003, %v2120, 0
        %v2171 = vsel %vm1003, %v2121, 0
        %v2174 = vsel %vm1003, %v2122, 0
        %v2177 = vsel %vm1003, %v2123, 0
        %v2180 = vsel %vm1003, %v2124, 0
        %v2183 = vsel %vm1003, %v2125, 0
        %v2186 = vsel %vm1003, %v2126, 0
        %v2189 = vsel %vm1003, %v2127, 0
        %v2192 = vsel %vm1052, %v2140, 0
        %2194 = vmatprep.subr.bf16.mxu0 0
        %2195 = vmatpush1.bf16.msra.mxu0 0
        %2196 = vmatprep.subr.bf16.mxu0 0
        %2197 = vmatpush1.bf16.msra.mxu0 0
        %2198 = vmatprep.subr.bf16.mxu0 0
        %2199 = vmatpush1.bf16.msra.mxu0 0
        %2200 = vmatprep.subr.bf16.mxu0 0
        %2201 = vmatpush1.bf16.msra.mxu0 0
        %2202 = vmatprep.subr.bf16.mxu0 0
        %2203 = vmatpush1.bf16.msra.mxu0 0
        %2204 = vmatprep.subr.bf16.mxu0 0
        %2205 = vmatpush1.bf16.msra.mxu0 %v2192
        %2206 = vmatprep.subr.bf16.mxu0 0
        %2207 = vmatpush1.bf16.msra.mxu0 %v2139
        %2208 = vmatprep.subr.bf16.mxu0 0
        %2209 = vmatpush1.bf16.msra.mxu0 %v2138
        %2210 = vmatprep.subr.bf16.mxu0 0
        %2211 = vmatpush2.bf16.msra.mxu0 0
        %2212 = vmatprep.subr.bf16.mxu0 0
        %2213 = vmatpush2.bf16.msra.mxu0 0
        %2214 = vmatprep.subr.bf16.mxu0 0
        %2215 = vmatpush2.bf16.msra.mxu0 0
        %2216 = vmatprep.subr.bf16.mxu0 0
        %2217 = vmatpush2.bf16.msra.mxu0 0
        %2218 = vmatprep.subr.bf16.mxu0 0
        %2219 = vmatpush2.bf16.msra.mxu0 0
        %2220 = vmatprep.subr.bf16.mxu0 0
        %2221 = vmatpush2.bf16.msra.mxu0 0
        %2222 = vmatprep.subr.bf16.mxu0 0
        %2223 = vmatpush2.bf16.msra.mxu0 0
        %2224 = vmatprep.subr.bf16.mxu0 0
        %2225 = vmatpush2.bf16.msra.mxu0 0
        %2226 = vmatprep.mubr.bf16.mxu0 0
        %2227 = vmatmul.mubr.bf16.gmra.mxu0 %v2144
        %v2228 = vpop.f32.mrf.mxu0
        %v2229 = vadd.f32 0.0, %v2228
        %v2230 = vpop.f32.mrf.mxu0
        %v2231 = vpop.f32.mrf.mxu0
        %v2232 = vadd.f32 0.0, %v2231
        %v2233 = vpop.f32.mrf.mxu0
        %2234 = vmatprep.mubr.bf16.mxu0 0
        %2235 = vmatmul.mubr.bf16.gmra.mxu0 %v2147
        %v2236 = vpop.f32.mrf.mxu0
        %v2237 = vadd.f32 0.0, %v2236
        %v2238 = vpop.f32.mrf.mxu0
        %v2239 = vpop.f32.mrf.mxu0
        %v2240 = vadd.f32 0.0, %v2239
        %v2241 = vpop.f32.mrf.mxu0
        %2242 = vmatprep.mubr.bf16.mxu0 0
        %2243 = vmatmul.mubr.bf16.gmra.mxu0 %v2150
        %v2244 = vpop.f32.mrf.mxu0
        %v2245 = vadd.f32 0.0, %v2244
        %v2246 = vpop.f32.mrf.mxu0
        %v2247 = vpop.f32.mrf.mxu0
        %v2248 = vadd.f32 0.0, %v2247
        %v2249 = vpop.f32.mrf.mxu0
        %2250 = vmatprep.mubr.bf16.mxu0 0
        %2251 = vmatmul.mubr.bf16.gmra.mxu0 %v2153
        %v2252 = vpop.f32.mrf.mxu0
        %v2253 = vadd.f32 0.0, %v2252
        %v2254 = vpop.f32.mrf.mxu0
        %v2255 = vpop.f32.mrf.mxu0
        %v2256 = vadd.f32 0.0, %v2255
        %v2257 = vpop.f32.mrf.mxu0
        %2258 = vmatprep.mubr.bf16.mxu0 0
        %2259 = vmatmul.mubr.bf16.gmra.mxu0 %v2156
        %v2260 = vpop.f32.mrf.mxu0
        %v2261 = vadd.f32 0.0, %v2260
        %v2262 = vpop.f32.mrf.mxu0
        %v2263 = vpop.f32.mrf.mxu0
        %v2264 = vadd.f32 0.0, %v2263
        %v2265 = vpop.f32.mrf.mxu0
        %2266 = vmatprep.mubr.bf16.mxu0 0
        %2267 = vmatmul.mubr.bf16.gmra.mxu0 %v2159
        %v2268 = vpop.f32.mrf.mxu0
        %v2269 = vadd.f32 0.0, %v2268
        %v2270 = vpop.f32.mrf.mxu0
        %v2271 = vpop.f32.mrf.mxu0
        %v2272 = vadd.f32 0.0, %v2271
        %v2273 = vpop.f32.mrf.mxu0
        %2274 = vmatprep.mubr.bf16.mxu0 0
        %2275 = vmatmul.mubr.bf16.gmra.mxu0 %v2162
        %v2276 = vpop.f32.mrf.mxu0
        %v2277 = vadd.f32 0.0, %v2276
        %v2278 = vpop.f32.mrf.mxu0
        %v2279 = vpop.f32.mrf.mxu0
        %v2280 = vadd.f32 0.0, %v2279
        %v2281 = vpop.f32.mrf.mxu0
        %2282 = vmatprep.mubr.bf16.mxu0 0
        %2283 = vmatmul.mubr.bf16.gmra.mxu0 %v2165
        %v2284 = vpop.f32.mrf.mxu0
        %v2285 = vadd.f32 0.0, %v2284
        %v2286 = vpop.f32.mrf.mxu0
        %v2287 = vpop.f32.mrf.mxu0
        %v2288 = vadd.f32 0.0, %v2287
        %v2289 = vpop.f32.mrf.mxu0
        %2290 = vmatprep.mubr.bf16.mxu0 0
        %2291 = vmatmul.mubr.bf16.gmra.mxu0 %v2168
        %v2292 = vpop.f32.mrf.mxu0
        %v2293 = vadd.f32 0.0, %v2292
        %v2294 = vpop.f32.mrf.mxu0
        %v2295 = vpop.f32.mrf.mxu0
        %v2296 = vadd.f32 0.0, %v2295
        %v2297 = vpop.f32.mrf.mxu0
        %2298 = vmatprep.mubr.bf16.mxu0 0
        %2299 = vmatmul.mubr.bf16.gmra.mxu0 %v2171
        %v2300 = vpop.f32.mrf.mxu0
        %v2301 = vadd.f32 0.0, %v2300
        %v2302 = vpop.f32.mrf.mxu0
        %v2303 = vpop.f32.mrf.mxu0
        %v2304 = vadd.f32 0.0, %v2303
        %v2305 = vpop.f32.mrf.mxu0
        %2306 = vmatprep.mubr.bf16.mxu0 0
        %2307 = vmatmul.mubr.bf16.gmra.mxu0 %v2174
        %v2308 = vpop.f32.mrf.mxu0
        %v2309 = vadd.f32 0.0, %v2308
        %v2310 = vpop.f32.mrf.mxu0
        %v2311 = vpop.f32.mrf.mxu0
        %v2312 = vadd.f32 0.0, %v2311
        %v2313 = vpop.f32.mrf.mxu0
        %2314 = vmatprep.mubr.bf16.mxu0 0
        %2315 = vmatmul.mubr.bf16.gmra.mxu0 %v2177
        %v2316 = vpop.f32.mrf.mxu0
        %v2317 = vadd.f32 0.0, %v2316
        %v2318 = vpop.f32.mrf.mxu0
        %v2319 = vpop.f32.mrf.mxu0
        %v2320 = vadd.f32 0.0, %v2319
        %v2321 = vpop.f32.mrf.mxu0
        %2322 = vmatprep.mubr.bf16.mxu0 0
        %2323 = vmatmul.mubr.bf16.gmra.mxu0 %v2180
        %v2324 = vpop.f32.mrf.mxu0
        %v2325 = vadd.f32 0.0, %v2324
        %v2326 = vpop.f32.mrf.mxu0
        %v2327 = vpop.f32.mrf.mxu0
        %v2328 = vadd.f32 0.0, %v2327
        %v2329 = vpop.f32.mrf.mxu0
        %2330 = vmatprep.mubr.bf16.mxu0 0
        %2331 = vmatmul.mubr.bf16.gmra.mxu0 %v2183
        %v2332 = vpop.f32.mrf.mxu0
        %v2333 = vadd.f32 0.0, %v2332
        %v2334 = vpop.f32.mrf.mxu0
        %v2335 = vpop.f32.mrf.mxu0
        %v2336 = vadd.f32 0.0, %v2335
        %v2337 = vpop.f32.mrf.mxu0
        %2338 = vmatprep.mubr.bf16.mxu0 0
        %2339 = vmatmul.mubr.bf16.gmra.mxu0 %v2186
        %v2340 = vpop.f32.mrf.mxu0
        %v2341 = vadd.f32 0.0, %v2340
        %v2342 = vpop.f32.mrf.mxu0
        %v2343 = vpop.f32.mrf.mxu0
        %v2344 = vadd.f32 0.0, %v2343
        %v2345 = vpop.f32.mrf.mxu0
        %2346 = vmatprep.mubr.bf16.mxu0 0
        %2347 = vmatmul.mubr.bf16.gmra.mxu0 %v2189
        %v2348 = vpop.f32.mrf.mxu0
        %v2349 = vadd.f32 0.0, %v2348
        %v2350 = vpop.f32.mrf.mxu0
        %v2351 = vpop.f32.mrf.mxu0
        %v2352 = vadd.f32 0.0, %v2351
        %v2353 = vpop.f32.mrf.mxu0
        %2354 = vdwg.mxu0
        %v2360 = vunpack.c.l.b16 %v1893
        %v2361 = vunpack.c.l.b16 %v1894
        %v2362 = vunpack.c.l.b16 %v1895
        %v2363 = vunpack.c.l.b16 %v1896
        %v2364 = vunpack.c.l.b16 %v1897
        %v2365 = vpack.c.b16 %v2361, %v2360
        %v2366 = vpack.c.b16 %v2363, %v2362
        %v2367 = vpack.c.b16 %v2364, %v2364
        %v2371 = vsel %vm1003, %v1898, 0
        %v2374 = vsel %vm1003, %v1899, 0
        %v2377 = vsel %vm1003, %v1900, 0
        %v2380 = vsel %vm1003, %v1901, 0
        %v2383 = vsel %vm1003, %v1902, 0
        %v2386 = vsel %vm1003, %v1903, 0
        %v2389 = vsel %vm1003, %v1904, 0
        %v2392 = vsel %vm1003, %v1905, 0
        %v2395 = vsel %vm1003, %v1906, 0
        %v2398 = vsel %vm1003, %v1907, 0
        %v2401 = vsel %vm1003, %v1908, 0
        %v2404 = vsel %vm1003, %v1909, 0
        %v2407 = vsel %vm1003, %v1910, 0
        %v2410 = vsel %vm1003, %v1911, 0
        %v2413 = vsel %vm1003, %v1912, 0
        %v2416 = vsel %vm1003, %v1913, 0
        %v2419 = vsel %vm1052, %v2367, 0
        %2421 = vmatprep.subr.bf16.mxu0 0
        %2422 = vmatpush1.bf16.msra.mxu0 0
        %2423 = vmatprep.subr.bf16.mxu0 0
        %2424 = vmatpush1.bf16.msra.mxu0 0
        %2425 = vmatprep.subr.bf16.mxu0 0
        %2426 = vmatpush1.bf16.msra.mxu0 0
        %2427 = vmatprep.subr.bf16.mxu0 0
        %2428 = vmatpush1.bf16.msra.mxu0 0
        %2429 = vmatprep.subr.bf16.mxu0 0
        %2430 = vmatpush1.bf16.msra.mxu0 0
        %2431 = vmatprep.subr.bf16.mxu0 0
        %2432 = vmatpush1.bf16.msra.mxu0 %v2419
        %2433 = vmatprep.subr.bf16.mxu0 0
        %2434 = vmatpush1.bf16.msra.mxu0 %v2366
        %2435 = vmatprep.subr.bf16.mxu0 0
        %2436 = vmatpush1.bf16.msra.mxu0 %v2365
        %2437 = vmatprep.subr.bf16.mxu0 0
        %2438 = vmatpush2.bf16.msra.mxu0 0
        %2439 = vmatprep.subr.bf16.mxu0 0
        %2440 = vmatpush2.bf16.msra.mxu0 0
        %2441 = vmatprep.subr.bf16.mxu0 0
        %2442 = vmatpush2.bf16.msra.mxu0 0
        %2443 = vmatprep.subr.bf16.mxu0 0
        %2444 = vmatpush2.bf16.msra.mxu0 0
        %2445 = vmatprep.subr.bf16.mxu0 0
        %2446 = vmatpush2.bf16.msra.mxu0 0
        %2447 = vmatprep.subr.bf16.mxu0 0
        %2448 = vmatpush2.bf16.msra.mxu0 0
        %2449 = vmatprep.subr.bf16.mxu0 0
        %2450 = vmatpush2.bf16.msra.mxu0 0
        %2451 = vmatprep.subr.bf16.mxu0 0
        %2452 = vmatpush2.bf16.msra.mxu0 0
        %2453 = vmatprep.mubr.bf16.mxu0 0
        %2454 = vmatmul.mubr.bf16.gmra.mxu0 %v2371
        %v2455 = vpop.f32.mrf.mxu0
        %v2456 = vadd.f32 %v2229, %v2455
        %v2457 = vpop.f32.mrf.mxu0
        %v2458 = vpop.f32.mrf.mxu0
        %v2459 = vadd.f32 %v2232, %v2458
        %v2460 = vpop.f32.mrf.mxu0
        %2461 = vmatprep.mubr.bf16.mxu0 0
        %2462 = vmatmul.mubr.bf16.gmra.mxu0 %v2374
        %v2463 = vpop.f32.mrf.mxu0
        %v2464 = vadd.f32 %v2237, %v2463
        %v2465 = vpop.f32.mrf.mxu0
        %v2466 = vpop.f32.mrf.mxu0
        %v2467 = vadd.f32 %v2240, %v2466
        %v2468 = vpop.f32.mrf.mxu0
        %2469 = vmatprep.mubr.bf16.mxu0 0
        %2470 = vmatmul.mubr.bf16.gmra.mxu0 %v2377
        %v2471 = vpop.f32.mrf.mxu0
        %v2472 = vadd.f32 %v2245, %v2471
        %v2473 = vpop.f32.mrf.mxu0
        %v2474 = vpop.f32.mrf.mxu0
        %v2475 = vadd.f32 %v2248, %v2474
        %v2476 = vpop.f32.mrf.mxu0
        %2477 = vmatprep.mubr.bf16.mxu0 0
        %2478 = vmatmul.mubr.bf16.gmra.mxu0 %v2380
        %v2479 = vpop.f32.mrf.mxu0
        %v2480 = vadd.f32 %v2253, %v2479
        %v2481 = vpop.f32.mrf.mxu0
        %v2482 = vpop.f32.mrf.mxu0
        %v2483 = vadd.f32 %v2256, %v2482
        %v2484 = vpop.f32.mrf.mxu0
        %2485 = vmatprep.mubr.bf16.mxu0 0
        %2486 = vmatmul.mubr.bf16.gmra.mxu0 %v2383
        %v2487 = vpop.f32.mrf.mxu0
        %v2488 = vadd.f32 %v2261, %v2487
        %v2489 = vpop.f32.mrf.mxu0
        %v2490 = vpop.f32.mrf.mxu0
        %v2491 = vadd.f32 %v2264, %v2490
        %v2492 = vpop.f32.mrf.mxu0
        %2493 = vmatprep.mubr.bf16.mxu0 0
        %2494 = vmatmul.mubr.bf16.gmra.mxu0 %v2386
        %v2495 = vpop.f32.mrf.mxu0
        %v2496 = vadd.f32 %v2269, %v2495
        %v2497 = vpop.f32.mrf.mxu0
        %v2498 = vpop.f32.mrf.mxu0
        %v2499 = vadd.f32 %v2272, %v2498
        %v2500 = vpop.f32.mrf.mxu0
        %2501 = vmatprep.mubr.bf16.mxu0 0
        %2502 = vmatmul.mubr.bf16.gmra.mxu0 %v2389
        %v2503 = vpop.f32.mrf.mxu0
        %v2504 = vadd.f32 %v2277, %v2503
        %v2505 = vpop.f32.mrf.mxu0
        %v2506 = vpop.f32.mrf.mxu0
        %v2507 = vadd.f32 %v2280, %v2506
        %v2508 = vpop.f32.mrf.mxu0
        %2509 = vmatprep.mubr.bf16.mxu0 0
        %2510 = vmatmul.mubr.bf16.gmra.mxu0 %v2392
        %v2511 = vpop.f32.mrf.mxu0
        %v2512 = vadd.f32 %v2285, %v2511
        %v2513 = vpop.f32.mrf.mxu0
        %v2514 = vpop.f32.mrf.mxu0
        %v2515 = vadd.f32 %v2288, %v2514
        %v2516 = vpop.f32.mrf.mxu0
        %2517 = vmatprep.mubr.bf16.mxu0 0
        %2518 = vmatmul.mubr.bf16.gmra.mxu0 %v2395
        %v2519 = vpop.f32.mrf.mxu0
        %v2520 = vadd.f32 %v2293, %v2519
        %v2521 = vpop.f32.mrf.mxu0
        %v2522 = vpop.f32.mrf.mxu0
        %v2523 = vadd.f32 %v2296, %v2522
        %v2524 = vpop.f32.mrf.mxu0
        %2525 = vmatprep.mubr.bf16.mxu0 0
        %2526 = vmatmul.mubr.bf16.gmra.mxu0 %v2398
        %v2527 = vpop.f32.mrf.mxu0
        %v2528 = vadd.f32 %v2301, %v2527
        %v2529 = vpop.f32.mrf.mxu0
        %v2530 = vpop.f32.mrf.mxu0
        %v2531 = vadd.f32 %v2304, %v2530
        %v2532 = vpop.f32.mrf.mxu0
        %2533 = vmatprep.mubr.bf16.mxu0 0
        %2534 = vmatmul.mubr.bf16.gmra.mxu0 %v2401
        %v2535 = vpop.f32.mrf.mxu0
        %v2536 = vadd.f32 %v2309, %v2535
        %v2537 = vpop.f32.mrf.mxu0
        %v2538 = vpop.f32.mrf.mxu0
        %v2539 = vadd.f32 %v2312, %v2538
        %v2540 = vpop.f32.mrf.mxu0
        %2541 = vmatprep.mubr.bf16.mxu0 0
        %2542 = vmatmul.mubr.bf16.gmra.mxu0 %v2404
        %v2543 = vpop.f32.mrf.mxu0
        %v2544 = vadd.f32 %v2317, %v2543
        %v2545 = vpop.f32.mrf.mxu0
        %v2546 = vpop.f32.mrf.mxu0
        %v2547 = vadd.f32 %v2320, %v2546
        %v2548 = vpop.f32.mrf.mxu0
        %2549 = vmatprep.mubr.bf16.mxu0 0
        %2550 = vmatmul.mubr.bf16.gmra.mxu0 %v2407
        %v2551 = vpop.f32.mrf.mxu0
        %v2552 = vadd.f32 %v2325, %v2551
        %v2553 = vpop.f32.mrf.mxu0
        %v2554 = vpop.f32.mrf.mxu0
        %v2555 = vadd.f32 %v2328, %v2554
        %v2556 = vpop.f32.mrf.mxu0
        %2557 = vmatprep.mubr.bf16.mxu0 0
        %2558 = vmatmul.mubr.bf16.gmra.mxu0 %v2410
        %v2559 = vpop.f32.mrf.mxu0
        %v2560 = vadd.f32 %v2333, %v2559
        %v2561 = vpop.f32.mrf.mxu0
        %v2562 = vpop.f32.mrf.mxu0
        %v2563 = vadd.f32 %v2336, %v2562
        %v2564 = vpop.f32.mrf.mxu0
        %2565 = vmatprep.mubr.bf16.mxu0 0
        %2566 = vmatmul.mubr.bf16.gmra.mxu0 %v2413
        %v2567 = vpop.f32.mrf.mxu0
        %v2568 = vadd.f32 %v2341, %v2567
        %v2569 = vpop.f32.mrf.mxu0
        %v2570 = vpop.f32.mrf.mxu0
        %v2571 = vadd.f32 %v2344, %v2570
        %v2572 = vpop.f32.mrf.mxu0
        %2573 = vmatprep.mubr.bf16.mxu0 0
        %2574 = vmatmul.mubr.bf16.gmra.mxu0 %v2416
        %v2575 = vpop.f32.mrf.mxu0
        %v2576 = vadd.f32 %v2349, %v2575
        %v2577 = vpop.f32.mrf.mxu0
        %v2578 = vpop.f32.mrf.mxu0
        %v2579 = vadd.f32 %v2352, %v2578
        %v2580 = vpop.f32.mrf.mxu0
        %2581 = vdwg.mxu0
        %v2582 = vrot.slane %v1860, 1
        %v2583 = vrot.slane %v1861, 1
        %v2584 = vrot.slane %v1862, 1
        %v2585 = vrot.slane %v1863, 1
        %v2586 = vrot.slane %v1864, 1
        %v2587 = vrot.slane %v1865, 1
        %v2588 = vrot.slane %v1866, 1
        %v2589 = vrot.slane %v1867, 1
        %v2590 = vrot.slane %v1868, 1
        %v2591 = vrot.slane %v1869, 1
        %v2592 = vrot.slane %v1870, 1
        %v2593 = vrot.slane %v1871, 1
        %v2594 = vrot.slane %v1872, 1
        %v2595 = vrot.slane %v1873, 1
        %v2596 = vrot.slane %v1874, 1
        %v2597 = vrot.slane %v1875, 1
        %v2598 = vrot.slane %v1876, 1
        %v2599 = vrot.slane %v1877, 1
        %v2600 = vrot.slane %v1878, 1
        %v2601 = vrot.slane %v1879, 1
        %v2602 = vrot.slane %v1880, 1
        %v2603 = vrot.slane %v1881, 1
        %v2604 = vrot.slane %v1882, 1
        %v2605 = vrot.slane %v1883, 1
        %v2606 = vrot.slane %v1884, 1
        %v2607 = vrot.slane %v1885, 1
        %v2608 = vrot.slane %v1886, 1
        %v2609 = vrot.slane %v1887, 1
        %v2610 = vrot.slane %v1888, 1
        %v2611 = vrot.slane %v1889, 1
        %v2612 = vrot.slane %v1890, 1
        %v2613 = vrot.slane %v1891, 1
        %vm2614 = vcmp.lt.s32.totalorder %v419, 7
        %v2615 = vsel %vm2614, %v2612, %v2613
        %v2616 = vsel %vm2614, %v2611, %v2612
        %v2617 = vsel %vm2614, %v2610, %v2611
        %v2618 = vsel %vm2614, %v2609, %v2610
        %v2619 = vsel %vm2614, %v2608, %v2609
        %v2620 = vsel %vm2614, %v2607, %v2608
        %v2621 = vsel %vm2614, %v2606, %v2607
        %v2622 = vsel %vm2614, %v2605, %v2606
        %v2623 = vsel %vm2614, %v2604, %v2605
        %v2624 = vsel %vm2614, %v2603, %v2604
        %v2625 = vsel %vm2614, %v2602, %v2603
        %v2626 = vsel %vm2614, %v2601, %v2602
        %v2627 = vsel %vm2614, %v2600, %v2601
        %v2628 = vsel %vm2614, %v2599, %v2600
        %v2629 = vsel %vm2614, %v2598, %v2599
        %v2630 = vsel %vm2614, %v2597, %v2598
        %v2631 = vsel %vm2614, %v2596, %v2597
        %v2632 = vsel %vm2614, %v2595, %v2596
        %v2633 = vsel %vm2614, %v2594, %v2595
        %v2634 = vsel %vm2614, %v2593, %v2594
        %v2635 = vsel %vm2614, %v2592, %v2593
        %v2636 = vsel %vm2614, %v2591, %v2592
        %v2637 = vsel %vm2614, %v2590, %v2591
        %v2638 = vsel %vm2614, %v2589, %v2590
        %v2639 = vsel %vm2614, %v2588, %v2589
        %v2640 = vsel %vm2614, %v2587, %v2588
        %v2641 = vsel %vm2614, %v2586, %v2587
        %v2642 = vsel %vm2614, %v2585, %v2586
        %v2643 = vsel %vm2614, %v2584, %v2585
        %v2644 = vsel %vm2614, %v2583, %v2584
        %v2645 = vsel %vm2614, %v2582, %v2583
        %v2646 = vsel %vm2614, %v2613, %v2582
        %vm2647 = vcmp.lt.s32.totalorder %v451, 15
        %vm2648 = vcmp.lt.s32.totalorder %v452, 15
        %vm2649 = vcmp.lt.s32.totalorder %v453, 15
        %vm2650 = vcmp.lt.s32.totalorder %v454, 15
        %vm2651 = vcmp.lt.s32.totalorder %v455, 15
        %vm2652 = vcmp.lt.s32.totalorder %v456, 15
        %vm2653 = vcmp.lt.s32.totalorder %v457, 15
        %vm2654 = vcmp.lt.s32.totalorder %v458, 15
        %vm2655 = vcmp.lt.s32.totalorder %v459, 15
        %vm2656 = vcmp.lt.s32.totalorder %v460, 15
        %vm2657 = vcmp.lt.s32.totalorder %v461, 15
        %vm2658 = vcmp.lt.s32.totalorder %v462, 15
        %vm2659 = vcmp.lt.s32.totalorder %v463, 15
        %vm2660 = vcmp.lt.s32.totalorder %v464, 15
        %vm2661 = vcmp.lt.s32.totalorder %v465, 15
        %vm2662 = vcmp.lt.s32.totalorder %v466, 15
        %vm2663 = vcmp.lt.s32.totalorder %v467, 15
        %vm2664 = vcmp.lt.s32.totalorder %v468, 15
        %vm2665 = vcmp.lt.s32.totalorder %v469, 15
        %vm2666 = vcmp.lt.s32.totalorder %v470, 15
        %vm2667 = vcmp.lt.s32.totalorder %v471, 15
        %vm2668 = vcmp.lt.s32.totalorder %v472, 15
        %vm2669 = vcmp.lt.s32.totalorder %v473, 15
        %vm2670 = vcmp.lt.s32.totalorder %v474, 15
        %vm2671 = vcmp.lt.s32.totalorder %v475, 15
        %vm2672 = vcmp.lt.s32.totalorder %v476, 15
        %vm2673 = vcmp.lt.s32.totalorder %v477, 15
        %vm2674 = vcmp.lt.s32.totalorder %v478, 15
        %vm2675 = vcmp.lt.s32.totalorder %v479, 15
        %vm2676 = vcmp.lt.s32.totalorder %v480, 15
        %vm2677 = vcmp.lt.s32.totalorder %v481, 15
        %vm2678 = vcmp.lt.s32.totalorder %v482, 15
        %v2679 = vsel %vm2647, 1, 0
        %v2680 = vsel %vm2648, 1, 0
        %v2681 = vsel %vm2649, 1, 0
        %v2682 = vsel %vm2650, 1, 0
        %v2683 = vsel %vm2651, 1, 0
        %v2684 = vsel %vm2652, 1, 0
        %v2685 = vsel %vm2653, 1, 0
        %v2686 = vsel %vm2654, 1, 0
        %v2687 = vsel %vm2655, 1, 0
        %v2688 = vsel %vm2656, 1, 0
        %v2689 = vsel %vm2657, 1, 0
        %v2690 = vsel %vm2658, 1, 0
        %v2691 = vsel %vm2659, 1, 0
        %v2692 = vsel %vm2660, 1, 0
        %v2693 = vsel %vm2661, 1, 0
        %v2694 = vsel %vm2662, 1, 0
        %v2695 = vsel %vm2663, 1, 0
        %v2696 = vsel %vm2664, 1, 0
        %v2697 = vsel %vm2665, 1, 0
        %v2698 = vsel %vm2666, 1, 0
        %v2699 = vsel %vm2667, 1, 0
        %v2700 = vsel %vm2668, 1, 0
        %v2701 = vsel %vm2669, 1, 0
        %v2702 = vsel %vm2670, 1, 0
        %v2703 = vsel %vm2671, 1, 0
        %v2704 = vsel %vm2672, 1, 0
        %v2705 = vsel %vm2673, 1, 0
        %v2706 = vsel %vm2674, 1, 0
        %v2707 = vsel %vm2675, 1, 0
        %v2708 = vsel %vm2676, 1, 0
        %v2709 = vsel %vm2677, 1, 0
        %v2710 = vsel %vm2678, 1, 0
        %vm2711 = vcmp.eq.s32.totalorder %v2679, 1
        %vm2712 = vcmp.eq.s32.totalorder %v2680, 1
        %vm2713 = vcmp.eq.s32.totalorder %v2681, 1
        %vm2714 = vcmp.eq.s32.totalorder %v2682, 1
        %vm2715 = vcmp.eq.s32.totalorder %v2683, 1
        %vm2716 = vcmp.eq.s32.totalorder %v2684, 1
        %vm2717 = vcmp.eq.s32.totalorder %v2685, 1
        %vm2718 = vcmp.eq.s32.totalorder %v2686, 1
        %vm2719 = vcmp.eq.s32.totalorder %v2687, 1
        %vm2720 = vcmp.eq.s32.totalorder %v2688, 1
        %vm2721 = vcmp.eq.s32.totalorder %v2689, 1
        %vm2722 = vcmp.eq.s32.totalorder %v2690, 1
        %vm2723 = vcmp.eq.s32.totalorder %v2691, 1
        %vm2724 = vcmp.eq.s32.totalorder %v2692, 1
        %vm2725 = vcmp.eq.s32.totalorder %v2693, 1
        %vm2726 = vcmp.eq.s32.totalorder %v2694, 1
        %vm2727 = vcmp.eq.s32.totalorder %v2695, 1
        %vm2728 = vcmp.eq.s32.totalorder %v2696, 1
        %vm2729 = vcmp.eq.s32.totalorder %v2697, 1
        %vm2730 = vcmp.eq.s32.totalorder %v2698, 1
        %vm2731 = vcmp.eq.s32.totalorder %v2699, 1
        %vm2732 = vcmp.eq.s32.totalorder %v2700, 1
        %vm2733 = vcmp.eq.s32.totalorder %v2701, 1
        %vm2734 = vcmp.eq.s32.totalorder %v2702, 1
        %vm2735 = vcmp.eq.s32.totalorder %v2703, 1
        %vm2736 = vcmp.eq.s32.totalorder %v2704, 1
        %vm2737 = vcmp.eq.s32.totalorder %v2705, 1
        %vm2738 = vcmp.eq.s32.totalorder %v2706, 1
        %vm2739 = vcmp.eq.s32.totalorder %v2707, 1
        %vm2740 = vcmp.eq.s32.totalorder %v2708, 1
        %vm2741 = vcmp.eq.s32.totalorder %v2709, 1
        %vm2742 = vcmp.eq.s32.totalorder %v2710, 1
        %v2743 = vsel %vm2711, %v2645, 0.0
        %v2744 = vsel %vm2712, %v2644, 0.0
        %v2745 = vsel %vm2713, %v2643, 0.0
        %v2746 = vsel %vm2714, %v2642, 0.0
        %v2747 = vsel %vm2715, %v2641, 0.0
        %v2748 = vsel %vm2716, %v2640, 0.0
        %v2749 = vsel %vm2717, %v2639, 0.0
        %v2750 = vsel %vm2718, %v2638, 0.0
        %v2751 = vsel %vm2719, %v2637, 0.0
        %v2752 = vsel %vm2720, %v2636, 0.0
        %v2753 = vsel %vm2721, %v2635, 0.0
        %v2754 = vsel %vm2722, %v2634, 0.0
        %v2755 = vsel %vm2723, %v2633, 0.0
        %v2756 = vsel %vm2724, %v2632, 0.0
        %v2757 = vsel %vm2725, %v2631, 0.0
        %v2758 = vsel %vm2726, %v2630, 0.0
        %v2759 = vsel %vm2727, %v2629, 0.0
        %v2760 = vsel %vm2728, %v2628, 0.0
        %v2761 = vsel %vm2729, %v2627, 0.0
        %v2762 = vsel %vm2730, %v2626, 0.0
        %v2763 = vsel %vm2731, %v2625, 0.0
        %v2764 = vsel %vm2732, %v2624, 0.0
        %v2765 = vsel %vm2733, %v2623, 0.0
        %v2766 = vsel %vm2734, %v2622, 0.0
        %v2767 = vsel %vm2735, %v2621, 0.0
        %v2768 = vsel %vm2736, %v2620, 0.0
        %v2769 = vsel %vm2737, %v2619, 0.0
        %v2770 = vsel %vm2738, %v2618, 0.0
        %v2771 = vsel %vm2739, %v2617, 0.0
        %v2772 = vsel %vm2740, %v2616, 0.0
        %v2773 = vsel %vm2741, %v2615, 0.0
        %v2774 = vsel %vm2742, %v2646, 0.0
        %s2775 = scalar_lea.vmem %s5, 40
        %v2776 = vld [vmem:[%s2775] sm:$0xf]
        %v2777 = vld [vmem:[%s2775 + $0x4] sm:$0xf]
        %v2778 = vld [vmem:[%s2775 + $0x8] sm:$0xf]
        %v2779 = vld [vmem:[%s2775 + $0xc] sm:$0xf]
        %v2780 = vld [vmem:[%s2775 + $0x10] sm:$0xf]
        %v2781 = vpack.c.bf16 %v2744, %v2743
        %v2782 = vpack.c.bf16 %v2746, %v2745
        %v2783 = vpack.c.bf16 %v2748, %v2747
        %v2784 = vpack.c.bf16 %v2750, %v2749
        %v2785 = vpack.c.bf16 %v2752, %v2751
        %v2786 = vpack.c.bf16 %v2754, %v2753
        %v2787 = vpack.c.bf16 %v2756, %v2755
        %v2788 = vpack.c.bf16 %v2758, %v2757
        %v2789 = vpack.c.bf16 %v2760, %v2759
        %v2790 = vpack.c.bf16 %v2762, %v2761
        %v2791 = vpack.c.bf16 %v2764, %v2763
        %v2792 = vpack.c.bf16 %v2766, %v2765
        %v2793 = vpack.c.bf16 %v2768, %v2767
        %v2794 = vpack.c.bf16 %v2770, %v2769
        %v2795 = vpack.c.bf16 %v2772, %v2771
        %v2796 = vpack.c.bf16 %v2774, %v2773
        %v2802 = vunpack.c.l.b16 %v2776
        %v2803 = vunpack.c.l.b16 %v2777
        %v2804 = vunpack.c.l.b16 %v2778
        %v2805 = vunpack.c.l.b16 %v2779
        %v2806 = vunpack.c.l.b16 %v2780
        %v2807 = vpack.c.b16 %v2803, %v2802
        %v2808 = vpack.c.b16 %v2805, %v2804
        %v2809 = vpack.c.b16 %v2806, %v2806
        %v2813 = vsel %vm1003, %v2781, 0
        %v2816 = vsel %vm1003, %v2782, 0
        %v2819 = vsel %vm1003, %v2783, 0
        %v2822 = vsel %vm1003, %v2784, 0
        %v2825 = vsel %vm1003, %v2785, 0
        %v2828 = vsel %vm1003, %v2786, 0
        %v2831 = vsel %vm1003, %v2787, 0
        %v2834 = vsel %vm1003, %v2788, 0
        %v2837 = vsel %vm1003, %v2789, 0
        %v2840 = vsel %vm1003, %v2790, 0
        %v2843 = vsel %vm1003, %v2791, 0
        %v2846 = vsel %vm1003, %v2792, 0
        %v2849 = vsel %vm1003, %v2793, 0
        %v2852 = vsel %vm1003, %v2794, 0
        %v2855 = vsel %vm1003, %v2795, 0
        %v2858 = vsel %vm1003, %v2796, 0
        %v2861 = vsel %vm1052, %v2809, 0
        %2863 = vmatprep.subr.bf16.mxu0 0
        %2864 = vmatpush1.bf16.msra.mxu0 0
        %2865 = vmatprep.subr.bf16.mxu0 0
        %2866 = vmatpush1.bf16.msra.mxu0 0
        %2867 = vmatprep.subr.bf16.mxu0 0
        %2868 = vmatpush1.bf16.msra.mxu0 0
        %2869 = vmatprep.subr.bf16.mxu0 0
        %2870 = vmatpush1.bf16.msra.mxu0 0
        %2871 = vmatprep.subr.bf16.mxu0 0
        %2872 = vmatpush1.bf16.msra.mxu0 0
        %2873 = vmatprep.subr.bf16.mxu0 0
        %2874 = vmatpush1.bf16.msra.mxu0 %v2861
        %2875 = vmatprep.subr.bf16.mxu0 0
        %2876 = vmatpush1.bf16.msra.mxu0 %v2808
        %2877 = vmatprep.subr.bf16.mxu0 0
        %2878 = vmatpush1.bf16.msra.mxu0 %v2807
        %2879 = vmatprep.subr.bf16.mxu0 0
        %2880 = vmatpush2.bf16.msra.mxu0 0
        %2881 = vmatprep.subr.bf16.mxu0 0
        %2882 = vmatpush2.bf16.msra.mxu0 0
        %2883 = vmatprep.subr.bf16.mxu0 0
        %2884 = vmatpush2.bf16.msra.mxu0 0
        %2885 = vmatprep.subr.bf16.mxu0 0
        %2886 = vmatpush2.bf16.msra.mxu0 0
        %2887 = vmatprep.subr.bf16.mxu0 0
        %2888 = vmatpush2.bf16.msra.mxu0 0
        %2889 = vmatprep.subr.bf16.mxu0 0
        %2890 = vmatpush2.bf16.msra.mxu0 0
        %2891 = vmatprep.subr.bf16.mxu0 0
        %2892 = vmatpush2.bf16.msra.mxu0 0
        %2893 = vmatprep.subr.bf16.mxu0 0
        %2894 = vmatpush2.bf16.msra.mxu0 0
        %2895 = vmatprep.mubr.bf16.mxu0 0
        %2896 = vmatmul.mubr.bf16.gmra.mxu0 %v2813
        %v2897 = vpop.f32.mrf.mxu0
        %v2898 = vadd.f32 0.0, %v2897
        %v2899 = vpop.f32.mrf.mxu0
        %v2900 = vpop.f32.mrf.mxu0
        %v2901 = vadd.f32 0.0, %v2900
        %v2902 = vpop.f32.mrf.mxu0
        %2903 = vmatprep.mubr.bf16.mxu0 0
        %2904 = vmatmul.mubr.bf16.gmra.mxu0 %v2816
        %v2905 = vpop.f32.mrf.mxu0
        %v2906 = vadd.f32 0.0, %v2905
        %v2907 = vpop.f32.mrf.mxu0
        %v2908 = vpop.f32.mrf.mxu0
        %v2909 = vadd.f32 0.0, %v2908
        %v2910 = vpop.f32.mrf.mxu0
        %2911 = vmatprep.mubr.bf16.mxu0 0
        %2912 = vmatmul.mubr.bf16.gmra.mxu0 %v2819
        %v2913 = vpop.f32.mrf.mxu0
        %v2914 = vadd.f32 0.0, %v2913
        %v2915 = vpop.f32.mrf.mxu0
        %v2916 = vpop.f32.mrf.mxu0
        %v2917 = vadd.f32 0.0, %v2916
        %v2918 = vpop.f32.mrf.mxu0
        %2919 = vmatprep.mubr.bf16.mxu0 0
        %2920 = vmatmul.mubr.bf16.gmra.mxu0 %v2822
        %v2921 = vpop.f32.mrf.mxu0
        %v2922 = vadd.f32 0.0, %v2921
        %v2923 = vpop.f32.mrf.mxu0
        %v2924 = vpop.f32.mrf.mxu0
        %v2925 = vadd.f32 0.0, %v2924
        %v2926 = vpop.f32.mrf.mxu0
        %2927 = vmatprep.mubr.bf16.mxu0 0
        %2928 = vmatmul.mubr.bf16.gmra.mxu0 %v2825
        %v2929 = vpop.f32.mrf.mxu0
        %v2930 = vadd.f32 0.0, %v2929
        %v2931 = vpop.f32.mrf.mxu0
        %v2932 = vpop.f32.mrf.mxu0
        %v2933 = vadd.f32 0.0, %v2932
        %v2934 = vpop.f32.mrf.mxu0
        %2935 = vmatprep.mubr.bf16.mxu0 0
        %2936 = vmatmul.mubr.bf16.gmra.mxu0 %v2828
        %v2937 = vpop.f32.mrf.mxu0
        %v2938 = vadd.f32 0.0, %v2937
        %v2939 = vpop.f32.mrf.mxu0
        %v2940 = vpop.f32.mrf.mxu0
        %v2941 = vadd.f32 0.0, %v2940
        %v2942 = vpop.f32.mrf.mxu0
        %2943 = vmatprep.mubr.bf16.mxu0 0
        %2944 = vmatmul.mubr.bf16.gmra.mxu0 %v2831
        %v2945 = vpop.f32.mrf.mxu0
        %v2946 = vadd.f32 0.0, %v2945
        %v2947 = vpop.f32.mrf.mxu0
        %v2948 = vpop.f32.mrf.mxu0
        %v2949 = vadd.f32 0.0, %v2948
        %v2950 = vpop.f32.mrf.mxu0
        %2951 = vmatprep.mubr.bf16.mxu0 0
        %2952 = vmatmul.mubr.bf16.gmra.mxu0 %v2834
        %v2953 = vpop.f32.mrf.mxu0
        %v2954 = vadd.f32 0.0, %v2953
        %v2955 = vpop.f32.mrf.mxu0
        %v2956 = vpop.f32.mrf.mxu0
        %v2957 = vadd.f32 0.0, %v2956
        %v2958 = vpop.f32.mrf.mxu0
        %2959 = vmatprep.mubr.bf16.mxu0 0
        %2960 = vmatmul.mubr.bf16.gmra.mxu0 %v2837
        %v2961 = vpop.f32.mrf.mxu0
        %v2962 = vadd.f32 0.0, %v2961
        %v2963 = vpop.f32.mrf.mxu0
        %v2964 = vpop.f32.mrf.mxu0
        %v2965 = vadd.f32 0.0, %v2964
        %v2966 = vpop.f32.mrf.mxu0
        %2967 = vmatprep.mubr.bf16.mxu0 0
        %2968 = vmatmul.mubr.bf16.gmra.mxu0 %v2840
        %v2969 = vpop.f32.mrf.mxu0
        %v2970 = vadd.f32 0.0, %v2969
        %v2971 = vpop.f32.mrf.mxu0
        %v2972 = vpop.f32.mrf.mxu0
        %v2973 = vadd.f32 0.0, %v2972
        %v2974 = vpop.f32.mrf.mxu0
        %2975 = vmatprep.mubr.bf16.mxu0 0
        %2976 = vmatmul.mubr.bf16.gmra.mxu0 %v2843
        %v2977 = vpop.f32.mrf.mxu0
        %v2978 = vadd.f32 0.0, %v2977
        %v2979 = vpop.f32.mrf.mxu0
        %v2980 = vpop.f32.mrf.mxu0
        %v2981 = vadd.f32 0.0, %v2980
        %v2982 = vpop.f32.mrf.mxu0
        %2983 = vmatprep.mubr.bf16.mxu0 0
        %2984 = vmatmul.mubr.bf16.gmra.mxu0 %v2846
        %v2985 = vpop.f32.mrf.mxu0
        %v2986 = vadd.f32 0.0, %v2985
        %v2987 = vpop.f32.mrf.mxu0
        %v2988 = vpop.f32.mrf.mxu0
        %v2989 = vadd.f32 0.0, %v2988
        %v2990 = vpop.f32.mrf.mxu0
        %2991 = vmatprep.mubr.bf16.mxu0 0
        %2992 = vmatmul.mubr.bf16.gmra.mxu0 %v2849
        %v2993 = vpop.f32.mrf.mxu0
        %v2994 = vadd.f32 0.0, %v2993
        %v2995 = vpop.f32.mrf.mxu0
        %v2996 = vpop.f32.mrf.mxu0
        %v2997 = vadd.f32 0.0, %v2996
        %v2998 = vpop.f32.mrf.mxu0
        %2999 = vmatprep.mubr.bf16.mxu0 0
        %3000 = vmatmul.mubr.bf16.gmra.mxu0 %v2852
        %v3001 = vpop.f32.mrf.mxu0
        %v3002 = vadd.f32 0.0, %v3001
        %v3003 = vpop.f32.mrf.mxu0
        %v3004 = vpop.f32.mrf.mxu0
        %v3005 = vadd.f32 0.0, %v3004
        %v3006 = vpop.f32.mrf.mxu0
        %3007 = vmatprep.mubr.bf16.mxu0 0
        %3008 = vmatmul.mubr.bf16.gmra.mxu0 %v2855
        %v3009 = vpop.f32.mrf.mxu0
        %v3010 = vadd.f32 0.0, %v3009
        %v3011 = vpop.f32.mrf.mxu0
        %v3012 = vpop.f32.mrf.mxu0
        %v3013 = vadd.f32 0.0, %v3012
        %v3014 = vpop.f32.mrf.mxu0
        %3015 = vmatprep.mubr.bf16.mxu0 0
        %3016 = vmatmul.mubr.bf16.gmra.mxu0 %v2858
        %v3017 = vpop.f32.mrf.mxu0
        %v3018 = vadd.f32 0.0, %v3017
        %v3019 = vpop.f32.mrf.mxu0
        %v3020 = vpop.f32.mrf.mxu0
        %v3021 = vadd.f32 0.0, %v3020
        %v3022 = vpop.f32.mrf.mxu0
        %3023 = vdwg.mxu0
        %v3024 = vadd.f32 %v2456, %v2898
        %v3025 = vadd.f32 %v2459, %v2901
        %v3026 = vadd.f32 %v2464, %v2906
        %v3027 = vadd.f32 %v2467, %v2909
        %v3028 = vadd.f32 %v2472, %v2914
        %v3029 = vadd.f32 %v2475, %v2917
        %v3030 = vadd.f32 %v2480, %v2922
        %v3031 = vadd.f32 %v2483, %v2925
        %v3032 = vadd.f32 %v2488, %v2930
        %v3033 = vadd.f32 %v2491, %v2933
        %v3034 = vadd.f32 %v2496, %v2938
        %v3035 = vadd.f32 %v2499, %v2941
        %v3036 = vadd.f32 %v2504, %v2946
        %v3037 = vadd.f32 %v2507, %v2949
        %v3038 = vadd.f32 %v2512, %v2954
        %v3039 = vadd.f32 %v2515, %v2957
        %v3040 = vadd.f32 %v2520, %v2962
        %v3041 = vadd.f32 %v2523, %v2965
        %v3042 = vadd.f32 %v2528, %v2970
        %v3043 = vadd.f32 %v2531, %v2973
        %v3044 = vadd.f32 %v2536, %v2978
        %v3045 = vadd.f32 %v2539, %v2981
        %v3046 = vadd.f32 %v2544, %v2986
        %v3047 = vadd.f32 %v2547, %v2989
        %v3048 = vadd.f32 %v2552, %v2994
        %v3049 = vadd.f32 %v2555, %v2997
        %v3050 = vadd.f32 %v2560, %v3002
        %v3051 = vadd.f32 %v2563, %v3005
        %v3052 = vadd.f32 %v2568, %v3010
        %v3053 = vadd.f32 %v2571, %v3013
        %v3054 = vadd.f32 %v2576, %v3018
        %v3055 = vadd.f32 %v2579, %v3021
        %v3056 = vld [vmem:[%s6] sm:$0x1]
        %v3058 = vlaneseq
        %v3059 = vshrl.u32 %v3058, 7
        %v3060 = vsub.s32 0, %v3059
        %v3061 = vrot.slane %v3056, %v3060
        %v3063 = vadd.f32 %v3024, %v3061
        %v3064 = vadd.f32 %v3025, %v3061
        %v3065 = vadd.f32 %v3026, %v3061
        %v3066 = vadd.f32 %v3027, %v3061
        %v3067 = vadd.f32 %v3028, %v3061
        %v3068 = vadd.f32 %v3029, %v3061
        %v3069 = vadd.f32 %v3030, %v3061
        %v3070 = vadd.f32 %v3031, %v3061
        %v3071 = vadd.f32 %v3032, %v3061
        %v3072 = vadd.f32 %v3033, %v3061
        %v3073 = vadd.f32 %v3034, %v3061
        %v3074 = vadd.f32 %v3035, %v3061
        %v3075 = vadd.f32 %v3036, %v3061
        %v3076 = vadd.f32 %v3037, %v3061
        %v3077 = vadd.f32 %v3038, %v3061
        %v3078 = vadd.f32 %v3039, %v3061
        %v3079 = vadd.f32 %v3040, %v3061
        %v3080 = vadd.f32 %v3041, %v3061
        %v3081 = vadd.f32 %v3042, %v3061
        %v3082 = vadd.f32 %v3043, %v3061
        %v3083 = vadd.f32 %v3044, %v3061
        %v3084 = vadd.f32 %v3045, %v3061
        %v3085 = vadd.f32 %v3046, %v3061
        %v3086 = vadd.f32 %v3047, %v3061
        %v3087 = vadd.f32 %v3048, %v3061
        %v3088 = vadd.f32 %v3049, %v3061
        %v3089 = vadd.f32 %v3050, %v3061
        %v3090 = vadd.f32 %v3051, %v3061
        %v3091 = vadd.f32 %v3052, %v3061
        %v3092 = vadd.f32 %v3053, %v3061
        %v3093 = vadd.f32 %v3054, %v3061
        %v3094 = vadd.f32 %v3055, %v3061
        %v3095 = vmax.f32 %v3063, 0.0
        %v3096 = vmax.f32 %v3064, 0.0
        %v3097 = vmax.f32 %v3065, 0.0
        %v3098 = vmax.f32 %v3066, 0.0
        %v3099 = vmax.f32 %v3067, 0.0
        %v3100 = vmax.f32 %v3068, 0.0
        %v3101 = vmax.f32 %v3069, 0.0
        %v3102 = vmax.f32 %v3070, 0.0
        %v3103 = vmax.f32 %v3071, 0.0
        %v3104 = vmax.f32 %v3072, 0.0
        %v3105 = vmax.f32 %v3073, 0.0
        %v3106 = vmax.f32 %v3074, 0.0
        %v3107 = vmax.f32 %v3075, 0.0
        %v3108 = vmax.f32 %v3076, 0.0
        %v3109 = vmax.f32 %v3077, 0.0
        %v3110 = vmax.f32 %v3078, 0.0
        %v3111 = vmax.f32 %v3079, 0.0
        %v3112 = vmax.f32 %v3080, 0.0
        %v3113 = vmax.f32 %v3081, 0.0
        %v3114 = vmax.f32 %v3082, 0.0
        %v3115 = vmax.f32 %v3083, 0.0
        %v3116 = vmax.f32 %v3084, 0.0
        %v3117 = vmax.f32 %v3085, 0.0
        %v3118 = vmax.f32 %v3086, 0.0
        %v3119 = vmax.f32 %v3087, 0.0
        %v3120 = vmax.f32 %v3088, 0.0
        %v3121 = vmax.f32 %v3089, 0.0
        %v3122 = vmax.f32 %v3090, 0.0
        %v3123 = vmax.f32 %v3091, 0.0
        %v3124 = vmax.f32 %v3092, 0.0
        %v3125 = vmax.f32 %v3093, 0.0
        %v3126 = vmax.f32 %v3094, 0.0
        %s3127 = scalar_lea.vmem %s7, 20
        %v3128 = vld [vmem:[%s3127] sm:$0xf]
        %v3129 = vld [vmem:[%s3127 + $0x4] sm:$0xf]
        %v3130 = vld [vmem:[%s3127 + $0x8] sm:$0xf]
        %v3131 = vld [vmem:[%s3127 + $0xc] sm:$0xf]
        %v3132 = vld [vmem:[%s3127 + $0x10] sm:$0xf]
        %v3133 = vpack.c.bf16 %v3096, %v3095
        %v3134 = vpack.c.bf16 %v3098, %v3097
        %v3135 = vpack.c.bf16 %v3100, %v3099
        %v3136 = vpack.c.bf16 %v3102, %v3101
        %v3137 = vpack.c.bf16 %v3104, %v3103
        %v3138 = vpack.c.bf16 %v3106, %v3105
        %v3139 = vpack.c.bf16 %v3108, %v3107
        %v3140 = vpack.c.bf16 %v3110, %v3109
        %v3141 = vpack.c.bf16 %v3112, %v3111
        %v3142 = vpack.c.bf16 %v3114, %v3113
        %v3143 = vpack.c.bf16 %v3116, %v3115
        %v3144 = vpack.c.bf16 %v3118, %v3117
        %v3145 = vpack.c.bf16 %v3120, %v3119
        %v3146 = vpack.c.bf16 %v3122, %v3121
        %v3147 = vpack.c.bf16 %v3124, %v3123
        %v3148 = vpack.c.bf16 %v3126, %v3125
        %vm3149 = vcmp.ge.s32.totalorder %v515, 2
        %vm3150 = vcmp.ge.s32.totalorder %v516, 2
        %vm3151 = vcmp.ge.s32.totalorder %v517, 2
        %vm3152 = vcmp.ge.s32.totalorder %v518, 2
        %vm3153 = vcmp.ge.s32.totalorder %v519, 2
        %vm3154 = vcmp.ge.s32.totalorder %v520, 2
        %vm3155 = vcmp.ge.s32.totalorder %v521, 2
        %vm3156 = vcmp.ge.s32.totalorder %v522, 2
        %vm3157 = vcmp.ge.s32.totalorder %v523, 2
        %vm3158 = vcmp.ge.s32.totalorder %v524, 2
        %vm3159 = vcmp.ge.s32.totalorder %v525, 2
        %vm3160 = vcmp.ge.s32.totalorder %v526, 2
        %vm3161 = vcmp.ge.s32.totalorder %v527, 2
        %vm3162 = vcmp.ge.s32.totalorder %v528, 2
        %vm3163 = vcmp.ge.s32.totalorder %v529, 2
        %vm3164 = vcmp.ge.s32.totalorder %v530, 2
        %vm3165 = vcmp.ge.s32.totalorder %v531, 2
        %vm3166 = vcmp.ge.s32.totalorder %v532, 2
        %vm3167 = vcmp.ge.s32.totalorder %v533, 2
        %vm3168 = vcmp.ge.s32.totalorder %v534, 2
        %vm3169 = vcmp.ge.s32.totalorder %v535, 2
        %vm3170 = vcmp.ge.s32.totalorder %v536, 2
        %vm3171 = vcmp.ge.s32.totalorder %v537, 2
        %vm3172 = vcmp.ge.s32.totalorder %v538, 2
        %vm3173 = vcmp.ge.s32.totalorder %v539, 2
        %vm3174 = vcmp.ge.s32.totalorder %v540, 2
        %vm3175 = vcmp.ge.s32.totalorder %v541, 2
        %vm3176 = vcmp.ge.s32.totalorder %v542, 2
        %vm3177 = vcmp.ge.s32.totalorder %v543, 2
        %vm3178 = vcmp.ge.s32.totalorder %v544, 2
        %vm3179 = vcmp.ge.s32.totalorder %v545, 2
        %vm3180 = vcmp.ge.s32.totalorder %v546, 2
        %v3181 = vsel %vm3149, 1, 0
        %v3182 = vsel %vm3150, 1, 0
        %v3183 = vsel %vm3151, 1, 0
        %v3184 = vsel %vm3152, 1, 0
        %v3185 = vsel %vm3153, 1, 0
        %v3186 = vsel %vm3154, 1, 0
        %v3187 = vsel %vm3155, 1, 0
        %v3188 = vsel %vm3156, 1, 0
        %v3189 = vsel %vm3157, 1, 0
        %v3190 = vsel %vm3158, 1, 0
        %v3191 = vsel %vm3159, 1, 0
        %v3192 = vsel %vm3160, 1, 0
        %v3193 = vsel %vm3161, 1, 0
        %v3194 = vsel %vm3162, 1, 0
        %v3195 = vsel %vm3163, 1, 0
        %v3196 = vsel %vm3164, 1, 0
        %v3197 = vsel %vm3165, 1, 0
        %v3198 = vsel %vm3166, 1, 0
        %v3199 = vsel %vm3167, 1, 0
        %v3200 = vsel %vm3168, 1, 0
        %v3201 = vsel %vm3169, 1, 0
        %v3202 = vsel %vm3170, 1, 0
        %v3203 = vsel %vm3171, 1, 0
        %v3204 = vsel %vm3172, 1, 0
        %v3205 = vsel %vm3173, 1, 0
        %v3206 = vsel %vm3174, 1, 0
        %v3207 = vsel %vm3175, 1, 0
        %v3208 = vsel %vm3176, 1, 0
        %v3209 = vsel %vm3177, 1, 0
        %v3210 = vsel %vm3178, 1, 0
        %v3211 = vsel %vm3179, 1, 0
        %v3212 = vsel %vm3180, 1, 0
        %vm3213 = vcmp.eq.s32.totalorder %v3181, 1
        %vm3214 = vcmp.eq.s32.totalorder %v3182, 1
        %vm3215 = vcmp.eq.s32.totalorder %v3183, 1
        %vm3216 = vcmp.eq.s32.totalorder %v3184, 1
        %vm3217 = vcmp.eq.s32.totalorder %v3185, 1
        %vm3218 = vcmp.eq.s32.totalorder %v3186, 1
        %vm3219 = vcmp.eq.s32.totalorder %v3187, 1
        %vm3220 = vcmp.eq.s32.totalorder %v3188, 1
        %vm3221 = vcmp.eq.s32.totalorder %v3189, 1
        %vm3222 = vcmp.eq.s32.totalorder %v3190, 1
        %vm3223 = vcmp.eq.s32.totalorder %v3191, 1
        %vm3224 = vcmp.eq.s32.totalorder %v3192, 1
        %vm3225 = vcmp.eq.s32.totalorder %v3193, 1
        %vm3226 = vcmp.eq.s32.totalorder %v3194, 1
        %vm3227 = vcmp.eq.s32.totalorder %v3195, 1
        %vm3228 = vcmp.eq.s32.totalorder %v3196, 1
        %vm3229 = vcmp.eq.s32.totalorder %v3197, 1
        %vm3230 = vcmp.eq.s32.totalorder %v3198, 1
        %vm3231 = vcmp.eq.s32.totalorder %v3199, 1
        %vm3232 = vcmp.eq.s32.totalorder %v3200, 1
        %vm3233 = vcmp.eq.s32.totalorder %v3201, 1
        %vm3234 = vcmp.eq.s32.totalorder %v3202, 1
        %vm3235 = vcmp.eq.s32.totalorder %v3203, 1
        %vm3236 = vcmp.eq.s32.totalorder %v3204, 1
        %vm3237 = vcmp.eq.s32.totalorder %v3205, 1
        %vm3238 = vcmp.eq.s32.totalorder %v3206, 1
        %vm3239 = vcmp.eq.s32.totalorder %v3207, 1
        %vm3240 = vcmp.eq.s32.totalorder %v3208, 1
        %vm3241 = vcmp.eq.s32.totalorder %v3209, 1
        %vm3242 = vcmp.eq.s32.totalorder %v3210, 1
        %vm3243 = vcmp.eq.s32.totalorder %v3211, 1
        %vm3244 = vcmp.eq.s32.totalorder %v3212, 1
        %v3245 = vsel %vm3213, %v3123, 0.0
        %v3246 = vsel %vm3214, %v3124, 0.0
        %v3247 = vsel %vm3215, %v3125, 0.0
        %v3248 = vsel %vm3216, %v3126, 0.0
        %v3249 = vsel %vm3217, %v3095, 0.0
        %v3250 = vsel %vm3218, %v3096, 0.0
        %v3251 = vsel %vm3219, %v3097, 0.0
        %v3252 = vsel %vm3220, %v3098, 0.0
        %v3253 = vsel %vm3221, %v3099, 0.0
        %v3254 = vsel %vm3222, %v3100, 0.0
        %v3255 = vsel %vm3223, %v3101, 0.0
        %v3256 = vsel %vm3224, %v3102, 0.0
        %v3257 = vsel %vm3225, %v3103, 0.0
        %v3258 = vsel %vm3226, %v3104, 0.0
        %v3259 = vsel %vm3227, %v3105, 0.0
        %v3260 = vsel %vm3228, %v3106, 0.0
        %v3261 = vsel %vm3229, %v3107, 0.0
        %v3262 = vsel %vm3230, %v3108, 0.0
        %v3263 = vsel %vm3231, %v3109, 0.0
        %v3264 = vsel %vm3232, %v3110, 0.0
        %v3265 = vsel %vm3233, %v3111, 0.0
        %v3266 = vsel %vm3234, %v3112, 0.0
        %v3267 = vsel %vm3235, %v3113, 0.0
        %v3268 = vsel %vm3236, %v3114, 0.0
        %v3269 = vsel %vm3237, %v3115, 0.0
        %v3270 = vsel %vm3238, %v3116, 0.0
        %v3271 = vsel %vm3239, %v3117, 0.0
        %v3272 = vsel %vm3240, %v3118, 0.0
        %v3273 = vsel %vm3241, %v3119, 0.0
        %v3274 = vsel %vm3242, %v3120, 0.0
        %v3275 = vsel %vm3243, %v3121, 0.0
        %v3276 = vsel %vm3244, %v3122, 0.0
        %v3277 = vld [vmem:[%s7] sm:$0xf]
        %v3278 = vld [vmem:[%s7 + $0x4] sm:$0xf]
        %v3279 = vld [vmem:[%s7 + $0x8] sm:$0xf]
        %v3280 = vld [vmem:[%s7 + $0xc] sm:$0xf]
        %v3281 = vld [vmem:[%s7 + $0x10] sm:$0xf]
        %v3282 = vpack.c.bf16 %v3246, %v3245
        %v3283 = vpack.c.bf16 %v3248, %v3247
        %v3284 = vpack.c.bf16 %v3250, %v3249
        %v3285 = vpack.c.bf16 %v3252, %v3251
        %v3286 = vpack.c.bf16 %v3254, %v3253
        %v3287 = vpack.c.bf16 %v3256, %v3255
        %v3288 = vpack.c.bf16 %v3258, %v3257
        %v3289 = vpack.c.bf16 %v3260, %v3259
        %v3290 = vpack.c.bf16 %v3262, %v3261
        %v3291 = vpack.c.bf16 %v3264, %v3263
        %v3292 = vpack.c.bf16 %v3266, %v3265
        %v3293 = vpack.c.bf16 %v3268, %v3267
        %v3294 = vpack.c.bf16 %v3270, %v3269
        %v3295 = vpack.c.bf16 %v3272, %v3271
        %v3296 = vpack.c.bf16 %v3274, %v3273
        %v3297 = vpack.c.bf16 %v3276, %v3275
        %v3303 = vunpack.c.l.b16 %v3277
        %v3304 = vunpack.c.l.b16 %v3278
        %v3305 = vunpack.c.l.b16 %v3279
        %v3306 = vunpack.c.l.b16 %v3280
        %v3307 = vunpack.c.l.b16 %v3281
        %v3308 = vpack.c.b16 %v3304, %v3303
        %v3309 = vpack.c.b16 %v3306, %v3305
        %v3310 = vpack.c.b16 %v3307, %v3307
        %v3314 = vsel %vm1003, %v3282, 0
        %v3317 = vsel %vm1003, %v3283, 0
        %v3320 = vsel %vm1003, %v3284, 0
        %v3323 = vsel %vm1003, %v3285, 0
        %v3326 = vsel %vm1003, %v3286, 0
        %v3329 = vsel %vm1003, %v3287, 0
        %v3332 = vsel %vm1003, %v3288, 0
        %v3335 = vsel %vm1003, %v3289, 0
        %v3338 = vsel %vm1003, %v3290, 0
        %v3341 = vsel %vm1003, %v3291, 0
        %v3344 = vsel %vm1003, %v3292, 0
        %v3347 = vsel %vm1003, %v3293, 0
        %v3350 = vsel %vm1003, %v3294, 0
        %v3353 = vsel %vm1003, %v3295, 0
        %v3356 = vsel %vm1003, %v3296, 0
        %v3359 = vsel %vm1003, %v3297, 0
        %v3362 = vsel %vm1052, %v3310, 0
        %3364 = vmatprep.subr.bf16.mxu0 0
        %3365 = vmatpush1.bf16.msra.mxu0 0
        %3366 = vmatprep.subr.bf16.mxu0 0
        %3367 = vmatpush1.bf16.msra.mxu0 0
        %3368 = vmatprep.subr.bf16.mxu0 0
        %3369 = vmatpush1.bf16.msra.mxu0 0
        %3370 = vmatprep.subr.bf16.mxu0 0
        %3371 = vmatpush1.bf16.msra.mxu0 0
        %3372 = vmatprep.subr.bf16.mxu0 0
        %3373 = vmatpush1.bf16.msra.mxu0 0
        %3374 = vmatprep.subr.bf16.mxu0 0
        %3375 = vmatpush1.bf16.msra.mxu0 %v3362
        %3376 = vmatprep.subr.bf16.mxu0 0
        %3377 = vmatpush1.bf16.msra.mxu0 %v3309
        %3378 = vmatprep.subr.bf16.mxu0 0
        %3379 = vmatpush1.bf16.msra.mxu0 %v3308
        %3380 = vmatprep.subr.bf16.mxu0 0
        %3381 = vmatpush2.bf16.msra.mxu0 0
        %3382 = vmatprep.subr.bf16.mxu0 0
        %3383 = vmatpush2.bf16.msra.mxu0 0
        %3384 = vmatprep.subr.bf16.mxu0 0
        %3385 = vmatpush2.bf16.msra.mxu0 0
        %3386 = vmatprep.subr.bf16.mxu0 0
        %3387 = vmatpush2.bf16.msra.mxu0 0
        %3388 = vmatprep.subr.bf16.mxu0 0
        %3389 = vmatpush2.bf16.msra.mxu0 0
        %3390 = vmatprep.subr.bf16.mxu0 0
        %3391 = vmatpush2.bf16.msra.mxu0 0
        %3392 = vmatprep.subr.bf16.mxu0 0
        %3393 = vmatpush2.bf16.msra.mxu0 0
        %3394 = vmatprep.subr.bf16.mxu0 0
        %3395 = vmatpush2.bf16.msra.mxu0 0
        %3396 = vmatprep.mubr.bf16.mxu0 0
        %3397 = vmatmul.mubr.bf16.gmra.mxu0 %v3314
        %v3398 = vpop.f32.mrf.mxu0
        %v3399 = vadd.f32 0.0, %v3398
        %v3400 = vpop.f32.mrf.mxu0
        %v3401 = vpop.f32.mrf.mxu0
        %v3402 = vadd.f32 0.0, %v3401
        %v3403 = vpop.f32.mrf.mxu0
        %3404 = vmatprep.mubr.bf16.mxu0 0
        %3405 = vmatmul.mubr.bf16.gmra.mxu0 %v3317
        %v3406 = vpop.f32.mrf.mxu0
        %v3407 = vadd.f32 0.0, %v3406
        %v3408 = vpop.f32.mrf.mxu0
        %v3409 = vpop.f32.mrf.mxu0
        %v3410 = vadd.f32 0.0, %v3409
        %v3411 = vpop.f32.mrf.mxu0
        %3412 = vmatprep.mubr.bf16.mxu0 0
        %3413 = vmatmul.mubr.bf16.gmra.mxu0 %v3320
        %v3414 = vpop.f32.mrf.mxu0
        %v3415 = vadd.f32 0.0, %v3414
        %v3416 = vpop.f32.mrf.mxu0
        %v3417 = vpop.f32.mrf.mxu0
        %v3418 = vadd.f32 0.0, %v3417
        %v3419 = vpop.f32.mrf.mxu0
        %3420 = vmatprep.mubr.bf16.mxu0 0
        %3421 = vmatmul.mubr.bf16.gmra.mxu0 %v3323
        %v3422 = vpop.f32.mrf.mxu0
        %v3423 = vadd.f32 0.0, %v3422
        %v3424 = vpop.f32.mrf.mxu0
        %v3425 = vpop.f32.mrf.mxu0
        %v3426 = vadd.f32 0.0, %v3425
        %v3427 = vpop.f32.mrf.mxu0
        %3428 = vmatprep.mubr.bf16.mxu0 0
        %3429 = vmatmul.mubr.bf16.gmra.mxu0 %v3326
        %v3430 = vpop.f32.mrf.mxu0
        %v3431 = vadd.f32 0.0, %v3430
        %v3432 = vpop.f32.mrf.mxu0
        %v3433 = vpop.f32.mrf.mxu0
        %v3434 = vadd.f32 0.0, %v3433
        %v3435 = vpop.f32.mrf.mxu0
        %3436 = vmatprep.mubr.bf16.mxu0 0
        %3437 = vmatmul.mubr.bf16.gmra.mxu0 %v3329
        %v3438 = vpop.f32.mrf.mxu0
        %v3439 = vadd.f32 0.0, %v3438
        %v3440 = vpop.f32.mrf.mxu0
        %v3441 = vpop.f32.mrf.mxu0
        %v3442 = vadd.f32 0.0, %v3441
        %v3443 = vpop.f32.mrf.mxu0
        %3444 = vmatprep.mubr.bf16.mxu0 0
        %3445 = vmatmul.mubr.bf16.gmra.mxu0 %v3332
        %v3446 = vpop.f32.mrf.mxu0
        %v3447 = vadd.f32 0.0, %v3446
        %v3448 = vpop.f32.mrf.mxu0
        %v3449 = vpop.f32.mrf.mxu0
        %v3450 = vadd.f32 0.0, %v3449
        %v3451 = vpop.f32.mrf.mxu0
        %3452 = vmatprep.mubr.bf16.mxu0 0
        %3453 = vmatmul.mubr.bf16.gmra.mxu0 %v3335
        %v3454 = vpop.f32.mrf.mxu0
        %v3455 = vadd.f32 0.0, %v3454
        %v3456 = vpop.f32.mrf.mxu0
        %v3457 = vpop.f32.mrf.mxu0
        %v3458 = vadd.f32 0.0, %v3457
        %v3459 = vpop.f32.mrf.mxu0
        %3460 = vmatprep.mubr.bf16.mxu0 0
        %3461 = vmatmul.mubr.bf16.gmra.mxu0 %v3338
        %v3462 = vpop.f32.mrf.mxu0
        %v3463 = vadd.f32 0.0, %v3462
        %v3464 = vpop.f32.mrf.mxu0
        %v3465 = vpop.f32.mrf.mxu0
        %v3466 = vadd.f32 0.0, %v3465
        %v3467 = vpop.f32.mrf.mxu0
        %3468 = vmatprep.mubr.bf16.mxu0 0
        %3469 = vmatmul.mubr.bf16.gmra.mxu0 %v3341
        %v3470 = vpop.f32.mrf.mxu0
        %v3471 = vadd.f32 0.0, %v3470
        %v3472 = vpop.f32.mrf.mxu0
        %v3473 = vpop.f32.mrf.mxu0
        %v3474 = vadd.f32 0.0, %v3473
        %v3475 = vpop.f32.mrf.mxu0
        %3476 = vmatprep.mubr.bf16.mxu0 0
        %3477 = vmatmul.mubr.bf16.gmra.mxu0 %v3344
        %v3478 = vpop.f32.mrf.mxu0
        %v3479 = vadd.f32 0.0, %v3478
        %v3480 = vpop.f32.mrf.mxu0
        %v3481 = vpop.f32.mrf.mxu0
        %v3482 = vadd.f32 0.0, %v3481
        %v3483 = vpop.f32.mrf.mxu0
        %3484 = vmatprep.mubr.bf16.mxu0 0
        %3485 = vmatmul.mubr.bf16.gmra.mxu0 %v3347
        %v3486 = vpop.f32.mrf.mxu0
        %v3487 = vadd.f32 0.0, %v3486
        %v3488 = vpop.f32.mrf.mxu0
        %v3489 = vpop.f32.mrf.mxu0
        %v3490 = vadd.f32 0.0, %v3489
        %v3491 = vpop.f32.mrf.mxu0
        %3492 = vmatprep.mubr.bf16.mxu0 0
        %3493 = vmatmul.mubr.bf16.gmra.mxu0 %v3350
        %v3494 = vpop.f32.mrf.mxu0
        %v3495 = vadd.f32 0.0, %v3494
        %v3496 = vpop.f32.mrf.mxu0
        %v3497 = vpop.f32.mrf.mxu0
        %v3498 = vadd.f32 0.0, %v3497
        %v3499 = vpop.f32.mrf.mxu0
        %3500 = vmatprep.mubr.bf16.mxu0 0
        %3501 = vmatmul.mubr.bf16.gmra.mxu0 %v3353
        %v3502 = vpop.f32.mrf.mxu0
        %v3503 = vadd.f32 0.0, %v3502
        %v3504 = vpop.f32.mrf.mxu0
        %v3505 = vpop.f32.mrf.mxu0
        %v3506 = vadd.f32 0.0, %v3505
        %v3507 = vpop.f32.mrf.mxu0
        %3508 = vmatprep.mubr.bf16.mxu0 0
        %3509 = vmatmul.mubr.bf16.gmra.mxu0 %v3356
        %v3510 = vpop.f32.mrf.mxu0
        %v3511 = vadd.f32 0.0, %v3510
        %v3512 = vpop.f32.mrf.mxu0
        %v3513 = vpop.f32.mrf.mxu0
        %v3514 = vadd.f32 0.0, %v3513
        %v3515 = vpop.f32.mrf.mxu0
        %3516 = vmatprep.mubr.bf16.mxu0 0
        %3517 = vmatmul.mubr.bf16.gmra.mxu0 %v3359
        %v3518 = vpop.f32.mrf.mxu0
        %v3519 = vadd.f32 0.0, %v3518
        %v3520 = vpop.f32.mrf.mxu0
        %v3521 = vpop.f32.mrf.mxu0
        %v3522 = vadd.f32 0.0, %v3521
        %v3523 = vpop.f32.mrf.mxu0
        %3524 = vdwg.mxu0
        %v3530 = vunpack.c.l.b16 %v3128
        %v3531 = vunpack.c.l.b16 %v3129
        %v3532 = vunpack.c.l.b16 %v3130
        %v3533 = vunpack.c.l.b16 %v3131
        %v3534 = vunpack.c.l.b16 %v3132
        %v3535 = vpack.c.b16 %v3531, %v3530
        %v3536 = vpack.c.b16 %v3533, %v3532
        %v3537 = vpack.c.b16 %v3534, %v3534
        %v3541 = vsel %vm1003, %v3133, 0
        %v3544 = vsel %vm1003, %v3134, 0
        %v3547 = vsel %vm1003, %v3135, 0
        %v3550 = vsel %vm1003, %v3136, 0
        %v3553 = vsel %vm1003, %v3137, 0
        %v3556 = vsel %vm1003, %v3138, 0
        %v3559 = vsel %vm1003, %v3139, 0
        %v3562 = vsel %vm1003, %v3140, 0
        %v3565 = vsel %vm1003, %v3141, 0
        %v3568 = vsel %vm1003, %v3142, 0
        %v3571 = vsel %vm1003, %v3143, 0
        %v3574 = vsel %vm1003, %v3144, 0
        %v3577 = vsel %vm1003, %v3145, 0
        %v3580 = vsel %vm1003, %v3146, 0
        %v3583 = vsel %vm1003, %v3147, 0
        %v3586 = vsel %vm1003, %v3148, 0
        %v3589 = vsel %vm1052, %v3537, 0
        %3591 = vmatprep.subr.bf16.mxu0 0
        %3592 = vmatpush1.bf16.msra.mxu0 0
        %3593 = vmatprep.subr.bf16.mxu0 0
        %3594 = vmatpush1.bf16.msra.mxu0 0
        %3595 = vmatprep.subr.bf16.mxu0 0
        %3596 = vmatpush1.bf16.msra.mxu0 0
        %3597 = vmatprep.subr.bf16.mxu0 0
        %3598 = vmatpush1.bf16.msra.mxu0 0
        %3599 = vmatprep.subr.bf16.mxu0 0
        %3600 = vmatpush1.bf16.msra.mxu0 0
        %3601 = vmatprep.subr.bf16.mxu0 0
        %3602 = vmatpush1.bf16.msra.mxu0 %v3589
        %3603 = vmatprep.subr.bf16.mxu0 0
        %3604 = vmatpush1.bf16.msra.mxu0 %v3536
        %3605 = vmatprep.subr.bf16.mxu0 0
        %3606 = vmatpush1.bf16.msra.mxu0 %v3535
        %3607 = vmatprep.subr.bf16.mxu0 0
        %3608 = vmatpush2.bf16.msra.mxu0 0
        %3609 = vmatprep.subr.bf16.mxu0 0
        %3610 = vmatpush2.bf16.msra.mxu0 0
        %3611 = vmatprep.subr.bf16.mxu0 0
        %3612 = vmatpush2.bf16.msra.mxu0 0
        %3613 = vmatprep.subr.bf16.mxu0 0
        %3614 = vmatpush2.bf16.msra.mxu0 0
        %3615 = vmatprep.subr.bf16.mxu0 0
        %3616 = vmatpush2.bf16.msra.mxu0 0
        %3617 = vmatprep.subr.bf16.mxu0 0
        %3618 = vmatpush2.bf16.msra.mxu0 0
        %3619 = vmatprep.subr.bf16.mxu0 0
        %3620 = vmatpush2.bf16.msra.mxu0 0
        %3621 = vmatprep.subr.bf16.mxu0 0
        %3622 = vmatpush2.bf16.msra.mxu0 0
        %3623 = vmatprep.mubr.bf16.mxu0 0
        %3624 = vmatmul.mubr.bf16.gmra.mxu0 %v3541
        %v3625 = vpop.f32.mrf.mxu0
        %v3626 = vadd.f32 %v3399, %v3625
        %v3627 = vpop.f32.mrf.mxu0
        %v3628 = vpop.f32.mrf.mxu0
        %v3629 = vadd.f32 %v3402, %v3628
        %v3630 = vpop.f32.mrf.mxu0
        %3631 = vmatprep.mubr.bf16.mxu0 0
        %3632 = vmatmul.mubr.bf16.gmra.mxu0 %v3544
        %v3633 = vpop.f32.mrf.mxu0
        %v3634 = vadd.f32 %v3407, %v3633
        %v3635 = vpop.f32.mrf.mxu0
        %v3636 = vpop.f32.mrf.mxu0
        %v3637 = vadd.f32 %v3410, %v3636
        %v3638 = vpop.f32.mrf.mxu0
        %3639 = vmatprep.mubr.bf16.mxu0 0
        %3640 = vmatmul.mubr.bf16.gmra.mxu0 %v3547
        %v3641 = vpop.f32.mrf.mxu0
        %v3642 = vadd.f32 %v3415, %v3641
        %v3643 = vpop.f32.mrf.mxu0
        %v3644 = vpop.f32.mrf.mxu0
        %v3645 = vadd.f32 %v3418, %v3644
        %v3646 = vpop.f32.mrf.mxu0
        %3647 = vmatprep.mubr.bf16.mxu0 0
        %3648 = vmatmul.mubr.bf16.gmra.mxu0 %v3550
        %v3649 = vpop.f32.mrf.mxu0
        %v3650 = vadd.f32 %v3423, %v3649
        %v3651 = vpop.f32.mrf.mxu0
        %v3652 = vpop.f32.mrf.mxu0
        %v3653 = vadd.f32 %v3426, %v3652
        %v3654 = vpop.f32.mrf.mxu0
        %3655 = vmatprep.mubr.bf16.mxu0 0
        %3656 = vmatmul.mubr.bf16.gmra.mxu0 %v3553
        %v3657 = vpop.f32.mrf.mxu0
        %v3658 = vadd.f32 %v3431, %v3657
        %v3659 = vpop.f32.mrf.mxu0
        %v3660 = vpop.f32.mrf.mxu0
        %v3661 = vadd.f32 %v3434, %v3660
        %v3662 = vpop.f32.mrf.mxu0
        %3663 = vmatprep.mubr.bf16.mxu0 0
        %3664 = vmatmul.mubr.bf16.gmra.mxu0 %v3556
        %v3665 = vpop.f32.mrf.mxu0
        %v3666 = vadd.f32 %v3439, %v3665
        %v3667 = vpop.f32.mrf.mxu0
        %v3668 = vpop.f32.mrf.mxu0
        %v3669 = vadd.f32 %v3442, %v3668
        %v3670 = vpop.f32.mrf.mxu0
        %3671 = vmatprep.mubr.bf16.mxu0 0
        %3672 = vmatmul.mubr.bf16.gmra.mxu0 %v3559
        %v3673 = vpop.f32.mrf.mxu0
        %v3674 = vadd.f32 %v3447, %v3673
        %v3675 = vpop.f32.mrf.mxu0
        %v3676 = vpop.f32.mrf.mxu0
        %v3677 = vadd.f32 %v3450, %v3676
        %v3678 = vpop.f32.mrf.mxu0
        %3679 = vmatprep.mubr.bf16.mxu0 0
        %3680 = vmatmul.mubr.bf16.gmra.mxu0 %v3562
        %v3681 = vpop.f32.mrf.mxu0
        %v3682 = vadd.f32 %v3455, %v3681
        %v3683 = vpop.f32.mrf.mxu0
        %v3684 = vpop.f32.mrf.mxu0
        %v3685 = vadd.f32 %v3458, %v3684
        %v3686 = vpop.f32.mrf.mxu0
        %3687 = vmatprep.mubr.bf16.mxu0 0
        %3688 = vmatmul.mubr.bf16.gmra.mxu0 %v3565
        %v3689 = vpop.f32.mrf.mxu0
        %v3690 = vadd.f32 %v3463, %v3689
        %v3691 = vpop.f32.mrf.mxu0
        %v3692 = vpop.f32.mrf.mxu0
        %v3693 = vadd.f32 %v3466, %v3692
        %v3694 = vpop.f32.mrf.mxu0
        %3695 = vmatprep.mubr.bf16.mxu0 0
        %3696 = vmatmul.mubr.bf16.gmra.mxu0 %v3568
        %v3697 = vpop.f32.mrf.mxu0
        %v3698 = vadd.f32 %v3471, %v3697
        %v3699 = vpop.f32.mrf.mxu0
        %v3700 = vpop.f32.mrf.mxu0
        %v3701 = vadd.f32 %v3474, %v3700
        %v3702 = vpop.f32.mrf.mxu0
        %3703 = vmatprep.mubr.bf16.mxu0 0
        %3704 = vmatmul.mubr.bf16.gmra.mxu0 %v3571
        %v3705 = vpop.f32.mrf.mxu0
        %v3706 = vadd.f32 %v3479, %v3705
        %v3707 = vpop.f32.mrf.mxu0
        %v3708 = vpop.f32.mrf.mxu0
        %v3709 = vadd.f32 %v3482, %v3708
        %v3710 = vpop.f32.mrf.mxu0
        %3711 = vmatprep.mubr.bf16.mxu0 0
        %3712 = vmatmul.mubr.bf16.gmra.mxu0 %v3574
        %v3713 = vpop.f32.mrf.mxu0
        %v3714 = vadd.f32 %v3487, %v3713
        %v3715 = vpop.f32.mrf.mxu0
        %v3716 = vpop.f32.mrf.mxu0
        %v3717 = vadd.f32 %v3490, %v3716
        %v3718 = vpop.f32.mrf.mxu0
        %3719 = vmatprep.mubr.bf16.mxu0 0
        %3720 = vmatmul.mubr.bf16.gmra.mxu0 %v3577
        %v3721 = vpop.f32.mrf.mxu0
        %v3722 = vadd.f32 %v3495, %v3721
        %v3723 = vpop.f32.mrf.mxu0
        %v3724 = vpop.f32.mrf.mxu0
        %v3725 = vadd.f32 %v3498, %v3724
        %v3726 = vpop.f32.mrf.mxu0
        %3727 = vmatprep.mubr.bf16.mxu0 0
        %3728 = vmatmul.mubr.bf16.gmra.mxu0 %v3580
        %v3729 = vpop.f32.mrf.mxu0
        %v3730 = vadd.f32 %v3503, %v3729
        %v3731 = vpop.f32.mrf.mxu0
        %v3732 = vpop.f32.mrf.mxu0
        %v3733 = vadd.f32 %v3506, %v3732
        %v3734 = vpop.f32.mrf.mxu0
        %3735 = vmatprep.mubr.bf16.mxu0 0
        %3736 = vmatmul.mubr.bf16.gmra.mxu0 %v3583
        %v3737 = vpop.f32.mrf.mxu0
        %v3738 = vadd.f32 %v3511, %v3737
        %v3739 = vpop.f32.mrf.mxu0
        %v3740 = vpop.f32.mrf.mxu0
        %v3741 = vadd.f32 %v3514, %v3740
        %v3742 = vpop.f32.mrf.mxu0
        %3743 = vmatprep.mubr.bf16.mxu0 0
        %3744 = vmatmul.mubr.bf16.gmra.mxu0 %v3586
        %v3745 = vpop.f32.mrf.mxu0
        %v3746 = vadd.f32 %v3519, %v3745
        %v3747 = vpop.f32.mrf.mxu0
        %v3748 = vpop.f32.mrf.mxu0
        %v3749 = vadd.f32 %v3522, %v3748
        %v3750 = vpop.f32.mrf.mxu0
        %3751 = vdwg.mxu0
        %vm3752 = vcmp.lt.s32.totalorder %v515, 14
        %vm3753 = vcmp.lt.s32.totalorder %v516, 14
        %vm3754 = vcmp.lt.s32.totalorder %v517, 14
        %vm3755 = vcmp.lt.s32.totalorder %v518, 14
        %vm3756 = vcmp.lt.s32.totalorder %v519, 14
        %vm3757 = vcmp.lt.s32.totalorder %v520, 14
        %vm3758 = vcmp.lt.s32.totalorder %v521, 14
        %vm3759 = vcmp.lt.s32.totalorder %v522, 14
        %vm3760 = vcmp.lt.s32.totalorder %v523, 14
        %vm3761 = vcmp.lt.s32.totalorder %v524, 14
        %vm3762 = vcmp.lt.s32.totalorder %v525, 14
        %vm3763 = vcmp.lt.s32.totalorder %v526, 14
        %vm3764 = vcmp.lt.s32.totalorder %v527, 14
        %vm3765 = vcmp.lt.s32.totalorder %v528, 14
        %vm3766 = vcmp.lt.s32.totalorder %v529, 14
        %vm3767 = vcmp.lt.s32.totalorder %v530, 14
        %vm3768 = vcmp.lt.s32.totalorder %v531, 14
        %vm3769 = vcmp.lt.s32.totalorder %v532, 14
        %vm3770 = vcmp.lt.s32.totalorder %v533, 14
        %vm3771 = vcmp.lt.s32.totalorder %v534, 14
        %vm3772 = vcmp.lt.s32.totalorder %v535, 14
        %vm3773 = vcmp.lt.s32.totalorder %v536, 14
        %vm3774 = vcmp.lt.s32.totalorder %v537, 14
        %vm3775 = vcmp.lt.s32.totalorder %v538, 14
        %vm3776 = vcmp.lt.s32.totalorder %v539, 14
        %vm3777 = vcmp.lt.s32.totalorder %v540, 14
        %vm3778 = vcmp.lt.s32.totalorder %v541, 14
        %vm3779 = vcmp.lt.s32.totalorder %v542, 14
        %vm3780 = vcmp.lt.s32.totalorder %v543, 14
        %vm3781 = vcmp.lt.s32.totalorder %v544, 14
        %vm3782 = vcmp.lt.s32.totalorder %v545, 14
        %vm3783 = vcmp.lt.s32.totalorder %v546, 14
        %v3784 = vsel %vm3752, 1, 0
        %v3785 = vsel %vm3753, 1, 0
        %v3786 = vsel %vm3754, 1, 0
        %v3787 = vsel %vm3755, 1, 0
        %v3788 = vsel %vm3756, 1, 0
        %v3789 = vsel %vm3757, 1, 0
        %v3790 = vsel %vm3758, 1, 0
        %v3791 = vsel %vm3759, 1, 0
        %v3792 = vsel %vm3760, 1, 0
        %v3793 = vsel %vm3761, 1, 0
        %v3794 = vsel %vm3762, 1, 0
        %v3795 = vsel %vm3763, 1, 0
        %v3796 = vsel %vm3764, 1, 0
        %v3797 = vsel %vm3765, 1, 0
        %v3798 = vsel %vm3766, 1, 0
        %v3799 = vsel %vm3767, 1, 0
        %v3800 = vsel %vm3768, 1, 0
        %v3801 = vsel %vm3769, 1, 0
        %v3802 = vsel %vm3770, 1, 0
        %v3803 = vsel %vm3771, 1, 0
        %v3804 = vsel %vm3772, 1, 0
        %v3805 = vsel %vm3773, 1, 0
        %v3806 = vsel %vm3774, 1, 0
        %v3807 = vsel %vm3775, 1, 0
        %v3808 = vsel %vm3776, 1, 0
        %v3809 = vsel %vm3777, 1, 0
        %v3810 = vsel %vm3778, 1, 0
        %v3811 = vsel %vm3779, 1, 0
        %v3812 = vsel %vm3780, 1, 0
        %v3813 = vsel %vm3781, 1, 0
        %v3814 = vsel %vm3782, 1, 0
        %v3815 = vsel %vm3783, 1, 0
        %vm3816 = vcmp.eq.s32.totalorder %v3784, 1
        %vm3817 = vcmp.eq.s32.totalorder %v3785, 1
        %vm3818 = vcmp.eq.s32.totalorder %v3786, 1
        %vm3819 = vcmp.eq.s32.totalorder %v3787, 1
        %vm3820 = vcmp.eq.s32.totalorder %v3788, 1
        %vm3821 = vcmp.eq.s32.totalorder %v3789, 1
        %vm3822 = vcmp.eq.s32.totalorder %v3790, 1
        %vm3823 = vcmp.eq.s32.totalorder %v3791, 1
        %vm3824 = vcmp.eq.s32.totalorder %v3792, 1
        %vm3825 = vcmp.eq.s32.totalorder %v3793, 1
        %vm3826 = vcmp.eq.s32.totalorder %v3794, 1
        %vm3827 = vcmp.eq.s32.totalorder %v3795, 1
        %vm3828 = vcmp.eq.s32.totalorder %v3796, 1
        %vm3829 = vcmp.eq.s32.totalorder %v3797, 1
        %vm3830 = vcmp.eq.s32.totalorder %v3798, 1
        %vm3831 = vcmp.eq.s32.totalorder %v3799, 1
        %vm3832 = vcmp.eq.s32.totalorder %v3800, 1
        %vm3833 = vcmp.eq.s32.totalorder %v3801, 1
        %vm3834 = vcmp.eq.s32.totalorder %v3802, 1
        %vm3835 = vcmp.eq.s32.totalorder %v3803, 1
        %vm3836 = vcmp.eq.s32.totalorder %v3804, 1
        %vm3837 = vcmp.eq.s32.totalorder %v3805, 1
        %vm3838 = vcmp.eq.s32.totalorder %v3806, 1
        %vm3839 = vcmp.eq.s32.totalorder %v3807, 1
        %vm3840 = vcmp.eq.s32.totalorder %v3808, 1
        %vm3841 = vcmp.eq.s32.totalorder %v3809, 1
        %vm3842 = vcmp.eq.s32.totalorder %v3810, 1
        %vm3843 = vcmp.eq.s32.totalorder %v3811, 1
        %vm3844 = vcmp.eq.s32.totalorder %v3812, 1
        %vm3845 = vcmp.eq.s32.totalorder %v3813, 1
        %vm3846 = vcmp.eq.s32.totalorder %v3814, 1
        %vm3847 = vcmp.eq.s32.totalorder %v3815, 1
        %v3848 = vsel %vm3816, %v3099, 0.0
        %v3849 = vsel %vm3817, %v3100, 0.0
        %v3850 = vsel %vm3818, %v3101, 0.0
        %v3851 = vsel %vm3819, %v3102, 0.0
        %v3852 = vsel %vm3820, %v3103, 0.0
        %v3853 = vsel %vm3821, %v3104, 0.0
        %v3854 = vsel %vm3822, %v3105, 0.0
        %v3855 = vsel %vm3823, %v3106, 0.0
        %v3856 = vsel %vm3824, %v3107, 0.0
        %v3857 = vsel %vm3825, %v3108, 0.0
        %v3858 = vsel %vm3826, %v3109, 0.0
        %v3859 = vsel %vm3827, %v3110, 0.0
        %v3860 = vsel %vm3828, %v3111, 0.0
        %v3861 = vsel %vm3829, %v3112, 0.0
        %v3862 = vsel %vm3830, %v3113, 0.0
        %v3863 = vsel %vm3831, %v3114, 0.0
        %v3864 = vsel %vm3832, %v3115, 0.0
        %v3865 = vsel %vm3833, %v3116, 0.0
        %v3866 = vsel %vm3834, %v3117, 0.0
        %v3867 = vsel %vm3835, %v3118, 0.0
        %v3868 = vsel %vm3836, %v3119, 0.0
        %v3869 = vsel %vm3837, %v3120, 0.0
        %v3870 = vsel %vm3838, %v3121, 0.0
        %v3871 = vsel %vm3839, %v3122, 0.0
        %v3872 = vsel %vm3840, %v3123, 0.0
        %v3873 = vsel %vm3841, %v3124, 0.0
        %v3874 = vsel %vm3842, %v3125, 0.0
        %v3875 = vsel %vm3843, %v3126, 0.0
        %v3876 = vsel %vm3844, %v3095, 0.0
        %v3877 = vsel %vm3845, %v3096, 0.0
        %v3878 = vsel %vm3846, %v3097, 0.0
        %v3879 = vsel %vm3847, %v3098, 0.0
        %s3880 = scalar_lea.vmem %s7, 40
        %v3881 = vld [vmem:[%s3880] sm:$0xf]
        %v3882 = vld [vmem:[%s3880 + $0x4] sm:$0xf]
        %v3883 = vld [vmem:[%s3880 + $0x8] sm:$0xf]
        %v3884 = vld [vmem:[%s3880 + $0xc] sm:$0xf]
        %v3885 = vld [vmem:[%s3880 + $0x10] sm:$0xf]
        %v3886 = vpack.c.bf16 %v3849, %v3848
        %v3887 = vpack.c.bf16 %v3851, %v3850
        %v3888 = vpack.c.bf16 %v3853, %v3852
        %v3889 = vpack.c.bf16 %v3855, %v3854
        %v3890 = vpack.c.bf16 %v3857, %v3856
        %v3891 = vpack.c.bf16 %v3859, %v3858
        %v3892 = vpack.c.bf16 %v3861, %v3860
        %v3893 = vpack.c.bf16 %v3863, %v3862
        %v3894 = vpack.c.bf16 %v3865, %v3864
        %v3895 = vpack.c.bf16 %v3867, %v3866
        %v3896 = vpack.c.bf16 %v3869, %v3868
        %v3897 = vpack.c.bf16 %v3871, %v3870
        %v3898 = vpack.c.bf16 %v3873, %v3872
        %v3899 = vpack.c.bf16 %v3875, %v3874
        %v3900 = vpack.c.bf16 %v3877, %v3876
        %v3901 = vpack.c.bf16 %v3879, %v3878
        %v3907 = vunpack.c.l.b16 %v3881
        %v3908 = vunpack.c.l.b16 %v3882
        %v3909 = vunpack.c.l.b16 %v3883
        %v3910 = vunpack.c.l.b16 %v3884
        %v3911 = vunpack.c.l.b16 %v3885
        %v3912 = vpack.c.b16 %v3908, %v3907
        %v3913 = vpack.c.b16 %v3910, %v3909
        %v3914 = vpack.c.b16 %v3911, %v3911
        %v3918 = vsel %vm1003, %v3886, 0
        %v3921 = vsel %vm1003, %v3887, 0
        %v3924 = vsel %vm1003, %v3888, 0
        %v3927 = vsel %vm1003, %v3889, 0
        %v3930 = vsel %vm1003, %v3890, 0
        %v3933 = vsel %vm1003, %v3891, 0
        %v3936 = vsel %vm1003, %v3892, 0
        %v3939 = vsel %vm1003, %v3893, 0
        %v3942 = vsel %vm1003, %v3894, 0
        %v3945 = vsel %vm1003, %v3895, 0
        %v3948 = vsel %vm1003, %v3896, 0
        %v3951 = vsel %vm1003, %v3897, 0
        %v3954 = vsel %vm1003, %v3898, 0
        %v3957 = vsel %vm1003, %v3899, 0
        %v3960 = vsel %vm1003, %v3900, 0
        %v3963 = vsel %vm1003, %v3901, 0
        %v3966 = vsel %vm1052, %v3914, 0
        %3968 = vmatprep.subr.bf16.mxu0 0
        %3969 = vmatpush1.bf16.msra.mxu0 0
        %3970 = vmatprep.subr.bf16.mxu0 0
        %3971 = vmatpush1.bf16.msra.mxu0 0
        %3972 = vmatprep.subr.bf16.mxu0 0
        %3973 = vmatpush1.bf16.msra.mxu0 0
        %3974 = vmatprep.subr.bf16.mxu0 0
        %3975 = vmatpush1.bf16.msra.mxu0 0
        %3976 = vmatprep.subr.bf16.mxu0 0
        %3977 = vmatpush1.bf16.msra.mxu0 0
        %3978 = vmatprep.subr.bf16.mxu0 0
        %3979 = vmatpush1.bf16.msra.mxu0 %v3966
        %3980 = vmatprep.subr.bf16.mxu0 0
        %3981 = vmatpush1.bf16.msra.mxu0 %v3913
        %3982 = vmatprep.subr.bf16.mxu0 0
        %3983 = vmatpush1.bf16.msra.mxu0 %v3912
        %3984 = vmatprep.subr.bf16.mxu0 0
        %3985 = vmatpush2.bf16.msra.mxu0 0
        %3986 = vmatprep.subr.bf16.mxu0 0
        %3987 = vmatpush2.bf16.msra.mxu0 0
        %3988 = vmatprep.subr.bf16.mxu0 0
        %3989 = vmatpush2.bf16.msra.mxu0 0
        %3990 = vmatprep.subr.bf16.mxu0 0
        %3991 = vmatpush2.bf16.msra.mxu0 0
        %3992 = vmatprep.subr.bf16.mxu0 0
        %3993 = vmatpush2.bf16.msra.mxu0 0
        %3994 = vmatprep.subr.bf16.mxu0 0
        %3995 = vmatpush2.bf16.msra.mxu0 0
        %3996 = vmatprep.subr.bf16.mxu0 0
        %3997 = vmatpush2.bf16.msra.mxu0 0
        %3998 = vmatprep.subr.bf16.mxu0 0
        %3999 = vmatpush2.bf16.msra.mxu0 0
        %4000 = vmatprep.mubr.bf16.mxu0 0
        %4001 = vmatmul.mubr.bf16.gmra.mxu0 %v3918
        %v4002 = vpop.f32.mrf.mxu0
        %v4003 = vadd.f32 0.0, %v4002
        %v4004 = vpop.f32.mrf.mxu0
        %v4005 = vpop.f32.mrf.mxu0
        %v4006 = vadd.f32 0.0, %v4005
        %v4007 = vpop.f32.mrf.mxu0
        %4008 = vmatprep.mubr.bf16.mxu0 0
        %4009 = vmatmul.mubr.bf16.gmra.mxu0 %v3921
        %v4010 = vpop.f32.mrf.mxu0
        %v4011 = vadd.f32 0.0, %v4010
        %v4012 = vpop.f32.mrf.mxu0
        %v4013 = vpop.f32.mrf.mxu0
        %v4014 = vadd.f32 0.0, %v4013
        %v4015 = vpop.f32.mrf.mxu0
        %4016 = vmatprep.mubr.bf16.mxu0 0
        %4017 = vmatmul.mubr.bf16.gmra.mxu0 %v3924
        %v4018 = vpop.f32.mrf.mxu0
        %v4019 = vadd.f32 0.0, %v4018
        %v4020 = vpop.f32.mrf.mxu0
        %v4021 = vpop.f32.mrf.mxu0
        %v4022 = vadd.f32 0.0, %v4021
        %v4023 = vpop.f32.mrf.mxu0
        %4024 = vmatprep.mubr.bf16.mxu0 0
        %4025 = vmatmul.mubr.bf16.gmra.mxu0 %v3927
        %v4026 = vpop.f32.mrf.mxu0
        %v4027 = vadd.f32 0.0, %v4026
        %v4028 = vpop.f32.mrf.mxu0
        %v4029 = vpop.f32.mrf.mxu0
        %v4030 = vadd.f32 0.0, %v4029
        %v4031 = vpop.f32.mrf.mxu0
        %4032 = vmatprep.mubr.bf16.mxu0 0
        %4033 = vmatmul.mubr.bf16.gmra.mxu0 %v3930
        %v4034 = vpop.f32.mrf.mxu0
        %v4035 = vadd.f32 0.0, %v4034
        %v4036 = vpop.f32.mrf.mxu0
        %v4037 = vpop.f32.mrf.mxu0
        %v4038 = vadd.f32 0.0, %v4037
        %v4039 = vpop.f32.mrf.mxu0
        %4040 = vmatprep.mubr.bf16.mxu0 0
        %4041 = vmatmul.mubr.bf16.gmra.mxu0 %v3933
        %v4042 = vpop.f32.mrf.mxu0
        %v4043 = vadd.f32 0.0, %v4042
        %v4044 = vpop.f32.mrf.mxu0
        %v4045 = vpop.f32.mrf.mxu0
        %v4046 = vadd.f32 0.0, %v4045
        %v4047 = vpop.f32.mrf.mxu0
        %4048 = vmatprep.mubr.bf16.mxu0 0
        %4049 = vmatmul.mubr.bf16.gmra.mxu0 %v3936
        %v4050 = vpop.f32.mrf.mxu0
        %v4051 = vadd.f32 0.0, %v4050
        %v4052 = vpop.f32.mrf.mxu0
        %v4053 = vpop.f32.mrf.mxu0
        %v4054 = vadd.f32 0.0, %v4053
        %v4055 = vpop.f32.mrf.mxu0
        %4056 = vmatprep.mubr.bf16.mxu0 0
        %4057 = vmatmul.mubr.bf16.gmra.mxu0 %v3939
        %v4058 = vpop.f32.mrf.mxu0
        %v4059 = vadd.f32 0.0, %v4058
        %v4060 = vpop.f32.mrf.mxu0
        %v4061 = vpop.f32.mrf.mxu0
        %v4062 = vadd.f32 0.0, %v4061
        %v4063 = vpop.f32.mrf.mxu0
        %4064 = vmatprep.mubr.bf16.mxu0 0
        %4065 = vmatmul.mubr.bf16.gmra.mxu0 %v3942
        %v4066 = vpop.f32.mrf.mxu0
        %v4067 = vadd.f32 0.0, %v4066
        %v4068 = vpop.f32.mrf.mxu0
        %v4069 = vpop.f32.mrf.mxu0
        %v4070 = vadd.f32 0.0, %v4069
        %v4071 = vpop.f32.mrf.mxu0
        %4072 = vmatprep.mubr.bf16.mxu0 0
        %4073 = vmatmul.mubr.bf16.gmra.mxu0 %v3945
        %v4074 = vpop.f32.mrf.mxu0
        %v4075 = vadd.f32 0.0, %v4074
        %v4076 = vpop.f32.mrf.mxu0
        %v4077 = vpop.f32.mrf.mxu0
        %v4078 = vadd.f32 0.0, %v4077
        %v4079 = vpop.f32.mrf.mxu0
        %4080 = vmatprep.mubr.bf16.mxu0 0
        %4081 = vmatmul.mubr.bf16.gmra.mxu0 %v3948
        %v4082 = vpop.f32.mrf.mxu0
        %v4083 = vadd.f32 0.0, %v4082
        %v4084 = vpop.f32.mrf.mxu0
        %v4085 = vpop.f32.mrf.mxu0
        %v4086 = vadd.f32 0.0, %v4085
        %v4087 = vpop.f32.mrf.mxu0
        %4088 = vmatprep.mubr.bf16.mxu0 0
        %4089 = vmatmul.mubr.bf16.gmra.mxu0 %v3951
        %v4090 = vpop.f32.mrf.mxu0
        %v4091 = vadd.f32 0.0, %v4090
        %v4092 = vpop.f32.mrf.mxu0
        %v4093 = vpop.f32.mrf.mxu0
        %v4094 = vadd.f32 0.0, %v4093
        %v4095 = vpop.f32.mrf.mxu0
        %4096 = vmatprep.mubr.bf16.mxu0 0
        %4097 = vmatmul.mubr.bf16.gmra.mxu0 %v3954
        %v4098 = vpop.f32.mrf.mxu0
        %v4099 = vadd.f32 0.0, %v4098
        %v4100 = vpop.f32.mrf.mxu0
        %v4101 = vpop.f32.mrf.mxu0
        %v4102 = vadd.f32 0.0, %v4101
        %v4103 = vpop.f32.mrf.mxu0
        %4104 = vmatprep.mubr.bf16.mxu0 0
        %4105 = vmatmul.mubr.bf16.gmra.mxu0 %v3957
        %v4106 = vpop.f32.mrf.mxu0
        %v4107 = vadd.f32 0.0, %v4106
        %v4108 = vpop.f32.mrf.mxu0
        %v4109 = vpop.f32.mrf.mxu0
        %v4110 = vadd.f32 0.0, %v4109
        %v4111 = vpop.f32.mrf.mxu0
        %4112 = vmatprep.mubr.bf16.mxu0 0
        %4113 = vmatmul.mubr.bf16.gmra.mxu0 %v3960
        %v4114 = vpop.f32.mrf.mxu0
        %v4115 = vadd.f32 0.0, %v4114
        %v4116 = vpop.f32.mrf.mxu0
        %v4117 = vpop.f32.mrf.mxu0
        %v4118 = vadd.f32 0.0, %v4117
        %v4119 = vpop.f32.mrf.mxu0
        %4120 = vmatprep.mubr.bf16.mxu0 0
        %4121 = vmatmul.mubr.bf16.gmra.mxu0 %v3963
        %v4122 = vpop.f32.mrf.mxu0
        %v4123 = vadd.f32 0.0, %v4122
        %v4124 = vpop.f32.mrf.mxu0
        %v4125 = vpop.f32.mrf.mxu0
        %v4126 = vadd.f32 0.0, %v4125
        %v4127 = vpop.f32.mrf.mxu0
        %4128 = vdwg.mxu0
        %v4129 = vadd.f32 %v3626, %v4003
        %v4130 = vadd.f32 %v3629, %v4006
        %v4131 = vadd.f32 %v3634, %v4011
        %v4132 = vadd.f32 %v3637, %v4014
        %v4133 = vadd.f32 %v3642, %v4019
        %v4134 = vadd.f32 %v3645, %v4022
        %v4135 = vadd.f32 %v3650, %v4027
        %v4136 = vadd.f32 %v3653, %v4030
        %v4137 = vadd.f32 %v3658, %v4035
        %v4138 = vadd.f32 %v3661, %v4038
        %v4139 = vadd.f32 %v3666, %v4043
        %v4140 = vadd.f32 %v3669, %v4046
        %v4141 = vadd.f32 %v3674, %v4051
        %v4142 = vadd.f32 %v3677, %v4054
        %v4143 = vadd.f32 %v3682, %v4059
        %v4144 = vadd.f32 %v3685, %v4062
        %v4145 = vadd.f32 %v3690, %v4067
        %v4146 = vadd.f32 %v3693, %v4070
        %v4147 = vadd.f32 %v3698, %v4075
        %v4148 = vadd.f32 %v3701, %v4078
        %v4149 = vadd.f32 %v3706, %v4083
        %v4150 = vadd.f32 %v3709, %v4086
        %v4151 = vadd.f32 %v3714, %v4091
        %v4152 = vadd.f32 %v3717, %v4094
        %v4153 = vadd.f32 %v3722, %v4099
        %v4154 = vadd.f32 %v3725, %v4102
        %v4155 = vadd.f32 %v3730, %v4107
        %v4156 = vadd.f32 %v3733, %v4110
        %v4157 = vadd.f32 %v3738, %v4115
        %v4158 = vadd.f32 %v3741, %v4118
        %v4159 = vadd.f32 %v3746, %v4123
        %v4160 = vadd.f32 %v3749, %v4126
        %v4161 = vld [vmem:[%s8] sm:$0x1]
        %v4163 = vlaneseq
        %v4164 = vshrl.u32 %v4163, 7
        %v4165 = vsub.s32 0, %v4164
        %v4166 = vrot.slane %v4161, %v4165
        %v4168 = vadd.f32 %v4129, %v4166
        %v4169 = vadd.f32 %v4130, %v4166
        %v4170 = vadd.f32 %v4131, %v4166
        %v4171 = vadd.f32 %v4132, %v4166
        %v4172 = vadd.f32 %v4133, %v4166
        %v4173 = vadd.f32 %v4134, %v4166
        %v4174 = vadd.f32 %v4135, %v4166
        %v4175 = vadd.f32 %v4136, %v4166
        %v4176 = vadd.f32 %v4137, %v4166
        %v4177 = vadd.f32 %v4138, %v4166
        %v4178 = vadd.f32 %v4139, %v4166
        %v4179 = vadd.f32 %v4140, %v4166
        %v4180 = vadd.f32 %v4141, %v4166
        %v4181 = vadd.f32 %v4142, %v4166
        %v4182 = vadd.f32 %v4143, %v4166
        %v4183 = vadd.f32 %v4144, %v4166
        %v4184 = vadd.f32 %v4145, %v4166
        %v4185 = vadd.f32 %v4146, %v4166
        %v4186 = vadd.f32 %v4147, %v4166
        %v4187 = vadd.f32 %v4148, %v4166
        %v4188 = vadd.f32 %v4149, %v4166
        %v4189 = vadd.f32 %v4150, %v4166
        %v4190 = vadd.f32 %v4151, %v4166
        %v4191 = vadd.f32 %v4152, %v4166
        %v4192 = vadd.f32 %v4153, %v4166
        %v4193 = vadd.f32 %v4154, %v4166
        %v4194 = vadd.f32 %v4155, %v4166
        %v4195 = vadd.f32 %v4156, %v4166
        %v4196 = vadd.f32 %v4157, %v4166
        %v4197 = vadd.f32 %v4158, %v4166
        %v4198 = vadd.f32 %v4159, %v4166
        %v4199 = vadd.f32 %v4160, %v4166
        %s4200 = scalar_lea.vmem %s9, 20
        %v4201 = vld [vmem:[%s4200] sm:$0xf]
        %v4202 = vld [vmem:[%s4200 + $0x4] sm:$0xf]
        %v4203 = vld [vmem:[%s4200 + $0x8] sm:$0xf]
        %v4204 = vld [vmem:[%s4200 + $0xc] sm:$0xf]
        %v4205 = vld [vmem:[%s4200 + $0x10] sm:$0xf]
        %v4206 = vpack.c.bf16 %v4169, %v4168
        %v4207 = vpack.c.bf16 %v4171, %v4170
        %v4208 = vpack.c.bf16 %v4173, %v4172
        %v4209 = vpack.c.bf16 %v4175, %v4174
        %v4210 = vpack.c.bf16 %v4177, %v4176
        %v4211 = vpack.c.bf16 %v4179, %v4178
        %v4212 = vpack.c.bf16 %v4181, %v4180
        %v4213 = vpack.c.bf16 %v4183, %v4182
        %v4214 = vpack.c.bf16 %v4185, %v4184
        %v4215 = vpack.c.bf16 %v4187, %v4186
        %v4216 = vpack.c.bf16 %v4189, %v4188
        %v4217 = vpack.c.bf16 %v4191, %v4190
        %v4218 = vpack.c.bf16 %v4193, %v4192
        %v4219 = vpack.c.bf16 %v4195, %v4194
        %v4220 = vpack.c.bf16 %v4197, %v4196
        %v4221 = vpack.c.bf16 %v4199, %v4198
        %v4222 = vrot.slane %v4168, 6
        %v4223 = vrot.slane %v4169, 6
        %v4224 = vrot.slane %v4170, 6
        %v4225 = vrot.slane %v4171, 6
        %v4226 = vrot.slane %v4172, 6
        %v4227 = vrot.slane %v4173, 6
        %v4228 = vrot.slane %v4174, 6
        %v4229 = vrot.slane %v4175, 6
        %v4230 = vrot.slane %v4176, 6
        %v4231 = vrot.slane %v4177, 6
        %v4232 = vrot.slane %v4178, 6
        %v4233 = vrot.slane %v4179, 6
        %v4234 = vrot.slane %v4180, 6
        %v4235 = vrot.slane %v4181, 6
        %v4236 = vrot.slane %v4182, 6
        %v4237 = vrot.slane %v4183, 6
        %v4238 = vrot.slane %v4184, 6
        %v4239 = vrot.slane %v4185, 6
        %v4240 = vrot.slane %v4186, 6
        %v4241 = vrot.slane %v4187, 6
        %v4242 = vrot.slane %v4188, 6
        %v4243 = vrot.slane %v4189, 6
        %v4244 = vrot.slane %v4190, 6
        %v4245 = vrot.slane %v4191, 6
        %v4246 = vrot.slane %v4192, 6
        %v4247 = vrot.slane %v4193, 6
        %v4248 = vrot.slane %v4194, 6
        %v4249 = vrot.slane %v4195, 6
        %v4250 = vrot.slane %v4196, 6
        %v4251 = vrot.slane %v4197, 6
        %v4252 = vrot.slane %v4198, 6
        %v4253 = vrot.slane %v4199, 6
        %vm4254 = vcmp.lt.s32.totalorder %v419, 2
        %v4255 = vsel %vm4254, %v4252, %v4253
        %v4256 = vsel %vm4254, %v4251, %v4252
        %v4257 = vsel %vm4254, %v4250, %v4251
        %v4258 = vsel %vm4254, %v4249, %v4250
        %v4259 = vsel %vm4254, %v4248, %v4249
        %v4260 = vsel %vm4254, %v4247, %v4248
        %v4261 = vsel %vm4254, %v4246, %v4247
        %v4262 = vsel %vm4254, %v4245, %v4246
        %v4263 = vsel %vm4254, %v4244, %v4245
        %v4264 = vsel %vm4254, %v4243, %v4244
        %v4265 = vsel %vm4254, %v4242, %v4243
        %v4266 = vsel %vm4254, %v4241, %v4242
        %v4267 = vsel %vm4254, %v4240, %v4241
        %v4268 = vsel %vm4254, %v4239, %v4240
        %v4269 = vsel %vm4254, %v4238, %v4239
        %v4270 = vsel %vm4254, %v4237, %v4238
        %v4271 = vsel %vm4254, %v4236, %v4237
        %v4272 = vsel %vm4254, %v4235, %v4236
        %v4273 = vsel %vm4254, %v4234, %v4235
        %v4274 = vsel %vm4254, %v4233, %v4234
        %v4275 = vsel %vm4254, %v4232, %v4233
        %v4276 = vsel %vm4254, %v4231, %v4232
        %v4277 = vsel %vm4254, %v4230, %v4231
        %v4278 = vsel %vm4254, %v4229, %v4230
        %v4279 = vsel %vm4254, %v4228, %v4229
        %v4280 = vsel %vm4254, %v4227, %v4228
        %v4281 = vsel %vm4254, %v4226, %v4227
        %v4282 = vsel %vm4254, %v4225, %v4226
        %v4283 = vsel %vm4254, %v4224, %v4225
        %v4284 = vsel %vm4254, %v4223, %v4224
        %v4285 = vsel %vm4254, %v4222, %v4223
        %v4286 = vsel %vm4254, %v4253, %v4222
        %vm4287 = vcmp.ge.s32.totalorder %v451, 2
        %vm4288 = vcmp.ge.s32.totalorder %v452, 2
        %vm4289 = vcmp.ge.s32.totalorder %v453, 2
        %vm4290 = vcmp.ge.s32.totalorder %v454, 2
        %vm4291 = vcmp.ge.s32.totalorder %v455, 2
        %vm4292 = vcmp.ge.s32.totalorder %v456, 2
        %vm4293 = vcmp.ge.s32.totalorder %v457, 2
        %vm4294 = vcmp.ge.s32.totalorder %v458, 2
        %vm4295 = vcmp.ge.s32.totalorder %v459, 2
        %vm4296 = vcmp.ge.s32.totalorder %v460, 2
        %vm4297 = vcmp.ge.s32.totalorder %v461, 2
        %vm4298 = vcmp.ge.s32.totalorder %v462, 2
        %vm4299 = vcmp.ge.s32.totalorder %v463, 2
        %vm4300 = vcmp.ge.s32.totalorder %v464, 2
        %vm4301 = vcmp.ge.s32.totalorder %v465, 2
        %vm4302 = vcmp.ge.s32.totalorder %v466, 2
        %vm4303 = vcmp.ge.s32.totalorder %v467, 2
        %vm4304 = vcmp.ge.s32.totalorder %v468, 2
        %vm4305 = vcmp.ge.s32.totalorder %v469, 2
        %vm4306 = vcmp.ge.s32.totalorder %v470, 2
        %vm4307 = vcmp.ge.s32.totalorder %v471, 2
        %vm4308 = vcmp.ge.s32.totalorder %v472, 2
        %vm4309 = vcmp.ge.s32.totalorder %v473, 2
        %vm4310 = vcmp.ge.s32.totalorder %v474, 2
        %vm4311 = vcmp.ge.s32.totalorder %v475, 2
        %vm4312 = vcmp.ge.s32.totalorder %v476, 2
        %vm4313 = vcmp.ge.s32.totalorder %v477, 2
        %vm4314 = vcmp.ge.s32.totalorder %v478, 2
        %vm4315 = vcmp.ge.s32.totalorder %v479, 2
        %vm4316 = vcmp.ge.s32.totalorder %v480, 2
        %vm4317 = vcmp.ge.s32.totalorder %v481, 2
        %vm4318 = vcmp.ge.s32.totalorder %v482, 2
        %v4319 = vsel %vm4287, 1, 0
        %v4320 = vsel %vm4288, 1, 0
        %v4321 = vsel %vm4289, 1, 0
        %v4322 = vsel %vm4290, 1, 0
        %v4323 = vsel %vm4291, 1, 0
        %v4324 = vsel %vm4292, 1, 0
        %v4325 = vsel %vm4293, 1, 0
        %v4326 = vsel %vm4294, 1, 0
        %v4327 = vsel %vm4295, 1, 0
        %v4328 = vsel %vm4296, 1, 0
        %v4329 = vsel %vm4297, 1, 0
        %v4330 = vsel %vm4298, 1, 0
        %v4331 = vsel %vm4299, 1, 0
        %v4332 = vsel %vm4300, 1, 0
        %v4333 = vsel %vm4301, 1, 0
        %v4334 = vsel %vm4302, 1, 0
        %v4335 = vsel %vm4303, 1, 0
        %v4336 = vsel %vm4304, 1, 0
        %v4337 = vsel %vm4305, 1, 0
        %v4338 = vsel %vm4306, 1, 0
        %v4339 = vsel %vm4307, 1, 0
        %v4340 = vsel %vm4308, 1, 0
        %v4341 = vsel %vm4309, 1, 0
        %v4342 = vsel %vm4310, 1, 0
        %v4343 = vsel %vm4311, 1, 0
        %v4344 = vsel %vm4312, 1, 0
        %v4345 = vsel %vm4313, 1, 0
        %v4346 = vsel %vm4314, 1, 0
        %v4347 = vsel %vm4315, 1, 0
        %v4348 = vsel %vm4316, 1, 0
        %v4349 = vsel %vm4317, 1, 0
        %v4350 = vsel %vm4318, 1, 0
        %vm4351 = vcmp.eq.s32.totalorder %v4319, 1
        %vm4352 = vcmp.eq.s32.totalorder %v4320, 1
        %vm4353 = vcmp.eq.s32.totalorder %v4321, 1
        %vm4354 = vcmp.eq.s32.totalorder %v4322, 1
        %vm4355 = vcmp.eq.s32.totalorder %v4323, 1
        %vm4356 = vcmp.eq.s32.totalorder %v4324, 1
        %vm4357 = vcmp.eq.s32.totalorder %v4325, 1
        %vm4358 = vcmp.eq.s32.totalorder %v4326, 1
        %vm4359 = vcmp.eq.s32.totalorder %v4327, 1
        %vm4360 = vcmp.eq.s32.totalorder %v4328, 1
        %vm4361 = vcmp.eq.s32.totalorder %v4329, 1
        %vm4362 = vcmp.eq.s32.totalorder %v4330, 1
        %vm4363 = vcmp.eq.s32.totalorder %v4331, 1
        %vm4364 = vcmp.eq.s32.totalorder %v4332, 1
        %vm4365 = vcmp.eq.s32.totalorder %v4333, 1
        %vm4366 = vcmp.eq.s32.totalorder %v4334, 1
        %vm4367 = vcmp.eq.s32.totalorder %v4335, 1
        %vm4368 = vcmp.eq.s32.totalorder %v4336, 1
        %vm4369 = vcmp.eq.s32.totalorder %v4337, 1
        %vm4370 = vcmp.eq.s32.totalorder %v4338, 1
        %vm4371 = vcmp.eq.s32.totalorder %v4339, 1
        %vm4372 = vcmp.eq.s32.totalorder %v4340, 1
        %vm4373 = vcmp.eq.s32.totalorder %v4341, 1
        %vm4374 = vcmp.eq.s32.totalorder %v4342, 1
        %vm4375 = vcmp.eq.s32.totalorder %v4343, 1
        %vm4376 = vcmp.eq.s32.totalorder %v4344, 1
        %vm4377 = vcmp.eq.s32.totalorder %v4345, 1
        %vm4378 = vcmp.eq.s32.totalorder %v4346, 1
        %vm4379 = vcmp.eq.s32.totalorder %v4347, 1
        %vm4380 = vcmp.eq.s32.totalorder %v4348, 1
        %vm4381 = vcmp.eq.s32.totalorder %v4349, 1
        %vm4382 = vcmp.eq.s32.totalorder %v4350, 1
        %v4383 = vsel %vm4351, %v4286, 0.0
        %v4384 = vsel %vm4352, %v4285, 0.0
        %v4385 = vsel %vm4353, %v4284, 0.0
        %v4386 = vsel %vm4354, %v4283, 0.0
        %v4387 = vsel %vm4355, %v4282, 0.0
        %v4388 = vsel %vm4356, %v4281, 0.0
        %v4389 = vsel %vm4357, %v4280, 0.0
        %v4390 = vsel %vm4358, %v4279, 0.0
        %v4391 = vsel %vm4359, %v4278, 0.0
        %v4392 = vsel %vm4360, %v4277, 0.0
        %v4393 = vsel %vm4361, %v4276, 0.0
        %v4394 = vsel %vm4362, %v4275, 0.0
        %v4395 = vsel %vm4363, %v4274, 0.0
        %v4396 = vsel %vm4364, %v4273, 0.0
        %v4397 = vsel %vm4365, %v4272, 0.0
        %v4398 = vsel %vm4366, %v4271, 0.0
        %v4399 = vsel %vm4367, %v4270, 0.0
        %v4400 = vsel %vm4368, %v4269, 0.0
        %v4401 = vsel %vm4369, %v4268, 0.0
        %v4402 = vsel %vm4370, %v4267, 0.0
        %v4403 = vsel %vm4371, %v4266, 0.0
        %v4404 = vsel %vm4372, %v4265, 0.0
        %v4405 = vsel %vm4373, %v4264, 0.0
        %v4406 = vsel %vm4374, %v4263, 0.0
        %v4407 = vsel %vm4375, %v4262, 0.0
        %v4408 = vsel %vm4376, %v4261, 0.0
        %v4409 = vsel %vm4377, %v4260, 0.0
        %v4410 = vsel %vm4378, %v4259, 0.0
        %v4411 = vsel %vm4379, %v4258, 0.0
        %v4412 = vsel %vm4380, %v4257, 0.0
        %v4413 = vsel %vm4381, %v4256, 0.0
        %v4414 = vsel %vm4382, %v4255, 0.0
        %v4415 = vld [vmem:[%s9] sm:$0xf]
        %v4416 = vld [vmem:[%s9 + $0x4] sm:$0xf]
        %v4417 = vld [vmem:[%s9 + $0x8] sm:$0xf]
        %v4418 = vld [vmem:[%s9 + $0xc] sm:$0xf]
        %v4419 = vld [vmem:[%s9 + $0x10] sm:$0xf]
        %v4420 = vpack.c.bf16 %v4384, %v4383
        %v4421 = vpack.c.bf16 %v4386, %v4385
        %v4422 = vpack.c.bf16 %v4388, %v4387
        %v4423 = vpack.c.bf16 %v4390, %v4389
        %v4424 = vpack.c.bf16 %v4392, %v4391
        %v4425 = vpack.c.bf16 %v4394, %v4393
        %v4426 = vpack.c.bf16 %v4396, %v4395
        %v4427 = vpack.c.bf16 %v4398, %v4397
        %v4428 = vpack.c.bf16 %v4400, %v4399
        %v4429 = vpack.c.bf16 %v4402, %v4401
        %v4430 = vpack.c.bf16 %v4404, %v4403
        %v4431 = vpack.c.bf16 %v4406, %v4405
        %v4432 = vpack.c.bf16 %v4408, %v4407
        %v4433 = vpack.c.bf16 %v4410, %v4409
        %v4434 = vpack.c.bf16 %v4412, %v4411
        %v4435 = vpack.c.bf16 %v4414, %v4413
        %v4441 = vunpack.c.l.b16 %v4415
        %v4442 = vunpack.c.l.b16 %v4416
        %v4443 = vunpack.c.l.b16 %v4417
        %v4444 = vunpack.c.l.b16 %v4418
        %v4445 = vunpack.c.l.b16 %v4419
        %v4446 = vpack.c.b16 %v4442, %v4441
        %v4447 = vpack.c.b16 %v4444, %v4443
        %v4448 = vpack.c.b16 %v4445, %v4445
        %v4452 = vsel %vm1003, %v4420, 0
        %v4455 = vsel %vm1003, %v4421, 0
        %v4458 = vsel %vm1003, %v4422, 0
        %v4461 = vsel %vm1003, %v4423, 0
        %v4464 = vsel %vm1003, %v4424, 0
        %v4467 = vsel %vm1003, %v4425, 0
        %v4470 = vsel %vm1003, %v4426, 0
        %v4473 = vsel %vm1003, %v4427, 0
        %v4476 = vsel %vm1003, %v4428, 0
        %v4479 = vsel %vm1003, %v4429, 0
        %v4482 = vsel %vm1003, %v4430, 0
        %v4485 = vsel %vm1003, %v4431, 0
        %v4488 = vsel %vm1003, %v4432, 0
        %v4491 = vsel %vm1003, %v4433, 0
        %v4494 = vsel %vm1003, %v4434, 0
        %v4497 = vsel %vm1003, %v4435, 0
        %v4500 = vsel %vm1052, %v4448, 0
        %4502 = vmatprep.subr.bf16.mxu0 0
        %4503 = vmatpush1.bf16.msra.mxu0 0
        %4504 = vmatprep.subr.bf16.mxu0 0
        %4505 = vmatpush1.bf16.msra.mxu0 0
        %4506 = vmatprep.subr.bf16.mxu0 0
        %4507 = vmatpush1.bf16.msra.mxu0 0
        %4508 = vmatprep.subr.bf16.mxu0 0
        %4509 = vmatpush1.bf16.msra.mxu0 0
        %4510 = vmatprep.subr.bf16.mxu0 0
        %4511 = vmatpush1.bf16.msra.mxu0 0
        %4512 = vmatprep.subr.bf16.mxu0 0
        %4513 = vmatpush1.bf16.msra.mxu0 %v4500
        %4514 = vmatprep.subr.bf16.mxu0 0
        %4515 = vmatpush1.bf16.msra.mxu0 %v4447
        %4516 = vmatprep.subr.bf16.mxu0 0
        %4517 = vmatpush1.bf16.msra.mxu0 %v4446
        %4518 = vmatprep.subr.bf16.mxu0 0
        %4519 = vmatpush2.bf16.msra.mxu0 0
        %4520 = vmatprep.subr.bf16.mxu0 0
        %4521 = vmatpush2.bf16.msra.mxu0 0
        %4522 = vmatprep.subr.bf16.mxu0 0
        %4523 = vmatpush2.bf16.msra.mxu0 0
        %4524 = vmatprep.subr.bf16.mxu0 0
        %4525 = vmatpush2.bf16.msra.mxu0 0
        %4526 = vmatprep.subr.bf16.mxu0 0
        %4527 = vmatpush2.bf16.msra.mxu0 0
        %4528 = vmatprep.subr.bf16.mxu0 0
        %4529 = vmatpush2.bf16.msra.mxu0 0
        %4530 = vmatprep.subr.bf16.mxu0 0
        %4531 = vmatpush2.bf16.msra.mxu0 0
        %4532 = vmatprep.subr.bf16.mxu0 0
        %4533 = vmatpush2.bf16.msra.mxu0 0
        %4534 = vmatprep.mubr.bf16.mxu0 0
        %4535 = vmatmul.mubr.bf16.gmra.mxu0 %v4452
        %v4536 = vpop.f32.mrf.mxu0
        %v4537 = vadd.f32 0.0, %v4536
        %v4538 = vpop.f32.mrf.mxu0
        %v4539 = vpop.f32.mrf.mxu0
        %v4540 = vadd.f32 0.0, %v4539
        %v4541 = vpop.f32.mrf.mxu0
        %4542 = vmatprep.mubr.bf16.mxu0 0
        %4543 = vmatmul.mubr.bf16.gmra.mxu0 %v4455
        %v4544 = vpop.f32.mrf.mxu0
        %v4545 = vadd.f32 0.0, %v4544
        %v4546 = vpop.f32.mrf.mxu0
        %v4547 = vpop.f32.mrf.mxu0
        %v4548 = vadd.f32 0.0, %v4547
        %v4549 = vpop.f32.mrf.mxu0
        %4550 = vmatprep.mubr.bf16.mxu0 0
        %4551 = vmatmul.mubr.bf16.gmra.mxu0 %v4458
        %v4552 = vpop.f32.mrf.mxu0
        %v4553 = vadd.f32 0.0, %v4552
        %v4554 = vpop.f32.mrf.mxu0
        %v4555 = vpop.f32.mrf.mxu0
        %v4556 = vadd.f32 0.0, %v4555
        %v4557 = vpop.f32.mrf.mxu0
        %4558 = vmatprep.mubr.bf16.mxu0 0
        %4559 = vmatmul.mubr.bf16.gmra.mxu0 %v4461
        %v4560 = vpop.f32.mrf.mxu0
        %v4561 = vadd.f32 0.0, %v4560
        %v4562 = vpop.f32.mrf.mxu0
        %v4563 = vpop.f32.mrf.mxu0
        %v4564 = vadd.f32 0.0, %v4563
        %v4565 = vpop.f32.mrf.mxu0
        %4566 = vmatprep.mubr.bf16.mxu0 0
        %4567 = vmatmul.mubr.bf16.gmra.mxu0 %v4464
        %v4568 = vpop.f32.mrf.mxu0
        %v4569 = vadd.f32 0.0, %v4568
        %v4570 = vpop.f32.mrf.mxu0
        %v4571 = vpop.f32.mrf.mxu0
        %v4572 = vadd.f32 0.0, %v4571
        %v4573 = vpop.f32.mrf.mxu0
        %4574 = vmatprep.mubr.bf16.mxu0 0
        %4575 = vmatmul.mubr.bf16.gmra.mxu0 %v4467
        %v4576 = vpop.f32.mrf.mxu0
        %v4577 = vadd.f32 0.0, %v4576
        %v4578 = vpop.f32.mrf.mxu0
        %v4579 = vpop.f32.mrf.mxu0
        %v4580 = vadd.f32 0.0, %v4579
        %v4581 = vpop.f32.mrf.mxu0
        %4582 = vmatprep.mubr.bf16.mxu0 0
        %4583 = vmatmul.mubr.bf16.gmra.mxu0 %v4470
        %v4584 = vpop.f32.mrf.mxu0
        %v4585 = vadd.f32 0.0, %v4584
        %v4586 = vpop.f32.mrf.mxu0
        %v4587 = vpop.f32.mrf.mxu0
        %v4588 = vadd.f32 0.0, %v4587
        %v4589 = vpop.f32.mrf.mxu0
        %4590 = vmatprep.mubr.bf16.mxu0 0
        %4591 = vmatmul.mubr.bf16.gmra.mxu0 %v4473
        %v4592 = vpop.f32.mrf.mxu0
        %v4593 = vadd.f32 0.0, %v4592
        %v4594 = vpop.f32.mrf.mxu0
        %v4595 = vpop.f32.mrf.mxu0
        %v4596 = vadd.f32 0.0, %v4595
        %v4597 = vpop.f32.mrf.mxu0
        %4598 = vmatprep.mubr.bf16.mxu0 0
        %4599 = vmatmul.mubr.bf16.gmra.mxu0 %v4476
        %v4600 = vpop.f32.mrf.mxu0
        %v4601 = vadd.f32 0.0, %v4600
        %v4602 = vpop.f32.mrf.mxu0
        %v4603 = vpop.f32.mrf.mxu0
        %v4604 = vadd.f32 0.0, %v4603
        %v4605 = vpop.f32.mrf.mxu0
        %4606 = vmatprep.mubr.bf16.mxu0 0
        %4607 = vmatmul.mubr.bf16.gmra.mxu0 %v4479
        %v4608 = vpop.f32.mrf.mxu0
        %v4609 = vadd.f32 0.0, %v4608
        %v4610 = vpop.f32.mrf.mxu0
        %v4611 = vpop.f32.mrf.mxu0
        %v4612 = vadd.f32 0.0, %v4611
        %v4613 = vpop.f32.mrf.mxu0
        %4614 = vmatprep.mubr.bf16.mxu0 0
        %4615 = vmatmul.mubr.bf16.gmra.mxu0 %v4482
        %v4616 = vpop.f32.mrf.mxu0
        %v4617 = vadd.f32 0.0, %v4616
        %v4618 = vpop.f32.mrf.mxu0
        %v4619 = vpop.f32.mrf.mxu0
        %v4620 = vadd.f32 0.0, %v4619
        %v4621 = vpop.f32.mrf.mxu0
        %4622 = vmatprep.mubr.bf16.mxu0 0
        %4623 = vmatmul.mubr.bf16.gmra.mxu0 %v4485
        %v4624 = vpop.f32.mrf.mxu0
        %v4625 = vadd.f32 0.0, %v4624
        %v4626 = vpop.f32.mrf.mxu0
        %v4627 = vpop.f32.mrf.mxu0
        %v4628 = vadd.f32 0.0, %v4627
        %v4629 = vpop.f32.mrf.mxu0
        %4630 = vmatprep.mubr.bf16.mxu0 0
        %4631 = vmatmul.mubr.bf16.gmra.mxu0 %v4488
        %v4632 = vpop.f32.mrf.mxu0
        %v4633 = vadd.f32 0.0, %v4632
        %v4634 = vpop.f32.mrf.mxu0
        %v4635 = vpop.f32.mrf.mxu0
        %v4636 = vadd.f32 0.0, %v4635
        %v4637 = vpop.f32.mrf.mxu0
        %4638 = vmatprep.mubr.bf16.mxu0 0
        %4639 = vmatmul.mubr.bf16.gmra.mxu0 %v4491
        %v4640 = vpop.f32.mrf.mxu0
        %v4641 = vadd.f32 0.0, %v4640
        %v4642 = vpop.f32.mrf.mxu0
        %v4643 = vpop.f32.mrf.mxu0
        %v4644 = vadd.f32 0.0, %v4643
        %v4645 = vpop.f32.mrf.mxu0
        %4646 = vmatprep.mubr.bf16.mxu0 0
        %4647 = vmatmul.mubr.bf16.gmra.mxu0 %v4494
        %v4648 = vpop.f32.mrf.mxu0
        %v4649 = vadd.f32 0.0, %v4648
        %v4650 = vpop.f32.mrf.mxu0
        %v4651 = vpop.f32.mrf.mxu0
        %v4652 = vadd.f32 0.0, %v4651
        %v4653 = vpop.f32.mrf.mxu0
        %4654 = vmatprep.mubr.bf16.mxu0 0
        %4655 = vmatmul.mubr.bf16.gmra.mxu0 %v4497
        %v4656 = vpop.f32.mrf.mxu0
        %v4657 = vadd.f32 0.0, %v4656
        %v4658 = vpop.f32.mrf.mxu0
        %v4659 = vpop.f32.mrf.mxu0
        %v4660 = vadd.f32 0.0, %v4659
        %v4661 = vpop.f32.mrf.mxu0
        %4662 = vdwg.mxu0
        %v4668 = vunpack.c.l.b16 %v4201
        %v4669 = vunpack.c.l.b16 %v4202
        %v4670 = vunpack.c.l.b16 %v4203
        %v4671 = vunpack.c.l.b16 %v4204
        %v4672 = vunpack.c.l.b16 %v4205
        %v4673 = vpack.c.b16 %v4669, %v4668
        %v4674 = vpack.c.b16 %v4671, %v4670
        %v4675 = vpack.c.b16 %v4672, %v4672
        %v4679 = vsel %vm1003, %v4206, 0
        %v4682 = vsel %vm1003, %v4207, 0
        %v4685 = vsel %vm1003, %v4208, 0
        %v4688 = vsel %vm1003, %v4209, 0
        %v4691 = vsel %vm1003, %v4210, 0
        %v4694 = vsel %vm1003, %v4211, 0
        %v4697 = vsel %vm1003, %v4212, 0
        %v4700 = vsel %vm1003, %v4213, 0
        %v4703 = vsel %vm1003, %v4214, 0
        %v4706 = vsel %vm1003, %v4215, 0
        %v4709 = vsel %vm1003, %v4216, 0
        %v4712 = vsel %vm1003, %v4217, 0
        %v4715 = vsel %vm1003, %v4218, 0
        %v4718 = vsel %vm1003, %v4219, 0
        %v4721 = vsel %vm1003, %v4220, 0
        %v4724 = vsel %vm1003, %v4221, 0
        %v4727 = vsel %vm1052, %v4675, 0
        %4729 = vmatprep.subr.bf16.mxu0 0
        %4730 = vmatpush1.bf16.msra.mxu0 0
        %4731 = vmatprep.subr.bf16.mxu0 0
        %4732 = vmatpush1.bf16.msra.mxu0 0
        %4733 = vmatprep.subr.bf16.mxu0 0
        %4734 = vmatpush1.bf16.msra.mxu0 0
        %4735 = vmatprep.subr.bf16.mxu0 0
        %4736 = vmatpush1.bf16.msra.mxu0 0
        %4737 = vmatprep.subr.bf16.mxu0 0
        %4738 = vmatpush1.bf16.msra.mxu0 0
        %4739 = vmatprep.subr.bf16.mxu0 0
        %4740 = vmatpush1.bf16.msra.mxu0 %v4727
        %4741 = vmatprep.subr.bf16.mxu0 0
        %4742 = vmatpush1.bf16.msra.mxu0 %v4674
        %4743 = vmatprep.subr.bf16.mxu0 0
        %4744 = vmatpush1.bf16.msra.mxu0 %v4673
        %4745 = vmatprep.subr.bf16.mxu0 0
        %4746 = vmatpush2.bf16.msra.mxu0 0
        %4747 = vmatprep.subr.bf16.mxu0 0
        %4748 = vmatpush2.bf16.msra.mxu0 0
        %4749 = vmatprep.subr.bf16.mxu0 0
        %4750 = vmatpush2.bf16.msra.mxu0 0
        %4751 = vmatprep.subr.bf16.mxu0 0
        %4752 = vmatpush2.bf16.msra.mxu0 0
        %4753 = vmatprep.subr.bf16.mxu0 0
        %4754 = vmatpush2.bf16.msra.mxu0 0
        %4755 = vmatprep.subr.bf16.mxu0 0
        %4756 = vmatpush2.bf16.msra.mxu0 0
        %4757 = vmatprep.subr.bf16.mxu0 0
        %4758 = vmatpush2.bf16.msra.mxu0 0
        %4759 = vmatprep.subr.bf16.mxu0 0
        %4760 = vmatpush2.bf16.msra.mxu0 0
        %4761 = vmatprep.mubr.bf16.mxu0 0
        %4762 = vmatmul.mubr.bf16.gmra.mxu0 %v4679
        %v4763 = vpop.f32.mrf.mxu0
        %v4764 = vadd.f32 %v4537, %v4763
        %v4765 = vpop.f32.mrf.mxu0
        %v4766 = vpop.f32.mrf.mxu0
        %v4767 = vadd.f32 %v4540, %v4766
        %v4768 = vpop.f32.mrf.mxu0
        %4769 = vmatprep.mubr.bf16.mxu0 0
        %4770 = vmatmul.mubr.bf16.gmra.mxu0 %v4682
        %v4771 = vpop.f32.mrf.mxu0
        %v4772 = vadd.f32 %v4545, %v4771
        %v4773 = vpop.f32.mrf.mxu0
        %v4774 = vpop.f32.mrf.mxu0
        %v4775 = vadd.f32 %v4548, %v4774
        %v4776 = vpop.f32.mrf.mxu0
        %4777 = vmatprep.mubr.bf16.mxu0 0
        %4778 = vmatmul.mubr.bf16.gmra.mxu0 %v4685
        %v4779 = vpop.f32.mrf.mxu0
        %v4780 = vadd.f32 %v4553, %v4779
        %v4781 = vpop.f32.mrf.mxu0
        %v4782 = vpop.f32.mrf.mxu0
        %v4783 = vadd.f32 %v4556, %v4782
        %v4784 = vpop.f32.mrf.mxu0
        %4785 = vmatprep.mubr.bf16.mxu0 0
        %4786 = vmatmul.mubr.bf16.gmra.mxu0 %v4688
        %v4787 = vpop.f32.mrf.mxu0
        %v4788 = vadd.f32 %v4561, %v4787
        %v4789 = vpop.f32.mrf.mxu0
        %v4790 = vpop.f32.mrf.mxu0
        %v4791 = vadd.f32 %v4564, %v4790
        %v4792 = vpop.f32.mrf.mxu0
        %4793 = vmatprep.mubr.bf16.mxu0 0
        %4794 = vmatmul.mubr.bf16.gmra.mxu0 %v4691
        %v4795 = vpop.f32.mrf.mxu0
        %v4796 = vadd.f32 %v4569, %v4795
        %v4797 = vpop.f32.mrf.mxu0
        %v4798 = vpop.f32.mrf.mxu0
        %v4799 = vadd.f32 %v4572, %v4798
        %v4800 = vpop.f32.mrf.mxu0
        %4801 = vmatprep.mubr.bf16.mxu0 0
        %4802 = vmatmul.mubr.bf16.gmra.mxu0 %v4694
        %v4803 = vpop.f32.mrf.mxu0
        %v4804 = vadd.f32 %v4577, %v4803
        %v4805 = vpop.f32.mrf.mxu0
        %v4806 = vpop.f32.mrf.mxu0
        %v4807 = vadd.f32 %v4580, %v4806
        %v4808 = vpop.f32.mrf.mxu0
        %4809 = vmatprep.mubr.bf16.mxu0 0
        %4810 = vmatmul.mubr.bf16.gmra.mxu0 %v4697
        %v4811 = vpop.f32.mrf.mxu0
        %v4812 = vadd.f32 %v4585, %v4811
        %v4813 = vpop.f32.mrf.mxu0
        %v4814 = vpop.f32.mrf.mxu0
        %v4815 = vadd.f32 %v4588, %v4814
        %v4816 = vpop.f32.mrf.mxu0
        %4817 = vmatprep.mubr.bf16.mxu0 0
        %4818 = vmatmul.mubr.bf16.gmra.mxu0 %v4700
        %v4819 = vpop.f32.mrf.mxu0
        %v4820 = vadd.f32 %v4593, %v4819
        %v4821 = vpop.f32.mrf.mxu0
        %v4822 = vpop.f32.mrf.mxu0
        %v4823 = vadd.f32 %v4596, %v4822
        %v4824 = vpop.f32.mrf.mxu0
        %4825 = vmatprep.mubr.bf16.mxu0 0
        %4826 = vmatmul.mubr.bf16.gmra.mxu0 %v4703
        %v4827 = vpop.f32.mrf.mxu0
        %v4828 = vadd.f32 %v4601, %v4827
        %v4829 = vpop.f32.mrf.mxu0
        %v4830 = vpop.f32.mrf.mxu0
        %v4831 = vadd.f32 %v4604, %v4830
        %v4832 = vpop.f32.mrf.mxu0
        %4833 = vmatprep.mubr.bf16.mxu0 0
        %4834 = vmatmul.mubr.bf16.gmra.mxu0 %v4706
        %v4835 = vpop.f32.mrf.mxu0
        %v4836 = vadd.f32 %v4609, %v4835
        %v4837 = vpop.f32.mrf.mxu0
        %v4838 = vpop.f32.mrf.mxu0
        %v4839 = vadd.f32 %v4612, %v4838
        %v4840 = vpop.f32.mrf.mxu0
        %4841 = vmatprep.mubr.bf16.mxu0 0
        %4842 = vmatmul.mubr.bf16.gmra.mxu0 %v4709
        %v4843 = vpop.f32.mrf.mxu0
        %v4844 = vadd.f32 %v4617, %v4843
        %v4845 = vpop.f32.mrf.mxu0
        %v4846 = vpop.f32.mrf.mxu0
        %v4847 = vadd.f32 %v4620, %v4846
        %v4848 = vpop.f32.mrf.mxu0
        %4849 = vmatprep.mubr.bf16.mxu0 0
        %4850 = vmatmul.mubr.bf16.gmra.mxu0 %v4712
        %v4851 = vpop.f32.mrf.mxu0
        %v4852 = vadd.f32 %v4625, %v4851
        %v4853 = vpop.f32.mrf.mxu0
        %v4854 = vpop.f32.mrf.mxu0
        %v4855 = vadd.f32 %v4628, %v4854
        %v4856 = vpop.f32.mrf.mxu0
        %4857 = vmatprep.mubr.bf16.mxu0 0
        %4858 = vmatmul.mubr.bf16.gmra.mxu0 %v4715
        %v4859 = vpop.f32.mrf.mxu0
        %v4860 = vadd.f32 %v4633, %v4859
        %v4861 = vpop.f32.mrf.mxu0
        %v4862 = vpop.f32.mrf.mxu0
        %v4863 = vadd.f32 %v4636, %v4862
        %v4864 = vpop.f32.mrf.mxu0
        %4865 = vmatprep.mubr.bf16.mxu0 0
        %4866 = vmatmul.mubr.bf16.gmra.mxu0 %v4718
        %v4867 = vpop.f32.mrf.mxu0
        %v4868 = vadd.f32 %v4641, %v4867
        %v4869 = vpop.f32.mrf.mxu0
        %v4870 = vpop.f32.mrf.mxu0
        %v4871 = vadd.f32 %v4644, %v4870
        %v4872 = vpop.f32.mrf.mxu0
        %4873 = vmatprep.mubr.bf16.mxu0 0
        %4874 = vmatmul.mubr.bf16.gmra.mxu0 %v4721
        %v4875 = vpop.f32.mrf.mxu0
        %v4876 = vadd.f32 %v4649, %v4875
        %v4877 = vpop.f32.mrf.mxu0
        %v4878 = vpop.f32.mrf.mxu0
        %v4879 = vadd.f32 %v4652, %v4878
        %v4880 = vpop.f32.mrf.mxu0
        %4881 = vmatprep.mubr.bf16.mxu0 0
        %4882 = vmatmul.mubr.bf16.gmra.mxu0 %v4724
        %v4883 = vpop.f32.mrf.mxu0
        %v4884 = vadd.f32 %v4657, %v4883
        %v4885 = vpop.f32.mrf.mxu0
        %v4886 = vpop.f32.mrf.mxu0
        %v4887 = vadd.f32 %v4660, %v4886
        %v4888 = vpop.f32.mrf.mxu0
        %4889 = vdwg.mxu0
        %v4890 = vrot.slane %v4168, 2
        %v4891 = vrot.slane %v4169, 2
        %v4892 = vrot.slane %v4170, 2
        %v4893 = vrot.slane %v4171, 2
        %v4894 = vrot.slane %v4172, 2
        %v4895 = vrot.slane %v4173, 2
        %v4896 = vrot.slane %v4174, 2
        %v4897 = vrot.slane %v4175, 2
        %v4898 = vrot.slane %v4176, 2
        %v4899 = vrot.slane %v4177, 2
        %v4900 = vrot.slane %v4178, 2
        %v4901 = vrot.slane %v4179, 2
        %v4902 = vrot.slane %v4180, 2
        %v4903 = vrot.slane %v4181, 2
        %v4904 = vrot.slane %v4182, 2
        %v4905 = vrot.slane %v4183, 2
        %v4906 = vrot.slane %v4184, 2
        %v4907 = vrot.slane %v4185, 2
        %v4908 = vrot.slane %v4186, 2
        %v4909 = vrot.slane %v4187, 2
        %v4910 = vrot.slane %v4188, 2
        %v4911 = vrot.slane %v4189, 2
        %v4912 = vrot.slane %v4190, 2
        %v4913 = vrot.slane %v4191, 2
        %v4914 = vrot.slane %v4192, 2
        %v4915 = vrot.slane %v4193, 2
        %v4916 = vrot.slane %v4194, 2
        %v4917 = vrot.slane %v4195, 2
        %v4918 = vrot.slane %v4196, 2
        %v4919 = vrot.slane %v4197, 2
        %v4920 = vrot.slane %v4198, 2
        %v4921 = vrot.slane %v4199, 2
        %vm4922 = vcmp.lt.s32.totalorder %v419, 6
        %v4923 = vsel %vm4922, %v4920, %v4921
        %v4924 = vsel %vm4922, %v4919, %v4920
        %v4925 = vsel %vm4922, %v4918, %v4919
        %v4926 = vsel %vm4922, %v4917, %v4918
        %v4927 = vsel %vm4922, %v4916, %v4917
        %v4928 = vsel %vm4922, %v4915, %v4916
        %v4929 = vsel %vm4922, %v4914, %v4915
        %v4930 = vsel %vm4922, %v4913, %v4914
        %v4931 = vsel %vm4922, %v4912, %v4913
        %v4932 = vsel %vm4922, %v4911, %v4912
        %v4933 = vsel %vm4922, %v4910, %v4911
        %v4934 = vsel %vm4922, %v4909, %v4910
        %v4935 = vsel %vm4922, %v4908, %v4909
        %v4936 = vsel %vm4922, %v4907, %v4908
        %v4937 = vsel %vm4922, %v4906, %v4907
        %v4938 = vsel %vm4922, %v4905, %v4906
        %v4939 = vsel %vm4922, %v4904, %v4905
        %v4940 = vsel %vm4922, %v4903, %v4904
        %v4941 = vsel %vm4922, %v4902, %v4903
        %v4942 = vsel %vm4922, %v4901, %v4902
        %v4943 = vsel %vm4922, %v4900, %v4901
        %v4944 = vsel %vm4922, %v4899, %v4900
        %v4945 = vsel %vm4922, %v4898, %v4899
        %v4946 = vsel %vm4922, %v4897, %v4898
        %v4947 = vsel %vm4922, %v4896, %v4897
        %v4948 = vsel %vm4922, %v4895, %v4896
        %v4949 = vsel %vm4922, %v4894, %v4895
        %v4950 = vsel %vm4922, %v4893, %v4894
        %v4951 = vsel %vm4922, %v4892, %v4893
        %v4952 = vsel %vm4922, %v4891, %v4892
        %v4953 = vsel %vm4922, %v4890, %v4891
        %v4954 = vsel %vm4922, %v4921, %v4890
        %vm4955 = vcmp.lt.s32.totalorder %v451, 14
        %vm4956 = vcmp.lt.s32.totalorder %v452, 14
        %vm4957 = vcmp.lt.s32.totalorder %v453, 14
        %vm4958 = vcmp.lt.s32.totalorder %v454, 14
        %vm4959 = vcmp.lt.s32.totalorder %v455, 14
        %vm4960 = vcmp.lt.s32.totalorder %v456, 14
        %vm4961 = vcmp.lt.s32.totalorder %v457, 14
        %vm4962 = vcmp.lt.s32.totalorder %v458, 14
        %vm4963 = vcmp.lt.s32.totalorder %v459, 14
        %vm4964 = vcmp.lt.s32.totalorder %v460, 14
        %vm4965 = vcmp.lt.s32.totalorder %v461, 14
        %vm4966 = vcmp.lt.s32.totalorder %v462, 14
        %vm4967 = vcmp.lt.s32.totalorder %v463, 14
        %vm4968 = vcmp.lt.s32.totalorder %v464, 14
        %vm4969 = vcmp.lt.s32.totalorder %v465, 14
        %vm4970 = vcmp.lt.s32.totalorder %v466, 14
        %vm4971 = vcmp.lt.s32.totalorder %v467, 14
        %vm4972 = vcmp.lt.s32.totalorder %v468, 14
        %vm4973 = vcmp.lt.s32.totalorder %v469, 14
        %vm4974 = vcmp.lt.s32.totalorder %v470, 14
        %vm4975 = vcmp.lt.s32.totalorder %v471, 14
        %vm4976 = vcmp.lt.s32.totalorder %v472, 14
        %vm4977 = vcmp.lt.s32.totalorder %v473, 14
        %vm4978 = vcmp.lt.s32.totalorder %v474, 14
        %vm4979 = vcmp.lt.s32.totalorder %v475, 14
        %vm4980 = vcmp.lt.s32.totalorder %v476, 14
        %vm4981 = vcmp.lt.s32.totalorder %v477, 14
        %vm4982 = vcmp.lt.s32.totalorder %v478, 14
        %vm4983 = vcmp.lt.s32.totalorder %v479, 14
        %vm4984 = vcmp.lt.s32.totalorder %v480, 14
        %vm4985 = vcmp.lt.s32.totalorder %v481, 14
        %vm4986 = vcmp.lt.s32.totalorder %v482, 14
        %v4987 = vsel %vm4955, 1, 0
        %v4988 = vsel %vm4956, 1, 0
        %v4989 = vsel %vm4957, 1, 0
        %v4990 = vsel %vm4958, 1, 0
        %v4991 = vsel %vm4959, 1, 0
        %v4992 = vsel %vm4960, 1, 0
        %v4993 = vsel %vm4961, 1, 0
        %v4994 = vsel %vm4962, 1, 0
        %v4995 = vsel %vm4963, 1, 0
        %v4996 = vsel %vm4964, 1, 0
        %v4997 = vsel %vm4965, 1, 0
        %v4998 = vsel %vm4966, 1, 0
        %v4999 = vsel %vm4967, 1, 0
        %v5000 = vsel %vm4968, 1, 0
        %v5001 = vsel %vm4969, 1, 0
        %v5002 = vsel %vm4970, 1, 0
        %v5003 = vsel %vm4971, 1, 0
        %v5004 = vsel %vm4972, 1, 0
        %v5005 = vsel %vm4973, 1, 0
        %v5006 = vsel %vm4974, 1, 0
        %v5007 = vsel %vm4975, 1, 0
        %v5008 = vsel %vm4976, 1, 0
        %v5009 = vsel %vm4977, 1, 0
        %v5010 = vsel %vm4978, 1, 0
        %v5011 = vsel %vm4979, 1, 0
        %v5012 = vsel %vm4980, 1, 0
        %v5013 = vsel %vm4981, 1, 0
        %v5014 = vsel %vm4982, 1, 0
        %v5015 = vsel %vm4983, 1, 0
        %v5016 = vsel %vm4984, 1, 0
        %v5017 = vsel %vm4985, 1, 0
        %v5018 = vsel %vm4986, 1, 0
        %vm5019 = vcmp.eq.s32.totalorder %v4987, 1
        %vm5020 = vcmp.eq.s32.totalorder %v4988, 1
        %vm5021 = vcmp.eq.s32.totalorder %v4989, 1
        %vm5022 = vcmp.eq.s32.totalorder %v4990, 1
        %vm5023 = vcmp.eq.s32.totalorder %v4991, 1
        %vm5024 = vcmp.eq.s32.totalorder %v4992, 1
        %vm5025 = vcmp.eq.s32.totalorder %v4993, 1
        %vm5026 = vcmp.eq.s32.totalorder %v4994, 1
        %vm5027 = vcmp.eq.s32.totalorder %v4995, 1
        %vm5028 = vcmp.eq.s32.totalorder %v4996, 1
        %vm5029 = vcmp.eq.s32.totalorder %v4997, 1
        %vm5030 = vcmp.eq.s32.totalorder %v4998, 1
        %vm5031 = vcmp.eq.s32.totalorder %v4999, 1
        %vm5032 = vcmp.eq.s32.totalorder %v5000, 1
        %vm5033 = vcmp.eq.s32.totalorder %v5001, 1
        %vm5034 = vcmp.eq.s32.totalorder %v5002, 1
        %vm5035 = vcmp.eq.s32.totalorder %v5003, 1
        %vm5036 = vcmp.eq.s32.totalorder %v5004, 1
        %vm5037 = vcmp.eq.s32.totalorder %v5005, 1
        %vm5038 = vcmp.eq.s32.totalorder %v5006, 1
        %vm5039 = vcmp.eq.s32.totalorder %v5007, 1
        %vm5040 = vcmp.eq.s32.totalorder %v5008, 1
        %vm5041 = vcmp.eq.s32.totalorder %v5009, 1
        %vm5042 = vcmp.eq.s32.totalorder %v5010, 1
        %vm5043 = vcmp.eq.s32.totalorder %v5011, 1
        %vm5044 = vcmp.eq.s32.totalorder %v5012, 1
        %vm5045 = vcmp.eq.s32.totalorder %v5013, 1
        %vm5046 = vcmp.eq.s32.totalorder %v5014, 1
        %vm5047 = vcmp.eq.s32.totalorder %v5015, 1
        %vm5048 = vcmp.eq.s32.totalorder %v5016, 1
        %vm5049 = vcmp.eq.s32.totalorder %v5017, 1
        %vm5050 = vcmp.eq.s32.totalorder %v5018, 1
        %v5051 = vsel %vm5019, %v4953, 0.0
        %v5052 = vsel %vm5020, %v4952, 0.0
        %v5053 = vsel %vm5021, %v4951, 0.0
        %v5054 = vsel %vm5022, %v4950, 0.0
        %v5055 = vsel %vm5023, %v4949, 0.0
        %v5056 = vsel %vm5024, %v4948, 0.0
        %v5057 = vsel %vm5025, %v4947, 0.0
        %v5058 = vsel %vm5026, %v4946, 0.0
        %v5059 = vsel %vm5027, %v4945, 0.0
        %v5060 = vsel %vm5028, %v4944, 0.0
        %v5061 = vsel %vm5029, %v4943, 0.0
        %v5062 = vsel %vm5030, %v4942, 0.0
        %v5063 = vsel %vm5031, %v4941, 0.0
        %v5064 = vsel %vm5032, %v4940, 0.0
        %v5065 = vsel %vm5033, %v4939, 0.0
        %v5066 = vsel %vm5034, %v4938, 0.0
        %v5067 = vsel %vm5035, %v4937, 0.0
        %v5068 = vsel %vm5036, %v4936, 0.0
        %v5069 = vsel %vm5037, %v4935, 0.0
        %v5070 = vsel %vm5038, %v4934, 0.0
        %v5071 = vsel %vm5039, %v4933, 0.0
        %v5072 = vsel %vm5040, %v4932, 0.0
        %v5073 = vsel %vm5041, %v4931, 0.0
        %v5074 = vsel %vm5042, %v4930, 0.0
        %v5075 = vsel %vm5043, %v4929, 0.0
        %v5076 = vsel %vm5044, %v4928, 0.0
        %v5077 = vsel %vm5045, %v4927, 0.0
        %v5078 = vsel %vm5046, %v4926, 0.0
        %v5079 = vsel %vm5047, %v4925, 0.0
        %v5080 = vsel %vm5048, %v4924, 0.0
        %v5081 = vsel %vm5049, %v4923, 0.0
        %v5082 = vsel %vm5050, %v4954, 0.0
        %s5083 = scalar_lea.vmem %s9, 40
        %v5084 = vld [vmem:[%s5083] sm:$0xf]
        %v5085 = vld [vmem:[%s5083 + $0x4] sm:$0xf]
        %v5086 = vld [vmem:[%s5083 + $0x8] sm:$0xf]
        %v5087 = vld [vmem:[%s5083 + $0xc] sm:$0xf]
        %v5088 = vld [vmem:[%s5083 + $0x10] sm:$0xf]
        %v5089 = vpack.c.bf16 %v5052, %v5051
        %v5090 = vpack.c.bf16 %v5054, %v5053
        %v5091 = vpack.c.bf16 %v5056, %v5055
        %v5092 = vpack.c.bf16 %v5058, %v5057
        %v5093 = vpack.c.bf16 %v5060, %v5059
        %v5094 = vpack.c.bf16 %v5062, %v5061
        %v5095 = vpack.c.bf16 %v5064, %v5063
        %v5096 = vpack.c.bf16 %v5066, %v5065
        %v5097 = vpack.c.bf16 %v5068, %v5067
        %v5098 = vpack.c.bf16 %v5070, %v5069
        %v5099 = vpack.c.bf16 %v5072, %v5071
        %v5100 = vpack.c.bf16 %v5074, %v5073
        %v5101 = vpack.c.bf16 %v5076, %v5075
        %v5102 = vpack.c.bf16 %v5078, %v5077
        %v5103 = vpack.c.bf16 %v5080, %v5079
        %v5104 = vpack.c.bf16 %v5082, %v5081
        %v5110 = vunpack.c.l.b16 %v5084
        %v5111 = vunpack.c.l.b16 %v5085
        %v5112 = vunpack.c.l.b16 %v5086
        %v5113 = vunpack.c.l.b16 %v5087
        %v5114 = vunpack.c.l.b16 %v5088
        %v5115 = vpack.c.b16 %v5111, %v5110
        %v5116 = vpack.c.b16 %v5113, %v5112
        %v5117 = vpack.c.b16 %v5114, %v5114
        %v5121 = vsel %vm1003, %v5089, 0
        %v5124 = vsel %vm1003, %v5090, 0
        %v5127 = vsel %vm1003, %v5091, 0
        %v5130 = vsel %vm1003, %v5092, 0
        %v5133 = vsel %vm1003, %v5093, 0
        %v5136 = vsel %vm1003, %v5094, 0
        %v5139 = vsel %vm1003, %v5095, 0
        %v5142 = vsel %vm1003, %v5096, 0
        %v5145 = vsel %vm1003, %v5097, 0
        %v5148 = vsel %vm1003, %v5098, 0
        %v5151 = vsel %vm1003, %v5099, 0
        %v5154 = vsel %vm1003, %v5100, 0
        %v5157 = vsel %vm1003, %v5101, 0
        %v5160 = vsel %vm1003, %v5102, 0
        %v5163 = vsel %vm1003, %v5103, 0
        %v5166 = vsel %vm1003, %v5104, 0
        %v5169 = vsel %vm1052, %v5117, 0
        %5171 = vmatprep.subr.bf16.mxu0 0
        %5172 = vmatpush1.bf16.msra.mxu0 0
        %5173 = vmatprep.subr.bf16.mxu0 0
        %5174 = vmatpush1.bf16.msra.mxu0 0
        %5175 = vmatprep.subr.bf16.mxu0 0
        %5176 = vmatpush1.bf16.msra.mxu0 0
        %5177 = vmatprep.subr.bf16.mxu0 0
        %5178 = vmatpush1.bf16.msra.mxu0 0
        %5179 = vmatprep.subr.bf16.mxu0 0
        %5180 = vmatpush1.bf16.msra.mxu0 0
        %5181 = vmatprep.subr.bf16.mxu0 0
        %5182 = vmatpush1.bf16.msra.mxu0 %v5169
        %5183 = vmatprep.subr.bf16.mxu0 0
        %5184 = vmatpush1.bf16.msra.mxu0 %v5116
        %5185 = vmatprep.subr.bf16.mxu0 0
        %5186 = vmatpush1.bf16.msra.mxu0 %v5115
        %5187 = vmatprep.subr.bf16.mxu0 0
        %5188 = vmatpush2.bf16.msra.mxu0 0
        %5189 = vmatprep.subr.bf16.mxu0 0
        %5190 = vmatpush2.bf16.msra.mxu0 0
        %5191 = vmatprep.subr.bf16.mxu0 0
        %5192 = vmatpush2.bf16.msra.mxu0 0
        %5193 = vmatprep.subr.bf16.mxu0 0
        %5194 = vmatpush2.bf16.msra.mxu0 0
        %5195 = vmatprep.subr.bf16.mxu0 0
        %5196 = vmatpush2.bf16.msra.mxu0 0
        %5197 = vmatprep.subr.bf16.mxu0 0
        %5198 = vmatpush2.bf16.msra.mxu0 0
        %5199 = vmatprep.subr.bf16.mxu0 0
        %5200 = vmatpush2.bf16.msra.mxu0 0
        %5201 = vmatprep.subr.bf16.mxu0 0
        %5202 = vmatpush2.bf16.msra.mxu0 0
        %5203 = vmatprep.mubr.bf16.mxu0 0
        %5204 = vmatmul.mubr.bf16.gmra.mxu0 %v5121
        %v5205 = vpop.f32.mrf.mxu0
        %v5206 = vadd.f32 0.0, %v5205
        %v5207 = vpop.f32.mrf.mxu0
        %v5208 = vpop.f32.mrf.mxu0
        %v5209 = vadd.f32 0.0, %v5208
        %v5210 = vpop.f32.mrf.mxu0
        %5211 = vmatprep.mubr.bf16.mxu0 0
        %5212 = vmatmul.mubr.bf16.gmra.mxu0 %v5124
        %v5213 = vpop.f32.mrf.mxu0
        %v5214 = vadd.f32 0.0, %v5213
        %v5215 = vpop.f32.mrf.mxu0
        %v5216 = vpop.f32.mrf.mxu0
        %v5217 = vadd.f32 0.0, %v5216
        %v5218 = vpop.f32.mrf.mxu0
        %5219 = vmatprep.mubr.bf16.mxu0 0
        %5220 = vmatmul.mubr.bf16.gmra.mxu0 %v5127
        %v5221 = vpop.f32.mrf.mxu0
        %v5222 = vadd.f32 0.0, %v5221
        %v5223 = vpop.f32.mrf.mxu0
        %v5224 = vpop.f32.mrf.mxu0
        %v5225 = vadd.f32 0.0, %v5224
        %v5226 = vpop.f32.mrf.mxu0
        %5227 = vmatprep.mubr.bf16.mxu0 0
        %5228 = vmatmul.mubr.bf16.gmra.mxu0 %v5130
        %v5229 = vpop.f32.mrf.mxu0
        %v5230 = vadd.f32 0.0, %v5229
        %v5231 = vpop.f32.mrf.mxu0
        %v5232 = vpop.f32.mrf.mxu0
        %v5233 = vadd.f32 0.0, %v5232
        %v5234 = vpop.f32.mrf.mxu0
        %5235 = vmatprep.mubr.bf16.mxu0 0
        %5236 = vmatmul.mubr.bf16.gmra.mxu0 %v5133
        %v5237 = vpop.f32.mrf.mxu0
        %v5238 = vadd.f32 0.0, %v5237
        %v5239 = vpop.f32.mrf.mxu0
        %v5240 = vpop.f32.mrf.mxu0
        %v5241 = vadd.f32 0.0, %v5240
        %v5242 = vpop.f32.mrf.mxu0
        %5243 = vmatprep.mubr.bf16.mxu0 0
        %5244 = vmatmul.mubr.bf16.gmra.mxu0 %v5136
        %v5245 = vpop.f32.mrf.mxu0
        %v5246 = vadd.f32 0.0, %v5245
        %v5247 = vpop.f32.mrf.mxu0
        %v5248 = vpop.f32.mrf.mxu0
        %v5249 = vadd.f32 0.0, %v5248
        %v5250 = vpop.f32.mrf.mxu0
        %5251 = vmatprep.mubr.bf16.mxu0 0
        %5252 = vmatmul.mubr.bf16.gmra.mxu0 %v5139
        %v5253 = vpop.f32.mrf.mxu0
        %v5254 = vadd.f32 0.0, %v5253
        %v5255 = vpop.f32.mrf.mxu0
        %v5256 = vpop.f32.mrf.mxu0
        %v5257 = vadd.f32 0.0, %v5256
        %v5258 = vpop.f32.mrf.mxu0
        %5259 = vmatprep.mubr.bf16.mxu0 0
        %5260 = vmatmul.mubr.bf16.gmra.mxu0 %v5142
        %v5261 = vpop.f32.mrf.mxu0
        %v5262 = vadd.f32 0.0, %v5261
        %v5263 = vpop.f32.mrf.mxu0
        %v5264 = vpop.f32.mrf.mxu0
        %v5265 = vadd.f32 0.0, %v5264
        %v5266 = vpop.f32.mrf.mxu0
        %5267 = vmatprep.mubr.bf16.mxu0 0
        %5268 = vmatmul.mubr.bf16.gmra.mxu0 %v5145
        %v5269 = vpop.f32.mrf.mxu0
        %v5270 = vadd.f32 0.0, %v5269
        %v5271 = vpop.f32.mrf.mxu0
        %v5272 = vpop.f32.mrf.mxu0
        %v5273 = vadd.f32 0.0, %v5272
        %v5274 = vpop.f32.mrf.mxu0
        %5275 = vmatprep.mubr.bf16.mxu0 0
        %5276 = vmatmul.mubr.bf16.gmra.mxu0 %v5148
        %v5277 = vpop.f32.mrf.mxu0
        %v5278 = vadd.f32 0.0, %v5277
        %v5279 = vpop.f32.mrf.mxu0
        %v5280 = vpop.f32.mrf.mxu0
        %v5281 = vadd.f32 0.0, %v5280
        %v5282 = vpop.f32.mrf.mxu0
        %5283 = vmatprep.mubr.bf16.mxu0 0
        %5284 = vmatmul.mubr.bf16.gmra.mxu0 %v5151
        %v5285 = vpop.f32.mrf.mxu0
        %v5286 = vadd.f32 0.0, %v5285
        %v5287 = vpop.f32.mrf.mxu0
        %v5288 = vpop.f32.mrf.mxu0
        %v5289 = vadd.f32 0.0, %v5288
        %v5290 = vpop.f32.mrf.mxu0
        %5291 = vmatprep.mubr.bf16.mxu0 0
        %5292 = vmatmul.mubr.bf16.gmra.mxu0 %v5154
        %v5293 = vpop.f32.mrf.mxu0
        %v5294 = vadd.f32 0.0, %v5293
        %v5295 = vpop.f32.mrf.mxu0
        %v5296 = vpop.f32.mrf.mxu0
        %v5297 = vadd.f32 0.0, %v5296
        %v5298 = vpop.f32.mrf.mxu0
        %5299 = vmatprep.mubr.bf16.mxu0 0
        %5300 = vmatmul.mubr.bf16.gmra.mxu0 %v5157
        %v5301 = vpop.f32.mrf.mxu0
        %v5302 = vadd.f32 0.0, %v5301
        %v5303 = vpop.f32.mrf.mxu0
        %v5304 = vpop.f32.mrf.mxu0
        %v5305 = vadd.f32 0.0, %v5304
        %v5306 = vpop.f32.mrf.mxu0
        %5307 = vmatprep.mubr.bf16.mxu0 0
        %5308 = vmatmul.mubr.bf16.gmra.mxu0 %v5160
        %v5309 = vpop.f32.mrf.mxu0
        %v5310 = vadd.f32 0.0, %v5309
        %v5311 = vpop.f32.mrf.mxu0
        %v5312 = vpop.f32.mrf.mxu0
        %v5313 = vadd.f32 0.0, %v5312
        %v5314 = vpop.f32.mrf.mxu0
        %5315 = vmatprep.mubr.bf16.mxu0 0
        %5316 = vmatmul.mubr.bf16.gmra.mxu0 %v5163
        %v5317 = vpop.f32.mrf.mxu0
        %v5318 = vadd.f32 0.0, %v5317
        %v5319 = vpop.f32.mrf.mxu0
        %v5320 = vpop.f32.mrf.mxu0
        %v5321 = vadd.f32 0.0, %v5320
        %v5322 = vpop.f32.mrf.mxu0
        %5323 = vmatprep.mubr.bf16.mxu0 0
        %5324 = vmatmul.mubr.bf16.gmra.mxu0 %v5166
        %v5325 = vpop.f32.mrf.mxu0
        %v5326 = vadd.f32 0.0, %v5325
        %v5327 = vpop.f32.mrf.mxu0
        %v5328 = vpop.f32.mrf.mxu0
        %v5329 = vadd.f32 0.0, %v5328
        %v5330 = vpop.f32.mrf.mxu0
        %5331 = vdwg.mxu0
        %v5332 = vadd.f32 %v4764, %v5206
        %v5333 = vadd.f32 %v4767, %v5209
        %v5334 = vadd.f32 %v4772, %v5214
        %v5335 = vadd.f32 %v4775, %v5217
        %v5336 = vadd.f32 %v4780, %v5222
        %v5337 = vadd.f32 %v4783, %v5225
        %v5338 = vadd.f32 %v4788, %v5230
        %v5339 = vadd.f32 %v4791, %v5233
        %v5340 = vadd.f32 %v4796, %v5238
        %v5341 = vadd.f32 %v4799, %v5241
        %v5342 = vadd.f32 %v4804, %v5246
        %v5343 = vadd.f32 %v4807, %v5249
        %v5344 = vadd.f32 %v4812, %v5254
        %v5345 = vadd.f32 %v4815, %v5257
        %v5346 = vadd.f32 %v4820, %v5262
        %v5347 = vadd.f32 %v4823, %v5265
        %v5348 = vadd.f32 %v4828, %v5270
        %v5349 = vadd.f32 %v4831, %v5273
        %v5350 = vadd.f32 %v4836, %v5278
        %v5351 = vadd.f32 %v4839, %v5281
        %v5352 = vadd.f32 %v4844, %v5286
        %v5353 = vadd.f32 %v4847, %v5289
        %v5354 = vadd.f32 %v4852, %v5294
        %v5355 = vadd.f32 %v4855, %v5297
        %v5356 = vadd.f32 %v4860, %v5302
        %v5357 = vadd.f32 %v4863, %v5305
        %v5358 = vadd.f32 %v4868, %v5310
        %v5359 = vadd.f32 %v4871, %v5313
        %v5360 = vadd.f32 %v4876, %v5318
        %v5361 = vadd.f32 %v4879, %v5321
        %v5362 = vadd.f32 %v4884, %v5326
        %v5363 = vadd.f32 %v4887, %v5329
        %v5364 = vld [vmem:[%s10] sm:$0x1]
        %v5366 = vlaneseq
        %v5367 = vshrl.u32 %v5366, 7
        %v5368 = vsub.s32 0, %v5367
        %v5369 = vrot.slane %v5364, %v5368
        %v5371 = vadd.f32 %v5332, %v5369
        %v5372 = vadd.f32 %v5333, %v5369
        %v5373 = vadd.f32 %v5334, %v5369
        %v5374 = vadd.f32 %v5335, %v5369
        %v5375 = vadd.f32 %v5336, %v5369
        %v5376 = vadd.f32 %v5337, %v5369
        %v5377 = vadd.f32 %v5338, %v5369
        %v5378 = vadd.f32 %v5339, %v5369
        %v5379 = vadd.f32 %v5340, %v5369
        %v5380 = vadd.f32 %v5341, %v5369
        %v5381 = vadd.f32 %v5342, %v5369
        %v5382 = vadd.f32 %v5343, %v5369
        %v5383 = vadd.f32 %v5344, %v5369
        %v5384 = vadd.f32 %v5345, %v5369
        %v5385 = vadd.f32 %v5346, %v5369
        %v5386 = vadd.f32 %v5347, %v5369
        %v5387 = vadd.f32 %v5348, %v5369
        %v5388 = vadd.f32 %v5349, %v5369
        %v5389 = vadd.f32 %v5350, %v5369
        %v5390 = vadd.f32 %v5351, %v5369
        %v5391 = vadd.f32 %v5352, %v5369
        %v5392 = vadd.f32 %v5353, %v5369
        %v5393 = vadd.f32 %v5354, %v5369
        %v5394 = vadd.f32 %v5355, %v5369
        %v5395 = vadd.f32 %v5356, %v5369
        %v5396 = vadd.f32 %v5357, %v5369
        %v5397 = vadd.f32 %v5358, %v5369
        %v5398 = vadd.f32 %v5359, %v5369
        %v5399 = vadd.f32 %v5360, %v5369
        %v5400 = vadd.f32 %v5361, %v5369
        %v5401 = vadd.f32 %v5362, %v5369
        %v5402 = vadd.f32 %v5363, %v5369
        %v5403 = vmax.f32 %v5371, 0.0
        %v5404 = vmax.f32 %v5372, 0.0
        %v5405 = vmax.f32 %v5373, 0.0
        %v5406 = vmax.f32 %v5374, 0.0
        %v5407 = vmax.f32 %v5375, 0.0
        %v5408 = vmax.f32 %v5376, 0.0
        %v5409 = vmax.f32 %v5377, 0.0
        %v5410 = vmax.f32 %v5378, 0.0
        %v5411 = vmax.f32 %v5379, 0.0
        %v5412 = vmax.f32 %v5380, 0.0
        %v5413 = vmax.f32 %v5381, 0.0
        %v5414 = vmax.f32 %v5382, 0.0
        %v5415 = vmax.f32 %v5383, 0.0
        %v5416 = vmax.f32 %v5384, 0.0
        %v5417 = vmax.f32 %v5385, 0.0
        %v5418 = vmax.f32 %v5386, 0.0
        %v5419 = vmax.f32 %v5387, 0.0
        %v5420 = vmax.f32 %v5388, 0.0
        %v5421 = vmax.f32 %v5389, 0.0
        %v5422 = vmax.f32 %v5390, 0.0
        %v5423 = vmax.f32 %v5391, 0.0
        %v5424 = vmax.f32 %v5392, 0.0
        %v5425 = vmax.f32 %v5393, 0.0
        %v5426 = vmax.f32 %v5394, 0.0
        %v5427 = vmax.f32 %v5395, 0.0
        %v5428 = vmax.f32 %v5396, 0.0
        %v5429 = vmax.f32 %v5397, 0.0
        %v5430 = vmax.f32 %v5398, 0.0
        %v5431 = vmax.f32 %v5399, 0.0
        %v5432 = vmax.f32 %v5400, 0.0
        %v5433 = vmax.f32 %v5401, 0.0
        %v5434 = vmax.f32 %v5402, 0.0
        %5435 = vst.msk [vmem:[%s379] sm:$0xff] %vm1003, %v5403
        %5436 = vst.msk [vmem:[%s379 + $0x8] sm:$0xff] %vm1003, %v5404
        %5437 = vst.msk [vmem:[%s379 + $0x10] sm:$0xff] %vm1003, %v5405
        %5438 = vst.msk [vmem:[%s379 + $0x18] sm:$0xff] %vm1003, %v5406
        %5439 = vst.msk [vmem:[%s379 + $0x20] sm:$0xff] %vm1003, %v5407
        %5440 = vst.msk [vmem:[%s379 + $0x28] sm:$0xff] %vm1003, %v5408
        %5441 = vst.msk [vmem:[%s379 + $0x30] sm:$0xff] %vm1003, %v5409
        %5442 = vst.msk [vmem:[%s379 + $0x38] sm:$0xff] %vm1003, %v5410
        %5443 = vst.msk [vmem:[%s379 + $0x40] sm:$0xff] %vm1003, %v5411
        %5444 = vst.msk [vmem:[%s379 + $0x48] sm:$0xff] %vm1003, %v5412
        %5445 = vst.msk [vmem:[%s379 + $0x50] sm:$0xff] %vm1003, %v5413
        %5446 = vst.msk [vmem:[%s379 + $0x58] sm:$0xff] %vm1003, %v5414
        %5447 = vst.msk [vmem:[%s379 + $0x60] sm:$0xff] %vm1003, %v5415
        %5448 = vst.msk [vmem:[%s379 + $0x68] sm:$0xff] %vm1003, %v5416
        %5449 = vst.msk [vmem:[%s379 + $0x70] sm:$0xff] %vm1003, %v5417
        %5450 = vst.msk [vmem:[%s379 + $0x78] sm:$0xff] %vm1003, %v5418
        %5451 = vst.msk [vmem:[%s379 + $0x80] sm:$0xff] %vm1003, %v5419
        %5452 = vst.msk [vmem:[%s379 + $0x88] sm:$0xff] %vm1003, %v5420
        %5453 = vst.msk [vmem:[%s379 + $0x90] sm:$0xff] %vm1003, %v5421
        %5454 = vst.msk [vmem:[%s379 + $0x98] sm:$0xff] %vm1003, %v5422
        %5455 = vst.msk [vmem:[%s379 + $0xa0] sm:$0xff] %vm1003, %v5423
        %5456 = vst.msk [vmem:[%s379 + $0xa8] sm:$0xff] %vm1003, %v5424
        %5457 = vst.msk [vmem:[%s379 + $0xb0] sm:$0xff] %vm1003, %v5425
        %5458 = vst.msk [vmem:[%s379 + $0xb8] sm:$0xff] %vm1003, %v5426
        %5459 = vst.msk [vmem:[%s379 + $0xc0] sm:$0xff] %vm1003, %v5427
        %5460 = vst.msk [vmem:[%s379 + $0xc8] sm:$0xff] %vm1003, %v5428
        %5461 = vst.msk [vmem:[%s379 + $0xd0] sm:$0xff] %vm1003, %v5429
        %5462 = vst.msk [vmem:[%s379 + $0xd8] sm:$0xff] %vm1003, %v5430
        %5463 = vst.msk [vmem:[%s379 + $0xe0] sm:$0xff] %vm1003, %v5431
        %5464 = vst.msk [vmem:[%s379 + $0xe8] sm:$0xff] %vm1003, %v5432
        %5465 = vst.msk [vmem:[%s379 + $0xf0] sm:$0xff] %vm1003, %v5433
        %5466 = vst.msk [vmem:[%s379 + $0xf8] sm:$0xff] %vm1003, %v5434
        %5499 = vrot.lane.b32.xlu0 %v386, 40
        %v5500 = vpop.permute.xlu0 %5499
        %5501 = vrot.lane.b32.xlu0 %v387, 40
        %v5502 = vpop.permute.xlu0 %5501
        %5503 = vrot.lane.b32.xlu0 %v388, 40
        %v5504 = vpop.permute.xlu0 %5503
        %5505 = vrot.lane.b32.xlu0 %v389, 40
        %v5506 = vpop.permute.xlu0 %5505
        %5507 = vrot.lane.b32.xlu0 %v390, 40
        %v5508 = vpop.permute.xlu0 %5507
        %5509 = vrot.lane.b32.xlu0 %v391, 40
        %v5510 = vpop.permute.xlu0 %5509
        %5511 = vrot.lane.b32.xlu0 %v392, 40
        %v5512 = vpop.permute.xlu0 %5511
        %5513 = vrot.lane.b32.xlu0 %v393, 40
        %v5514 = vpop.permute.xlu0 %5513
        %5515 = vrot.lane.b32.xlu0 %v394, 40
        %v5516 = vpop.permute.xlu0 %5515
        %5517 = vrot.lane.b32.xlu0 %v395, 40
        %v5518 = vpop.permute.xlu0 %5517
        %5519 = vrot.lane.b32.xlu0 %v396, 40
        %v5520 = vpop.permute.xlu0 %5519
        %5521 = vrot.lane.b32.xlu0 %v397, 40
        %v5522 = vpop.permute.xlu0 %5521
        %5523 = vrot.lane.b32.xlu0 %v398, 40
        %v5524 = vpop.permute.xlu0 %5523
        %5525 = vrot.lane.b32.xlu0 %v399, 40
        %v5526 = vpop.permute.xlu0 %5525
        %5527 = vrot.lane.b32.xlu0 %v400, 40
        %v5528 = vpop.permute.xlu0 %5527
        %5529 = vrot.lane.b32.xlu0 %v401, 40
        %v5530 = vpop.permute.xlu0 %5529
        %5531 = vrot.lane.b32.xlu0 %v402, 40
        %v5532 = vpop.permute.xlu0 %5531
        %5533 = vrot.lane.b32.xlu0 %v403, 40
        %v5534 = vpop.permute.xlu0 %5533
        %5535 = vrot.lane.b32.xlu0 %v404, 40
        %v5536 = vpop.permute.xlu0 %5535
        %5537 = vrot.lane.b32.xlu0 %v405, 40
        %v5538 = vpop.permute.xlu0 %5537
        %5539 = vrot.lane.b32.xlu0 %v406, 40
        %v5540 = vpop.permute.xlu0 %5539
        %5541 = vrot.lane.b32.xlu0 %v407, 40
        %v5542 = vpop.permute.xlu0 %5541
        %5543 = vrot.lane.b32.xlu0 %v408, 40
        %v5544 = vpop.permute.xlu0 %5543
        %5545 = vrot.lane.b32.xlu0 %v409, 40
        %v5546 = vpop.permute.xlu0 %5545
        %5547 = vrot.lane.b32.xlu0 %v410, 40
        %v5548 = vpop.permute.xlu0 %5547
        %5549 = vrot.lane.b32.xlu0 %v411, 40
        %v5550 = vpop.permute.xlu0 %5549
        %5551 = vrot.lane.b32.xlu0 %v412, 40
        %v5552 = vpop.permute.xlu0 %5551
        %5553 = vrot.lane.b32.xlu0 %v413, 40
        %v5554 = vpop.permute.xlu0 %5553
        %5555 = vrot.lane.b32.xlu0 %v414, 40
        %v5556 = vpop.permute.xlu0 %5555
        %5557 = vrot.lane.b32.xlu0 %v415, 40
        %v5558 = vpop.permute.xlu0 %5557
        %5559 = vrot.lane.b32.xlu0 %v416, 40
        %v5560 = vpop.permute.xlu0 %5559
        %5561 = vrot.lane.b32.xlu0 %v417, 40
        %v5562 = vpop.permute.xlu0 %5561
        %vm5595 = vcmask 359744
        %5596 = vst.msk [vmem:[%s379] sm:$0xff] %vm5595, %v5500
        %5597 = vst.msk [vmem:[%s379 + $0x8] sm:$0xff] %vm5595, %v5502
        %5598 = vst.msk [vmem:[%s379 + $0x10] sm:$0xff] %vm5595, %v5504
        %5599 = vst.msk [vmem:[%s379 + $0x18] sm:$0xff] %vm5595, %v5506
        %5600 = vst.msk [vmem:[%s379 + $0x20] sm:$0xff] %vm5595, %v5508
        %5601 = vst.msk [vmem:[%s379 + $0x28] sm:$0xff] %vm5595, %v5510
        %5602 = vst.msk [vmem:[%s379 + $0x30] sm:$0xff] %vm5595, %v5512
        %5603 = vst.msk [vmem:[%s379 + $0x38] sm:$0xff] %vm5595, %v5514
        %5604 = vst.msk [vmem:[%s379 + $0x40] sm:$0xff] %vm5595, %v5516
        %5605 = vst.msk [vmem:[%s379 + $0x48] sm:$0xff] %vm5595, %v5518
        %5606 = vst.msk [vmem:[%s379 + $0x50] sm:$0xff] %vm5595, %v5520
        %5607 = vst.msk [vmem:[%s379 + $0x58] sm:$0xff] %vm5595, %v5522
        %5608 = vst.msk [vmem:[%s379 + $0x60] sm:$0xff] %vm5595, %v5524
        %5609 = vst.msk [vmem:[%s379 + $0x68] sm:$0xff] %vm5595, %v5526
        %5610 = vst.msk [vmem:[%s379 + $0x70] sm:$0xff] %vm5595, %v5528
        %5611 = vst.msk [vmem:[%s379 + $0x78] sm:$0xff] %vm5595, %v5530
        %5612 = vst.msk [vmem:[%s379 + $0x80] sm:$0xff] %vm5595, %v5532
        %5613 = vst.msk [vmem:[%s379 + $0x88] sm:$0xff] %vm5595, %v5534
        %5614 = vst.msk [vmem:[%s379 + $0x90] sm:$0xff] %vm5595, %v5536
        %5615 = vst.msk [vmem:[%s379 + $0x98] sm:$0xff] %vm5595, %v5538
        %5616 = vst.msk [vmem:[%s379 + $0xa0] sm:$0xff] %vm5595, %v5540
        %5617 = vst.msk [vmem:[%s379 + $0xa8] sm:$0xff] %vm5595, %v5542
        %5618 = vst.msk [vmem:[%s379 + $0xb0] sm:$0xff] %vm5595, %v5544
        %5619 = vst.msk [vmem:[%s379 + $0xb8] sm:$0xff] %vm5595, %v5546
        %5620 = vst.msk [vmem:[%s379 + $0xc0] sm:$0xff] %vm5595, %v5548
        %5621 = vst.msk [vmem:[%s379 + $0xc8] sm:$0xff] %vm5595, %v5550
        %5622 = vst.msk [vmem:[%s379 + $0xd0] sm:$0xff] %vm5595, %v5552
        %5623 = vst.msk [vmem:[%s379 + $0xd8] sm:$0xff] %vm5595, %v5554
        %5624 = vst.msk [vmem:[%s379 + $0xe0] sm:$0xff] %vm5595, %v5556
        %5625 = vst.msk [vmem:[%s379 + $0xe8] sm:$0xff] %vm5595, %v5558
        %5626 = vst.msk [vmem:[%s379 + $0xf0] sm:$0xff] %vm5595, %v5560
        %5627 = vst.msk [vmem:[%s379 + $0xf8] sm:$0xff] %vm5595, %v5562
        %s5628 = sand.u32 %s269, 1
        %s5629 = scalar_lea.sflag [#allocation3], %s5628
        %s5630 = sand.u32 %s269, 1
        %s5631 = smul.addr %s5630, 256
        %s5632 = scalar_lea.vmem [#allocation2], %s5631
        // Predicated region
        $region65: #{tpu_custom_call.1} parent=63 // pred_check
          %p5633 = pneg %p279
        $region66: #{tpu_custom_call.1} parent=63 // pred_check_branch
          %5635 = sbr.rel (%p5633) target = $region68
        $region67: #{tpu_custom_call.1} parent=63 // pred_region
          %s5637 = ssub.s32 4096, 4096
          %5638 = vsyncadd %s5629, %s5637
          %s5639 = smul.addr %s25, 32
          %s5640 = smul.addr %s5639, 128
          %s5641 = scalar_lea.hbm %s11, %s5640
          %s5642 = sshll.u32 %s5632, 4
          %s5643 = int_to_ptr.vmem [resolvable:$true] %s5642
          %5648 = dma.vmem_to_hbm [thread:$0]  %s5643, 4096, %s5641, %s5629, 128, 128, 8
        $region68: #{tpu_custom_call.1} parent=63 // pred_fallthru
          _
      $region64: #{tpu_custom_call.1} parent=5 // pred_fallthru
        _
      %p5649 = scmp.le.s32.totalorder 2, %s20
      // Predicated region
      $region69: #{tpu_custom_call.1} parent=5 // pred_check
        %p5650 = pneg %p5649
      $region70: #{tpu_custom_call.1} parent=5 // pred_check_branch
        %5652 = sbr.rel (%p5650) target = $region72
      $region71: #{tpu_custom_call.1} parent=5 // pred_region
        %s5653 = ssub.s32 %s20, 2
        // Predicated region
        $region73: #{tpu_custom_call.1} parent=71 // pred_check
          %p5654 = pneg %p285
        $region74: #{tpu_custom_call.1} parent=71 // pred_check_branch
          %5656 = sbr.rel (%p5654) target = $region76
        $region75: #{tpu_custom_call.1} parent=71 // pred_region
          %s5657 = sand.u32 %s270, 1
          %s5658 = scalar_lea.sflag [#allocation3], %s5657
          %s5659 = sand.u32 %s270, 1
          %s5660 = smul.addr %s5659, 256
          %s5661 = scalar_lea.vmem [#allocation2], %s5660
          %5662 = dma.done %s5658, 4096
        $region76: #{tpu_custom_call.1} parent=71 // pred_fallthru
          _
      $region72: #{tpu_custom_call.1} parent=5 // pred_fallthru
        _
    $region6: #{tpu_custom_call.1} parent=1 // loop_footer
      %s24 = sadd.s32 1, %s20
    $region7: #{tpu_custom_call.1} parent=1 // loop_footer_branch
      %19 = sbr.rel target = $region3
    $region8: #{tpu_custom_call.1} parent=1 // loop_exit
      _
    %5663 = vsyncpa [#allocation3], 1
    %s5664 = scalar_lea.sflag [#allocation3], 1
    %5665 = vsyncpa %s5664, 1

</llo_original>
